<compile_context>
chip_gen: v7x
topology: tpu7x:2x2x1
jax: 0.10.0
libtpu: 0.0.40
codegen_flags: <defaults>
</compile_context>

<pallas_src>
import math
import numpy as np
import jax
import jax.numpy as jnp
from jax import lax
from jax.experimental import pallas as pl
from jax.experimental.pallas import tpu as pltpu

jax.config.update("jax_default_matmul_precision", "highest")

# ----------------------------- configuration -------------------------------
N, H, W = 2, 16, 16
HW = H * W
INP, HIDDEN, OUP = 8, 32, 16
KSIZE, STRIDE, USE_SE = 3, 1, True             # stride=1 path
INIT1 = math.ceil(HIDDEN / 2)                  # GhostModule 1: ratio=2
NEW1 = INIT1
INIT2 = math.ceil(OUP / 2)                     # GhostModule 2: ratio=2
NEW2 = INIT2

PARAM_ORDER = [
    "w1p", "s1p", "b1p", "w1c", "s1c", "b1c",
    "wf1", "bf1", "wf2", "bf2",
    "w2p", "s2p", "b2p", "w2c", "s2c", "b2c",
    "wsd", "ssd", "bsd", "wsp", "ssp", "bsp",
]


# ------------------------------ Pallas kernel -------------------------------
def ghost_bottleneck_kernel(
    x_ref,
    w1p_ref, s1p_ref, b1p_ref, w1c_ref, s1c_ref, b1c_ref,
    wf1_ref, bf1_ref, wf2_ref, bf2_ref,
    w2p_ref, s2p_ref, b2p_ref, w2c_ref, s2c_ref, b2c_ref,
    wsd_ref, ssd_ref, bsd_ref, wsp_ref, ssp_ref, bsp_ref,
    out_ref):
  """Processes one image (grid over batch).  x_ref: (1, INP, H*W)."""

  # Boundary masks for the depthwise conv, built once from an iota (a few VPU
  # ops; reused by all three depthwise convs).
  pos = lax.broadcasted_iota(jnp.int32, (1, HW), 1)
  if (W & (W - 1)) == 0:
    wcol = jnp.bitwise_and(pos, W - 1)
  else:
    wcol = pos % W
  m_wg = (wcol != 0).astype(jnp.float32)        # source col w-1 valid (dx = -1)
  m_wl = (wcol != W - 1).astype(jnp.float32)    # source col w+1 valid (dx = +1)
  m_hg = (pos >= W).astype(jnp.float32)         # source row h-1 valid (dy = -1)
  m_hl = (pos < HW - W).astype(jnp.float32)     # source row h+1 valid (dy = +1)

  def lroll(x, delta):
    # shifted[p] = x[(p + delta) mod HW]   (wrap handled by caller's masks)
    s = (-delta) % HW
    if s == 0:
      return x
    return pltpu.roll(x, shift=s, axis=1)

  def conv1x1(x, w_ref, s_ref, b_ref, relu):
    # 1x1 conv == (Cout,Cin) x (Cin,HW) matmul on the MXU, BN folded in.
    y = jnp.dot(w_ref[...], x, preferred_element_type=jnp.float32)
    y = y * s_ref[...] + b_ref[...]              # (Cout,1) broadcast over lanes
    return jnp.maximum(y, 0.0) if relu else y

  def dwconv3x3(x, w_ref, s_ref, b_ref, relu):
    # Depthwise 3x3, pad=1, stride=1.  Spatial shifts = lane rolls + masks.
    x_m1 = lroll(x, -1) * m_wg                   # source column w-1
    x_p1 = lroll(x, +1) * m_wl                   # source column w+1
    cols = (x_m1, x, x_p1)
    acc = None
    for dyi, dy in enumerate((-1, 0, 1)):
      for dxi in range(3):
        xc = cols[dxi]
        if dy == -1:
          t = lroll(xc, -W) * m_hg
        elif dy == 1:
          t = lroll(xc, +W) * m_hl
        else:
          t = xc
        contrib = t * w_ref[dyi * 3 + dxi]       # (C,1) per-tap weight
        acc = contrib if acc is None else acc + contrib
    y = acc * s_ref[...] + b_ref[...]
    return jnp.maximum(y, 0.0) if relu else y

  def ghost_module(x, wpr, spr, bpr, wcr, scr, bcr, relu):
    x1 = conv1x1(x, wpr, spr, bpr, relu)         # (init_c, HW)
    x2 = dwconv3x3(x1, wcr, scr, bcr, relu)      # (new_c, HW)
    # oup == init_c + new_c for this config, so no slicing needed.
    return jnp.concatenate([x1, x2], axis=0)

  x = x_ref[0].astype(jnp.float32)               # (INP, HW)

  # GhostModule(inp -> hidden, relu=True)
  h = ghost_module(x, w1p_ref, s1p_ref, b1p_ref, w1c_ref, s1c_ref, b1c_ref, True)

  # TODO(synk): stride=2 main-path depthwise stage not implemented (this config uses stride=1).

  # SELayer(hidden): global avg pool -> FC -> ReLU -> FC -> clamp(0,1) -> scale
  m = jnp.mean(h, axis=1, keepdims=True)                           # (hidden, 1)
  z = jnp.dot(wf1_ref[...], m, preferred_element_type=jnp.float32) + bf1_ref[...]
  z = jnp.maximum(z, 0.0)
  z = jnp.dot(wf2_ref[...], z, preferred_element_type=jnp.float32) + bf2_ref[...]
  z = jnp.clip(z, 0.0, 1.0)                                        # (hidden, 1)
  h = h * z                                                        # per-channel scale

  # GhostModule(hidden -> oup, relu=False)
  y = ghost_module(h, w2p_ref, s2p_ref, b2p_ref, w2c_ref, s2c_ref, b2c_ref, False)

  # shortcut: depthwise3x3(inp)+BN  ->  1x1 conv(inp->oup)+BN
  sc = dwconv3x3(x, wsd_ref, ssd_ref, bsd_ref, False)
  sc = conv1x1(sc, wsp_ref, ssp_ref, bsp_ref, False)

  out_ref[0] = (y + sc).astype(out_ref.dtype)    # (OUP, 256): lane-dense store


# ------------------------------- wrapper ------------------------------------
def _full_spec(shape):
  nd = len(shape)
  return pl.BlockSpec(shape, lambda n, _nd=nd: (0,) * _nd)


def _kernel_weights(p):
  """Reorient parameters into the channels-on-sublane kernel layout."""
  def dw9(w):                      # (3,3,c) -> (9,c,1)
    c = w.shape[-1]
    return w.reshape(9, c)[..., None]

  def col(v):                      # (1,c) -> (c,1)
    return v.reshape(-1, 1)

  return [
      p["w1p"].T, col(p["s1p"]), col(p["b1p"]),
      dw9(p["w1c"]), col(p["s1c"]), col(p["b1c"]),
      p["wf1"].T, col(p["bf1"]), p["wf2"].T, col(p["bf2"]),
      p["w2p"].T, col(p["s2p"]), col(p["b2p"]),
      dw9(p["w2c"]), col(p["s2c"]), col(p["b2c"]),
      dw9(p["wsd"]), col(p["ssd"]), col(p["bsd"]),
      p["wsp"].T, col(p["ssp"]), col(p["bsp"]),
  ]


def ghost_bottleneck(x_nchw, params):
  # NCHW -> (N, C, H*W) is a free reshape (no transpose).
  x = x_nchw.reshape(N, INP, HW).astype(jnp.float32)
  weights = _kernel_weights(params)

  in_specs = [pl.BlockSpec((1, INP, HW), lambda n: (n, 0, 0))]
  in_specs += [_full_spec(tuple(w.shape)) for w in weights]

  out = pl.pallas_call(
      ghost_bottleneck_kernel,
      out_shape=jax.ShapeDtypeStruct((N, OUP, HW), jnp.float32),
      grid_spec=pltpu.PrefetchScalarGridSpec(
          num_scalar_prefetch=0,
          grid=(N,),
          in_specs=in_specs,
          out_specs=pl.BlockSpec((1, OUP, HW), lambda n: (n, 0, 0))),
      compiler_params=pltpu.CompilerParams(
          dimension_semantics=("parallel",)),     # distinct output block per n
  )(x, *weights)
  return out.reshape(N, OUP, H, W)


# --------------------------- parameter generation ---------------------------
def make_params(key):
  keys = iter(jax.random.split(key, 64))
  nk = lambda: next(keys)

  def conv_w(cin, cout):
    return 0.2 * jax.random.normal(nk(), (cin, cout), jnp.float32)

  def dw_w(c):
    return 0.2 * jax.random.normal(nk(), (3, 3, c), jnp.float32)

  def bn(c):
    gamma = 1.0 + 0.1 * jax.random.normal(nk(), (c,), jnp.float32)
    beta = 0.1 * jax.random.normal(nk(), (c,), jnp.float32)
    mean = 0.1 * jax.random.normal(nk(), (c,), jnp.float32)
    var = 1.0 + 0.2 * jax.random.uniform(nk(), (c,), jnp.float32)
    scale = gamma * lax.rsqrt(var + 1e-5)
    bias = beta - mean * scale
    return scale.reshape(1, c), bias.reshape(1, c)

  p = {}
  # GhostModule 1 (inp -> hidden)
  p["w1p"] = conv_w(INP, INIT1); p["s1p"], p["b1p"] = bn(INIT1)
  p["w1c"] = dw_w(INIT1);        p["s1c"], p["b1c"] = bn(NEW1)
  # SELayer(hidden, reduction=4)
  p["wf1"] = 0.2 * jax.random.normal(nk(), (HIDDEN, HIDDEN // 4), jnp.float32)
  p["bf1"] = 0.1 * jax.random.normal(nk(), (1, HIDDEN // 4), jnp.float32)
  p["wf2"] = 0.2 * jax.random.normal(nk(), (HIDDEN // 4, HIDDEN), jnp.float32)
  p["bf2"] = 0.1 * jax.random.normal(nk(), (1, HIDDEN), jnp.float32)
  # GhostModule 2 (hidden -> oup)
  p["w2p"] = conv_w(HIDDEN, INIT2); p["s2p"], p["b2p"] = bn(INIT2)
  p["w2c"] = dw_w(INIT2);           p["s2c"], p["b2c"] = bn(NEW2)
  # shortcut
  p["wsd"] = dw_w(INP);             p["ssd"], p["bsd"] = bn(INP)
  p["wsp"] = conv_w(INP, OUP);      p["ssp"], p["bsp"] = bn(OUP)
  return p


# ----------------------------- pure-JAX reference ---------------------------
def ref_forward(x_nchw, p):
  x = jnp.transpose(x_nchw, (0, 2, 3, 1)).astype(jnp.float32)

  def conv1x1(x, w, s, b, relu):
    y = jnp.einsum("nhwc,cd->nhwd", x, w)
    y = y * s.reshape(1, 1, 1, -1) + b.reshape(1, 1, 1, -1)
    return jnp.maximum(y, 0.0) if relu else y

  def dw3x3(x, w, s, b, relu):
    c = x.shape[-1]
    y = lax.conv_general_dilated(
        x, w.reshape(3, 3, 1, c), (1, 1), "SAME",
        dimension_numbers=("NHWC", "HWIO", "NHWC"), feature_group_count=c)
    y = y * s.reshape(1, 1, 1, -1) + b.reshape(1, 1, 1, -1)
    return jnp.maximum(y, 0.0) if relu else y

  def ghost(x, wp, sp, bp, wc, sc, bc, relu, oup):
    x1 = conv1x1(x, wp, sp, bp, relu)
    x2 = dw3x3(x1, wc, sc, bc, relu)
    return jnp.concatenate([x1, x2], axis=-1)[..., :oup]

  h = ghost(x, p["w1p"], p["s1p"], p["b1p"], p["w1c"], p["s1c"], p["b1c"],
            True, HIDDEN)
  m = jnp.mean(h, axis=(1, 2))                                    # (N, hidden)
  z = jnp.maximum(m @ p["wf1"] + p["bf1"], 0.0)
  z = z @ p["wf2"] + p["bf2"]
  z = jnp.clip(z, 0.0, 1.0)
  h = h * z[:, None, None, :]
  y = ghost(h, p["w2p"], p["s2p"], p["b2p"], p["w2c"], p["s2c"], p["b2c"],
            False, OUP)
  s = dw3x3(x, p["wsd"], p["ssd"], p["bsd"], False)
  s = conv1x1(s, p["wsp"], p["ssp"], p["bsp"], False)
  return jnp.transpose(y + s, (0, 3, 1, 2))


# --------------------------------- main --------------------------------------
if __name__ == "__main__":
  key = jax.random.PRNGKey(0)
  kx, kp = jax.random.split(key)
  x = jax.random.normal(kx, (N, INP, H, W), jnp.float32)          # NCHW, like PyTorch
  params = make_params(kp)

  out = ghost_bottleneck(x, params)
  out = jax.block_until_ready(out)

  ref = ref_forward(x, params)
  assert out.shape == (N, OUP, H, W)
  np.testing.assert_allclose(np.asarray(out), np.asarray(ref),
                             rtol=1e-2, atol=1e-3)
  print("KERNEL_OK")
</pallas_src>

<mosaic_0001>
module attributes {stable_mosaic.version = 11 : i64} {
  func.func @ghost_bottleneck_kernel(%arg0: i32, %arg1: memref<1x8x256xf32, #tpu.memory_space<vmem>>, %arg2: memref<16x8xf32, #tpu.memory_space<vmem>>, %arg3: memref<16x1xf32, #tpu.memory_space<vmem>>, %arg4: memref<16x1xf32, #tpu.memory_space<vmem>>, %arg5: memref<9x16x1xf32, #tpu.memory_space<vmem>>, %arg6: memref<16x1xf32, #tpu.memory_space<vmem>>, %arg7: memref<16x1xf32, #tpu.memory_space<vmem>>, %arg8: memref<8x32xf32, #tpu.memory_space<vmem>>, %arg9: memref<8x1xf32, #tpu.memory_space<vmem>>, %arg10: memref<32x8xf32, #tpu.memory_space<vmem>>, %arg11: memref<32x1xf32, #tpu.memory_space<vmem>>, %arg12: memref<8x32xf32, #tpu.memory_space<vmem>>, %arg13: memref<8x1xf32, #tpu.memory_space<vmem>>, %arg14: memref<8x1xf32, #tpu.memory_space<vmem>>, %arg15: memref<9x8x1xf32, #tpu.memory_space<vmem>>, %arg16: memref<8x1xf32, #tpu.memory_space<vmem>>, %arg17: memref<8x1xf32, #tpu.memory_space<vmem>>, %arg18: memref<9x8x1xf32, #tpu.memory_space<vmem>>, %arg19: memref<8x1xf32, #tpu.memory_space<vmem>>, %arg20: memref<8x1xf32, #tpu.memory_space<vmem>>, %arg21: memref<16x8xf32, #tpu.memory_space<vmem>>, %arg22: memref<16x1xf32, #tpu.memory_space<vmem>>, %arg23: memref<16x1xf32, #tpu.memory_space<vmem>>, %arg24: memref<1x16x256xf32, #tpu.memory_space<vmem>>) attributes {dimension_semantics = [#tpu.dimension_semantics<parallel>], iteration_bounds = array<i64: 2>, scalar_prefetch = 0 : i64, scratch_operands = 0 : i64, tpu.core_type = #tpu.core_type<tc>, window_params = [{transform_indices = @transform_0, window_bounds = array<i64: 1, 8, 256>}, {pipeline_mode = #tpu.pipeline_mode<synchronous>, transform_indices = @transform_1, window_bounds = array<i64: 16, 8>}, {pipeline_mode = #tpu.pipeline_mode<synchronous>, transform_indices = @transform_2, window_bounds = array<i64: 16, 1>}, {pipeline_mode = #tpu.pipeline_mode<synchronous>, transform_indices = @transform_3, window_bounds = array<i64: 16, 1>}, {pipeline_mode = #tpu.pipeline_mode<synchronous>, transform_indices = @transform_4, window_bounds = array<i64: 9, 16, 1>}, {pipeline_mode = #tpu.pipeline_mode<synchronous>, transform_indices = @transform_5, window_bounds = array<i64: 16, 1>}, {pipeline_mode = #tpu.pipeline_mode<synchronous>, transform_indices = @transform_6, window_bounds = array<i64: 16, 1>}, {pipeline_mode = #tpu.pipeline_mode<synchronous>, transform_indices = @transform_7, window_bounds = array<i64: 8, 32>}, {pipeline_mode = #tpu.pipeline_mode<synchronous>, transform_indices = @transform_8, window_bounds = array<i64: 8, 1>}, {pipeline_mode = #tpu.pipeline_mode<synchronous>, transform_indices = @transform_9, window_bounds = array<i64: 32, 8>}, {pipeline_mode = #tpu.pipeline_mode<synchronous>, transform_indices = @transform_10, window_bounds = array<i64: 32, 1>}, {pipeline_mode = #tpu.pipeline_mode<synchronous>, transform_indices = @transform_11, window_bounds = array<i64: 8, 32>}, {pipeline_mode = #tpu.pipeline_mode<synchronous>, transform_indices = @transform_12, window_bounds = array<i64: 8, 1>}, {pipeline_mode = #tpu.pipeline_mode<synchronous>, transform_indices = @transform_13, window_bounds = array<i64: 8, 1>}, {pipeline_mode = #tpu.pipeline_mode<synchronous>, transform_indices = @transform_14, window_bounds = array<i64: 9, 8, 1>}, {pipeline_mode = #tpu.pipeline_mode<synchronous>, transform_indices = @transform_15, window_bounds = array<i64: 8, 1>}, {pipeline_mode = #tpu.pipeline_mode<synchronous>, transform_indices = @transform_16, window_bounds = array<i64: 8, 1>}, {pipeline_mode = #tpu.pipeline_mode<synchronous>, transform_indices = @transform_17, window_bounds = array<i64: 9, 8, 1>}, {pipeline_mode = #tpu.pipeline_mode<synchronous>, transform_indices = @transform_18, window_bounds = array<i64: 8, 1>}, {pipeline_mode = #tpu.pipeline_mode<synchronous>, transform_indices = @transform_19, window_bounds = array<i64: 8, 1>}, {pipeline_mode = #tpu.pipeline_mode<synchronous>, transform_indices = @transform_20, window_bounds = array<i64: 16, 8>}, {pipeline_mode = #tpu.pipeline_mode<synchronous>, transform_indices = @transform_21, window_bounds = array<i64: 16, 1>}, {pipeline_mode = #tpu.pipeline_mode<synchronous>, transform_indices = @transform_22, window_bounds = array<i64: 16, 1>}, {transform_indices = @transform_23, window_bounds = array<i64: 1, 16, 256>}]} {
    %0 = tpu.iota {dimensions = array<i32: 1>} : vector<1x256xi32>
    %c15_i32 = arith.constant 15 : i32
    %1 = vector.broadcast %c15_i32 : i32 to vector<1x256xi32>
    %2 = arith.andi %0, %1 : vector<1x256xi32>
    %c0_i32 = arith.constant 0 : i32
    %3 = vector.broadcast %c0_i32 : i32 to vector<1x256xi32>
    %4 = arith.cmpi ne, %2, %3 : vector<1x256xi32>
    %5 = arith.extui %4 : vector<1x256xi1> to vector<1x256xi32>
    %6 = arith.sitofp %5 : vector<1x256xi32> to vector<1x256xf32>
    %c15_i32_0 = arith.constant 15 : i32
    %7 = vector.broadcast %c15_i32_0 : i32 to vector<1x256xi32>
    %8 = arith.cmpi ne, %2, %7 : vector<1x256xi32>
    %9 = arith.extui %8 : vector<1x256xi1> to vector<1x256xi32>
    %10 = arith.sitofp %9 : vector<1x256xi32> to vector<1x256xf32>
    %c16_i32 = arith.constant 16 : i32
    %11 = vector.broadcast %c16_i32 : i32 to vector<1x256xi32>
    %12 = arith.cmpi sge, %0, %11 : vector<1x256xi32>
    %13 = arith.extui %12 : vector<1x256xi1> to vector<1x256xi32>
    %14 = arith.sitofp %13 : vector<1x256xi32> to vector<1x256xf32>
    %c240_i32 = arith.constant 240 : i32
    %15 = vector.broadcast %c240_i32 : i32 to vector<1x256xi32>
    %16 = arith.cmpi slt, %0, %15 : vector<1x256xi32>
    %17 = arith.extui %16 : vector<1x256xi1> to vector<1x256xi32>
    %18 = arith.sitofp %17 : vector<1x256xi32> to vector<1x256xf32>
    %c0 = arith.constant 0 : index
    %c0_1 = arith.constant 0 : index
    %c0_2 = arith.constant 0 : index
    %19 = vector.load %arg1[%c0, %c0_1, %c0_2] : memref<1x8x256xf32, #tpu.memory_space<vmem>>, vector<1x8x256xf32>
    %20 = vector.shape_cast %19 : vector<1x8x256xf32> to vector<8x256xf32>
    %c0_3 = arith.constant 0 : index
    %c0_4 = arith.constant 0 : index
    %21 = vector.load %arg2[%c0_3, %c0_4] : memref<16x8xf32, #tpu.memory_space<vmem>>, vector<16x8xf32>
    %cst = arith.constant dense<0.000000e+00> : vector<16x256xf32>
    %22 = tpu.matmul %21, %20, %cst {dimension_numbers = #tpu.dot_dimension_numbers<[1], [0], [0], [1], [0, 0, 1, 1], [], []>, precision = #tpu.contract_precision<fp32>} : vector<16x8xf32>, vector<8x256xf32>, vector<16x256xf32> -> vector<16x256xf32>
    %c0_5 = arith.constant 0 : index
    %c0_6 = arith.constant 0 : index
    %23 = vector.load %arg3[%c0_5, %c0_6] : memref<16x1xf32, #tpu.memory_space<vmem>>, vector<16x1xf32>
    %24 = vector.broadcast %23 : vector<16x1xf32> to vector<16x256xf32>
    %25 = arith.mulf %22, %24 : vector<16x256xf32>
    %c0_7 = arith.constant 0 : index
    %c0_8 = arith.constant 0 : index
    %26 = vector.load %arg4[%c0_7, %c0_8] : memref<16x1xf32, #tpu.memory_space<vmem>>, vector<16x1xf32>
    %27 = vector.broadcast %26 : vector<16x1xf32> to vector<16x256xf32>
    %28 = arith.addf %25, %27 : vector<16x256xf32>
    %cst_9 = arith.constant 0.000000e+00 : f32
    %29 = vector.broadcast %cst_9 : f32 to vector<16x256xf32>
    %30 = arith.maximumf %28, %29 : vector<16x256xf32>
    %c1_i32 = arith.constant 1 : i32
    %31 = tpu.dynamic_rotate %30 by %c1_i32 dim 1 : vector<16x256xf32>, i32 -> vector<16x256xf32>
    %32 = vector.broadcast %6 : vector<1x256xf32> to vector<16x256xf32>
    %33 = arith.mulf %31, %32 : vector<16x256xf32>
    %c255_i32 = arith.constant 255 : i32
    %34 = tpu.dynamic_rotate %30 by %c255_i32 dim 1 : vector<16x256xf32>, i32 -> vector<16x256xf32>
    %35 = vector.broadcast %10 : vector<1x256xf32> to vector<16x256xf32>
    %36 = arith.mulf %34, %35 : vector<16x256xf32>
    %c16_i32_10 = arith.constant 16 : i32
    %37 = tpu.dynamic_rotate %33 by %c16_i32_10 dim 1 : vector<16x256xf32>, i32 -> vector<16x256xf32>
    %38 = vector.broadcast %14 : vector<1x256xf32> to vector<16x256xf32>
    %39 = arith.mulf %37, %38 : vector<16x256xf32>
    %c0_11 = arith.constant 0 : index
    %c0_12 = arith.constant 0 : index
    %c0_13 = arith.constant 0 : index
    %40 = vector.load %arg5[%c0_11, %c0_12, %c0_13] : memref<9x16x1xf32, #tpu.memory_space<vmem>>, vector<1x16x1xf32>
    %41 = vector.shape_cast %40 : vector<1x16x1xf32> to vector<16x1xf32>
    %42 = vector.broadcast %41 : vector<16x1xf32> to vector<16x256xf32>
    %43 = arith.mulf %39, %42 : vector<16x256xf32>
    %c16_i32_14 = arith.constant 16 : i32
    %44 = tpu.dynamic_rotate %30 by %c16_i32_14 dim 1 : vector<16x256xf32>, i32 -> vector<16x256xf32>
    %45 = vector.broadcast %14 : vector<1x256xf32> to vector<16x256xf32>
    %46 = arith.mulf %44, %45 : vector<16x256xf32>
    %c1 = arith.constant 1 : index
    %c0_15 = arith.constant 0 : index
    %c0_16 = arith.constant 0 : index
    %47 = vector.load %arg5[%c1, %c0_15, %c0_16] : memref<9x16x1xf32, #tpu.memory_space<vmem>>, vector<1x16x1xf32>
    %48 = vector.shape_cast %47 : vector<1x16x1xf32> to vector<16x1xf32>
    %49 = vector.broadcast %48 : vector<16x1xf32> to vector<16x256xf32>
    %50 = arith.mulf %46, %49 : vector<16x256xf32>
    %51 = arith.addf %43, %50 : vector<16x256xf32>
    %c16_i32_17 = arith.constant 16 : i32
    %52 = tpu.dynamic_rotate %36 by %c16_i32_17 dim 1 : vector<16x256xf32>, i32 -> vector<16x256xf32>
    %53 = vector.broadcast %14 : vector<1x256xf32> to vector<16x256xf32>
    %54 = arith.mulf %52, %53 : vector<16x256xf32>
    %c2 = arith.constant 2 : index
    %c0_18 = arith.constant 0 : index
    %c0_19 = arith.constant 0 : index
    %55 = vector.load %arg5[%c2, %c0_18, %c0_19] : memref<9x16x1xf32, #tpu.memory_space<vmem>>, vector<1x16x1xf32>
    %56 = vector.shape_cast %55 : vector<1x16x1xf32> to vector<16x1xf32>
    %57 = vector.broadcast %56 : vector<16x1xf32> to vector<16x256xf32>
    %58 = arith.mulf %54, %57 : vector<16x256xf32>
    %59 = arith.addf %51, %58 : vector<16x256xf32>
    %c3 = arith.constant 3 : index
    %c0_20 = arith.constant 0 : index
    %c0_21 = arith.constant 0 : index
    %60 = vector.load %arg5[%c3, %c0_20, %c0_21] : memref<9x16x1xf32, #tpu.memory_space<vmem>>, vector<1x16x1xf32>
    %61 = vector.shape_cast %60 : vector<1x16x1xf32> to vector<16x1xf32>
    %62 = vector.broadcast %61 : vector<16x1xf32> to vector<16x256xf32>
    %63 = arith.mulf %33, %62 : vector<16x256xf32>
    %64 = arith.addf %59, %63 : vector<16x256xf32>
    %c4 = arith.constant 4 : index
    %c0_22 = arith.constant 0 : index
    %c0_23 = arith.constant 0 : index
    %65 = vector.load %arg5[%c4, %c0_22, %c0_23] : memref<9x16x1xf32, #tpu.memory_space<vmem>>, vector<1x16x1xf32>
    %66 = vector.shape_cast %65 : vector<1x16x1xf32> to vector<16x1xf32>
    %67 = vector.broadcast %66 : vector<16x1xf32> to vector<16x256xf32>
    %68 = arith.mulf %30, %67 : vector<16x256xf32>
    %69 = arith.addf %64, %68 : vector<16x256xf32>
    %c5 = arith.constant 5 : index
    %c0_24 = arith.constant 0 : index
    %c0_25 = arith.constant 0 : index
    %70 = vector.load %arg5[%c5, %c0_24, %c0_25] : memref<9x16x1xf32, #tpu.memory_space<vmem>>, vector<1x16x1xf32>
    %71 = vector.shape_cast %70 : vector<1x16x1xf32> to vector<16x1xf32>
    %72 = vector.broadcast %71 : vector<16x1xf32> to vector<16x256xf32>
    %73 = arith.mulf %36, %72 : vector<16x256xf32>
    %74 = arith.addf %69, %73 : vector<16x256xf32>
    %c240_i32_26 = arith.constant 240 : i32
    %75 = tpu.dynamic_rotate %33 by %c240_i32_26 dim 1 : vector<16x256xf32>, i32 -> vector<16x256xf32>
    %76 = vector.broadcast %18 : vector<1x256xf32> to vector<16x256xf32>
    %77 = arith.mulf %75, %76 : vector<16x256xf32>
    %c6 = arith.constant 6 : index
    %c0_27 = arith.constant 0 : index
    %c0_28 = arith.constant 0 : index
    %78 = vector.load %arg5[%c6, %c0_27, %c0_28] : memref<9x16x1xf32, #tpu.memory_space<vmem>>, vector<1x16x1xf32>
    %79 = vector.shape_cast %78 : vector<1x16x1xf32> to vector<16x1xf32>
    %80 = vector.broadcast %79 : vector<16x1xf32> to vector<16x256xf32>
    %81 = arith.mulf %77, %80 : vector<16x256xf32>
    %82 = arith.addf %74, %81 : vector<16x256xf32>
    %c240_i32_29 = arith.constant 240 : i32
    %83 = tpu.dynamic_rotate %30 by %c240_i32_29 dim 1 : vector<16x256xf32>, i32 -> vector<16x256xf32>
    %84 = vector.broadcast %18 : vector<1x256xf32> to vector<16x256xf32>
    %85 = arith.mulf %83, %84 : vector<16x256xf32>
    %c7 = arith.constant 7 : index
    %c0_30 = arith.constant 0 : index
    %c0_31 = arith.constant 0 : index
    %86 = vector.load %arg5[%c7, %c0_30, %c0_31] : memref<9x16x1xf32, #tpu.memory_space<vmem>>, vector<1x16x1xf32>
    %87 = vector.shape_cast %86 : vector<1x16x1xf32> to vector<16x1xf32>
    %88 = vector.broadcast %87 : vector<16x1xf32> to vector<16x256xf32>
    %89 = arith.mulf %85, %88 : vector<16x256xf32>
    %90 = arith.addf %82, %89 : vector<16x256xf32>
    %c240_i32_32 = arith.constant 240 : i32
    %91 = tpu.dynamic_rotate %36 by %c240_i32_32 dim 1 : vector<16x256xf32>, i32 -> vector<16x256xf32>
    %92 = vector.broadcast %18 : vector<1x256xf32> to vector<16x256xf32>
    %93 = arith.mulf %91, %92 : vector<16x256xf32>
    %c8 = arith.constant 8 : index
    %c0_33 = arith.constant 0 : index
    %c0_34 = arith.constant 0 : index
    %94 = vector.load %arg5[%c8, %c0_33, %c0_34] : memref<9x16x1xf32, #tpu.memory_space<vmem>>, vector<1x16x1xf32>
    %95 = vector.shape_cast %94 : vector<1x16x1xf32> to vector<16x1xf32>
    %96 = vector.broadcast %95 : vector<16x1xf32> to vector<16x256xf32>
    %97 = arith.mulf %93, %96 : vector<16x256xf32>
    %98 = arith.addf %90, %97 : vector<16x256xf32>
    %c0_35 = arith.constant 0 : index
    %c0_36 = arith.constant 0 : index
    %99 = vector.load %arg6[%c0_35, %c0_36] : memref<16x1xf32, #tpu.memory_space<vmem>>, vector<16x1xf32>
    %100 = vector.broadcast %99 : vector<16x1xf32> to vector<16x256xf32>
    %101 = arith.mulf %98, %100 : vector<16x256xf32>
    %c0_37 = arith.constant 0 : index
    %c0_38 = arith.constant 0 : index
    %102 = vector.load %arg7[%c0_37, %c0_38] : memref<16x1xf32, #tpu.memory_space<vmem>>, vector<16x1xf32>
    %103 = vector.broadcast %102 : vector<16x1xf32> to vector<16x256xf32>
    %104 = arith.addf %101, %103 : vector<16x256xf32>
    %cst_39 = arith.constant 0.000000e+00 : f32
    %105 = vector.broadcast %cst_39 : f32 to vector<16x256xf32>
    %106 = arith.maximumf %104, %105 : vector<16x256xf32>
    %107 = tpu.concatenate %30, %106 in 0 : vector<16x256xf32>, vector<16x256xf32> -> vector<32x256xf32>
    %cst_40 = arith.constant dense<0.000000e+00> : vector<32xf32>
    %108 = vector.multi_reduction <add>, %107, %cst_40 [1] : vector<32x256xf32> to vector<32xf32>
    %109 = vector.shape_cast %108 : vector<32xf32> to vector<32x1xf32>
    %cst_41 = arith.constant 2.560000e+02 : f32
    %110 = vector.broadcast %cst_41 : f32 to vector<32x1xf32>
    %111 = arith.divf %109, %110 : vector<32x1xf32>
    %c0_42 = arith.constant 0 : index
    %c0_43 = arith.constant 0 : index
    %112 = vector.load %arg8[%c0_42, %c0_43] : memref<8x32xf32, #tpu.memory_space<vmem>>, vector<8x32xf32>
    %cst_44 = arith.constant dense<0.000000e+00> : vector<8x1xf32>
    %113 = tpu.matmul %112, %111, %cst_44 {dimension_numbers = #tpu.dot_dimension_numbers<[1], [0], [0], [1], [0, 0, 1, 1], [], []>, precision = #tpu.contract_precision<fp32>} : vector<8x32xf32>, vector<32x1xf32>, vector<8x1xf32> -> vector<8x1xf32>
    %c0_45 = arith.constant 0 : index
    %c0_46 = arith.constant 0 : index
    %114 = vector.load %arg9[%c0_45, %c0_46] : memref<8x1xf32, #tpu.memory_space<vmem>>, vector<8x1xf32>
    %115 = arith.addf %113, %114 : vector<8x1xf32>
    %cst_47 = arith.constant 0.000000e+00 : f32
    %116 = vector.broadcast %cst_47 : f32 to vector<8x1xf32>
    %117 = arith.maximumf %115, %116 : vector<8x1xf32>
    %c0_48 = arith.constant 0 : index
    %c0_49 = arith.constant 0 : index
    %118 = vector.load %arg10[%c0_48, %c0_49] : memref<32x8xf32, #tpu.memory_space<vmem>>, vector<32x8xf32>
    %cst_50 = arith.constant dense<0.000000e+00> : vector<32x1xf32>
    %119 = tpu.matmul %118, %117, %cst_50 {dimension_numbers = #tpu.dot_dimension_numbers<[1], [0], [0], [1], [0, 0, 1, 1], [], []>, precision = #tpu.contract_precision<fp32>} : vector<32x8xf32>, vector<8x1xf32>, vector<32x1xf32> -> vector<32x1xf32>
    %c0_51 = arith.constant 0 : index
    %c0_52 = arith.constant 0 : index
    %120 = vector.load %arg11[%c0_51, %c0_52] : memref<32x1xf32, #tpu.memory_space<vmem>>, vector<32x1xf32>
    %121 = arith.addf %119, %120 : vector<32x1xf32>
    %cst_53 = arith.constant 0.000000e+00 : f32
    %cst_54 = arith.constant 1.000000e+00 : f32
    %122 = vector.broadcast %cst_53 : f32 to vector<32x1xf32>
    %123 = arith.maximumf %122, %121 : vector<32x1xf32>
    %124 = vector.broadcast %cst_54 : f32 to vector<32x1xf32>
    %125 = arith.minimumf %124, %123 : vector<32x1xf32>
    %126 = vector.broadcast %125 : vector<32x1xf32> to vector<32x256xf32>
    %127 = arith.mulf %107, %126 : vector<32x256xf32>
    %c0_55 = arith.constant 0 : index
    %c0_56 = arith.constant 0 : index
    %128 = vector.load %arg12[%c0_55, %c0_56] : memref<8x32xf32, #tpu.memory_space<vmem>>, vector<8x32xf32>
    %cst_57 = arith.constant dense<0.000000e+00> : vector<8x256xf32>
    %129 = tpu.matmul %128, %127, %cst_57 {dimension_numbers = #tpu.dot_dimension_numbers<[1], [0], [0], [1], [0, 0, 1, 1], [], []>, precision = #tpu.contract_precision<fp32>} : vector<8x32xf32>, vector<32x256xf32>, vector<8x256xf32> -> vector<8x256xf32>
    %c0_58 = arith.constant 0 : index
    %c0_59 = arith.constant 0 : index
    %130 = vector.load %arg13[%c0_58, %c0_59] : memref<8x1xf32, #tpu.memory_space<vmem>>, vector<8x1xf32>
    %131 = vector.broadcast %130 : vector<8x1xf32> to vector<8x256xf32>
    %132 = arith.mulf %129, %131 : vector<8x256xf32>
    %c0_60 = arith.constant 0 : index
    %c0_61 = arith.constant 0 : index
    %133 = vector.load %arg14[%c0_60, %c0_61] : memref<8x1xf32, #tpu.memory_space<vmem>>, vector<8x1xf32>
    %134 = vector.broadcast %133 : vector<8x1xf32> to vector<8x256xf32>
    %135 = arith.addf %132, %134 : vector<8x256xf32>
    %c1_i32_62 = arith.constant 1 : i32
    %136 = tpu.dynamic_rotate %135 by %c1_i32_62 dim 1 : vector<8x256xf32>, i32 -> vector<8x256xf32>
    %137 = vector.broadcast %6 : vector<1x256xf32> to vector<8x256xf32>
    %138 = arith.mulf %136, %137 : vector<8x256xf32>
    %c255_i32_63 = arith.constant 255 : i32
    %139 = tpu.dynamic_rotate %135 by %c255_i32_63 dim 1 : vector<8x256xf32>, i32 -> vector<8x256xf32>
    %140 = vector.broadcast %10 : vector<1x256xf32> to vector<8x256xf32>
    %141 = arith.mulf %139, %140 : vector<8x256xf32>
    %c16_i32_64 = arith.constant 16 : i32
    %142 = tpu.dynamic_rotate %138 by %c16_i32_64 dim 1 : vector<8x256xf32>, i32 -> vector<8x256xf32>
    %143 = vector.broadcast %14 : vector<1x256xf32> to vector<8x256xf32>
    %144 = arith.mulf %142, %143 : vector<8x256xf32>
    %c0_65 = arith.constant 0 : index
    %c0_66 = arith.constant 0 : index
    %c0_67 = arith.constant 0 : index
    %145 = vector.load %arg15[%c0_65, %c0_66, %c0_67] : memref<9x8x1xf32, #tpu.memory_space<vmem>>, vector<1x8x1xf32>
    %146 = vector.shape_cast %145 : vector<1x8x1xf32> to vector<8x1xf32>
    %147 = vector.broadcast %146 : vector<8x1xf32> to vector<8x256xf32>
    %148 = arith.mulf %144, %147 : vector<8x256xf32>
    %c16_i32_68 = arith.constant 16 : i32
    %149 = tpu.dynamic_rotate %135 by %c16_i32_68 dim 1 : vector<8x256xf32>, i32 -> vector<8x256xf32>
    %150 = vector.broadcast %14 : vector<1x256xf32> to vector<8x256xf32>
    %151 = arith.mulf %149, %150 : vector<8x256xf32>
    %c1_69 = arith.constant 1 : index
    %c0_70 = arith.constant 0 : index
    %c0_71 = arith.constant 0 : index
    %152 = vector.load %arg15[%c1_69, %c0_70, %c0_71] : memref<9x8x1xf32, #tpu.memory_space<vmem>>, vector<1x8x1xf32>
    %153 = vector.shape_cast %152 : vector<1x8x1xf32> to vector<8x1xf32>
    %154 = vector.broadcast %153 : vector<8x1xf32> to vector<8x256xf32>
    %155 = arith.mulf %151, %154 : vector<8x256xf32>
    %156 = arith.addf %148, %155 : vector<8x256xf32>
    %c16_i32_72 = arith.constant 16 : i32
    %157 = tpu.dynamic_rotate %141 by %c16_i32_72 dim 1 : vector<8x256xf32>, i32 -> vector<8x256xf32>
    %158 = vector.broadcast %14 : vector<1x256xf32> to vector<8x256xf32>
    %159 = arith.mulf %157, %158 : vector<8x256xf32>
    %c2_73 = arith.constant 2 : index
    %c0_74 = arith.constant 0 : index
    %c0_75 = arith.constant 0 : index
    %160 = vector.load %arg15[%c2_73, %c0_74, %c0_75] : memref<9x8x1xf32, #tpu.memory_space<vmem>>, vector<1x8x1xf32>
    %161 = vector.shape_cast %160 : vector<1x8x1xf32> to vector<8x1xf32>
    %162 = vector.broadcast %161 : vector<8x1xf32> to vector<8x256xf32>
    %163 = arith.mulf %159, %162 : vector<8x256xf32>
    %164 = arith.addf %156, %163 : vector<8x256xf32>
    %c3_76 = arith.constant 3 : index
    %c0_77 = arith.constant 0 : index
    %c0_78 = arith.constant 0 : index
    %165 = vector.load %arg15[%c3_76, %c0_77, %c0_78] : memref<9x8x1xf32, #tpu.memory_space<vmem>>, vector<1x8x1xf32>
    %166 = vector.shape_cast %165 : vector<1x8x1xf32> to vector<8x1xf32>
    %167 = vector.broadcast %166 : vector<8x1xf32> to vector<8x256xf32>
    %168 = arith.mulf %138, %167 : vector<8x256xf32>
    %169 = arith.addf %164, %168 : vector<8x256xf32>
    %c4_79 = arith.constant 4 : index
    %c0_80 = arith.constant 0 : index
    %c0_81 = arith.constant 0 : index
    %170 = vector.load %arg15[%c4_79, %c0_80, %c0_81] : memref<9x8x1xf32, #tpu.memory_space<vmem>>, vector<1x8x1xf32>
    %171 = vector.shape_cast %170 : vector<1x8x1xf32> to vector<8x1xf32>
    %172 = vector.broadcast %171 : vector<8x1xf32> to vector<8x256xf32>
    %173 = arith.mulf %135, %172 : vector<8x256xf32>
    %174 = arith.addf %169, %173 : vector<8x256xf32>
    %c5_82 = arith.constant 5 : index
    %c0_83 = arith.constant 0 : index
    %c0_84 = arith.constant 0 : index
    %175 = vector.load %arg15[%c5_82, %c0_83, %c0_84] : memref<9x8x1xf32, #tpu.memory_space<vmem>>, vector<1x8x1xf32>
    %176 = vector.shape_cast %175 : vector<1x8x1xf32> to vector<8x1xf32>
    %177 = vector.broadcast %176 : vector<8x1xf32> to vector<8x256xf32>
    %178 = arith.mulf %141, %177 : vector<8x256xf32>
    %179 = arith.addf %174, %178 : vector<8x256xf32>
    %c240_i32_85 = arith.constant 240 : i32
    %180 = tpu.dynamic_rotate %138 by %c240_i32_85 dim 1 : vector<8x256xf32>, i32 -> vector<8x256xf32>
    %181 = vector.broadcast %18 : vector<1x256xf32> to vector<8x256xf32>
    %182 = arith.mulf %180, %181 : vector<8x256xf32>
    %c6_86 = arith.constant 6 : index
    %c0_87 = arith.constant 0 : index
    %c0_88 = arith.constant 0 : index
    %183 = vector.load %arg15[%c6_86, %c0_87, %c0_88] : memref<9x8x1xf32, #tpu.memory_space<vmem>>, vector<1x8x1xf32>
    %184 = vector.shape_cast %183 : vector<1x8x1xf32> to vector<8x1xf32>
    %185 = vector.broadcast %184 : vector<8x1xf32> to vector<8x256xf32>
    %186 = arith.mulf %182, %185 : vector<8x256xf32>
    %187 = arith.addf %179, %186 : vector<8x256xf32>
    %c240_i32_89 = arith.constant 240 : i32
    %188 = tpu.dynamic_rotate %135 by %c240_i32_89 dim 1 : vector<8x256xf32>, i32 -> vector<8x256xf32>
    %189 = vector.broadcast %18 : vector<1x256xf32> to vector<8x256xf32>
    %190 = arith.mulf %188, %189 : vector<8x256xf32>
    %c7_90 = arith.constant 7 : index
    %c0_91 = arith.constant 0 : index
    %c0_92 = arith.constant 0 : index
    %191 = vector.load %arg15[%c7_90, %c0_91, %c0_92] : memref<9x8x1xf32, #tpu.memory_space<vmem>>, vector<1x8x1xf32>
    %192 = vector.shape_cast %191 : vector<1x8x1xf32> to vector<8x1xf32>
    %193 = vector.broadcast %192 : vector<8x1xf32> to vector<8x256xf32>
    %194 = arith.mulf %190, %193 : vector<8x256xf32>
    %195 = arith.addf %187, %194 : vector<8x256xf32>
    %c240_i32_93 = arith.constant 240 : i32
    %196 = tpu.dynamic_rotate %141 by %c240_i32_93 dim 1 : vector<8x256xf32>, i32 -> vector<8x256xf32>
    %197 = vector.broadcast %18 : vector<1x256xf32> to vector<8x256xf32>
    %198 = arith.mulf %196, %197 : vector<8x256xf32>
    %c8_94 = arith.constant 8 : index
    %c0_95 = arith.constant 0 : index
    %c0_96 = arith.constant 0 : index
    %199 = vector.load %arg15[%c8_94, %c0_95, %c0_96] : memref<9x8x1xf32, #tpu.memory_space<vmem>>, vector<1x8x1xf32>
    %200 = vector.shape_cast %199 : vector<1x8x1xf32> to vector<8x1xf32>
    %201 = vector.broadcast %200 : vector<8x1xf32> to vector<8x256xf32>
    %202 = arith.mulf %198, %201 : vector<8x256xf32>
    %203 = arith.addf %195, %202 : vector<8x256xf32>
    %c0_97 = arith.constant 0 : index
    %c0_98 = arith.constant 0 : index
    %204 = vector.load %arg16[%c0_97, %c0_98] : memref<8x1xf32, #tpu.memory_space<vmem>>, vector<8x1xf32>
    %205 = vector.broadcast %204 : vector<8x1xf32> to vector<8x256xf32>
    %206 = arith.mulf %203, %205 : vector<8x256xf32>
    %c0_99 = arith.constant 0 : index
    %c0_100 = arith.constant 0 : index
    %207 = vector.load %arg17[%c0_99, %c0_100] : memref<8x1xf32, #tpu.memory_space<vmem>>, vector<8x1xf32>
    %208 = vector.broadcast %207 : vector<8x1xf32> to vector<8x256xf32>
    %209 = arith.addf %206, %208 : vector<8x256xf32>
    %210 = tpu.concatenate %135, %209 in 0 : vector<8x256xf32>, vector<8x256xf32> -> vector<16x256xf32>
    %c1_i32_101 = arith.constant 1 : i32
    %211 = tpu.dynamic_rotate %20 by %c1_i32_101 dim 1 : vector<8x256xf32>, i32 -> vector<8x256xf32>
    %212 = vector.broadcast %6 : vector<1x256xf32> to vector<8x256xf32>
    %213 = arith.mulf %211, %212 : vector<8x256xf32>
    %c255_i32_102 = arith.constant 255 : i32
    %214 = tpu.dynamic_rotate %20 by %c255_i32_102 dim 1 : vector<8x256xf32>, i32 -> vector<8x256xf32>
    %215 = vector.broadcast %10 : vector<1x256xf32> to vector<8x256xf32>
    %216 = arith.mulf %214, %215 : vector<8x256xf32>
    %c16_i32_103 = arith.constant 16 : i32
    %217 = tpu.dynamic_rotate %213 by %c16_i32_103 dim 1 : vector<8x256xf32>, i32 -> vector<8x256xf32>
    %218 = vector.broadcast %14 : vector<1x256xf32> to vector<8x256xf32>
    %219 = arith.mulf %217, %218 : vector<8x256xf32>
    %c0_104 = arith.constant 0 : index
    %c0_105 = arith.constant 0 : index
    %c0_106 = arith.constant 0 : index
    %220 = vector.load %arg18[%c0_104, %c0_105, %c0_106] : memref<9x8x1xf32, #tpu.memory_space<vmem>>, vector<1x8x1xf32>
    %221 = vector.shape_cast %220 : vector<1x8x1xf32> to vector<8x1xf32>
    %222 = vector.broadcast %221 : vector<8x1xf32> to vector<8x256xf32>
    %223 = arith.mulf %219, %222 : vector<8x256xf32>
    %c16_i32_107 = arith.constant 16 : i32
    %224 = tpu.dynamic_rotate %20 by %c16_i32_107 dim 1 : vector<8x256xf32>, i32 -> vector<8x256xf32>
    %225 = vector.broadcast %14 : vector<1x256xf32> to vector<8x256xf32>
    %226 = arith.mulf %224, %225 : vector<8x256xf32>
    %c1_108 = arith.constant 1 : index
    %c0_109 = arith.constant 0 : index
    %c0_110 = arith.constant 0 : index
    %227 = vector.load %arg18[%c1_108, %c0_109, %c0_110] : memref<9x8x1xf32, #tpu.memory_space<vmem>>, vector<1x8x1xf32>
    %228 = vector.shape_cast %227 : vector<1x8x1xf32> to vector<8x1xf32>
    %229 = vector.broadcast %228 : vector<8x1xf32> to vector<8x256xf32>
    %230 = arith.mulf %226, %229 : vector<8x256xf32>
    %231 = arith.addf %223, %230 : vector<8x256xf32>
    %c16_i32_111 = arith.constant 16 : i32
    %232 = tpu.dynamic_rotate %216 by %c16_i32_111 dim 1 : vector<8x256xf32>, i32 -> vector<8x256xf32>
    %233 = vector.broadcast %14 : vector<1x256xf32> to vector<8x256xf32>
    %234 = arith.mulf %232, %233 : vector<8x256xf32>
    %c2_112 = arith.constant 2 : index
    %c0_113 = arith.constant 0 : index
    %c0_114 = arith.constant 0 : index
    %235 = vector.load %arg18[%c2_112, %c0_113, %c0_114] : memref<9x8x1xf32, #tpu.memory_space<vmem>>, vector<1x8x1xf32>
    %236 = vector.shape_cast %235 : vector<1x8x1xf32> to vector<8x1xf32>
    %237 = vector.broadcast %236 : vector<8x1xf32> to vector<8x256xf32>
    %238 = arith.mulf %234, %237 : vector<8x256xf32>
    %239 = arith.addf %231, %238 : vector<8x256xf32>
    %c3_115 = arith.constant 3 : index
    %c0_116 = arith.constant 0 : index
    %c0_117 = arith.constant 0 : index
    %240 = vector.load %arg18[%c3_115, %c0_116, %c0_117] : memref<9x8x1xf32, #tpu.memory_space<vmem>>, vector<1x8x1xf32>
    %241 = vector.shape_cast %240 : vector<1x8x1xf32> to vector<8x1xf32>
    %242 = vector.broadcast %241 : vector<8x1xf32> to vector<8x256xf32>
    %243 = arith.mulf %213, %242 : vector<8x256xf32>
    %244 = arith.addf %239, %243 : vector<8x256xf32>
    %c4_118 = arith.constant 4 : index
    %c0_119 = arith.constant 0 : index
    %c0_120 = arith.constant 0 : index
    %245 = vector.load %arg18[%c4_118, %c0_119, %c0_120] : memref<9x8x1xf32, #tpu.memory_space<vmem>>, vector<1x8x1xf32>
    %246 = vector.shape_cast %245 : vector<1x8x1xf32> to vector<8x1xf32>
    %247 = vector.broadcast %246 : vector<8x1xf32> to vector<8x256xf32>
    %248 = arith.mulf %20, %247 : vector<8x256xf32>
    %249 = arith.addf %244, %248 : vector<8x256xf32>
    %c5_121 = arith.constant 5 : index
    %c0_122 = arith.constant 0 : index
    %c0_123 = arith.constant 0 : index
    %250 = vector.load %arg18[%c5_121, %c0_122, %c0_123] : memref<9x8x1xf32, #tpu.memory_space<vmem>>, vector<1x8x1xf32>
    %251 = vector.shape_cast %250 : vector<1x8x1xf32> to vector<8x1xf32>
    %252 = vector.broadcast %251 : vector<8x1xf32> to vector<8x256xf32>
    %253 = arith.mulf %216, %252 : vector<8x256xf32>
    %254 = arith.addf %249, %253 : vector<8x256xf32>
    %c240_i32_124 = arith.constant 240 : i32
    %255 = tpu.dynamic_rotate %213 by %c240_i32_124 dim 1 : vector<8x256xf32>, i32 -> vector<8x256xf32>
    %256 = vector.broadcast %18 : vector<1x256xf32> to vector<8x256xf32>
    %257 = arith.mulf %255, %256 : vector<8x256xf32>
    %c6_125 = arith.constant 6 : index
    %c0_126 = arith.constant 0 : index
    %c0_127 = arith.constant 0 : index
    %258 = vector.load %arg18[%c6_125, %c0_126, %c0_127] : memref<9x8x1xf32, #tpu.memory_space<vmem>>, vector<1x8x1xf32>
    %259 = vector.shape_cast %258 : vector<1x8x1xf32> to vector<8x1xf32>
    %260 = vector.broadcast %259 : vector<8x1xf32> to vector<8x256xf32>
    %261 = arith.mulf %257, %260 : vector<8x256xf32>
    %262 = arith.addf %254, %261 : vector<8x256xf32>
    %c240_i32_128 = arith.constant 240 : i32
    %263 = tpu.dynamic_rotate %20 by %c240_i32_128 dim 1 : vector<8x256xf32>, i32 -> vector<8x256xf32>
    %264 = vector.broadcast %18 : vector<1x256xf32> to vector<8x256xf32>
    %265 = arith.mulf %263, %264 : vector<8x256xf32>
    %c7_129 = arith.constant 7 : index
    %c0_130 = arith.constant 0 : index
    %c0_131 = arith.constant 0 : index
    %266 = vector.load %arg18[%c7_129, %c0_130, %c0_131] : memref<9x8x1xf32, #tpu.memory_space<vmem>>, vector<1x8x1xf32>
    %267 = vector.shape_cast %266 : vector<1x8x1xf32> to vector<8x1xf32>
    %268 = vector.broadcast %267 : vector<8x1xf32> to vector<8x256xf32>
    %269 = arith.mulf %265, %268 : vector<8x256xf32>
    %270 = arith.addf %262, %269 : vector<8x256xf32>
    %c240_i32_132 = arith.constant 240 : i32
    %271 = tpu.dynamic_rotate %216 by %c240_i32_132 dim 1 : vector<8x256xf32>, i32 -> vector<8x256xf32>
    %272 = vector.broadcast %18 : vector<1x256xf32> to vector<8x256xf32>
    %273 = arith.mulf %271, %272 : vector<8x256xf32>
    %c8_133 = arith.constant 8 : index
    %c0_134 = arith.constant 0 : index
    %c0_135 = arith.constant 0 : index
    %274 = vector.load %arg18[%c8_133, %c0_134, %c0_135] : memref<9x8x1xf32, #tpu.memory_space<vmem>>, vector<1x8x1xf32>
    %275 = vector.shape_cast %274 : vector<1x8x1xf32> to vector<8x1xf32>
    %276 = vector.broadcast %275 : vector<8x1xf32> to vector<8x256xf32>
    %277 = arith.mulf %273, %276 : vector<8x256xf32>
    %278 = arith.addf %270, %277 : vector<8x256xf32>
    %c0_136 = arith.constant 0 : index
    %c0_137 = arith.constant 0 : index
    %279 = vector.load %arg19[%c0_136, %c0_137] : memref<8x1xf32, #tpu.memory_space<vmem>>, vector<8x1xf32>
    %280 = vector.broadcast %279 : vector<8x1xf32> to vector<8x256xf32>
    %281 = arith.mulf %278, %280 : vector<8x256xf32>
    %c0_138 = arith.constant 0 : index
    %c0_139 = arith.constant 0 : index
    %282 = vector.load %arg20[%c0_138, %c0_139] : memref<8x1xf32, #tpu.memory_space<vmem>>, vector<8x1xf32>
    %283 = vector.broadcast %282 : vector<8x1xf32> to vector<8x256xf32>
    %284 = arith.addf %281, %283 : vector<8x256xf32>
    %c0_140 = arith.constant 0 : index
    %c0_141 = arith.constant 0 : index
    %285 = vector.load %arg21[%c0_140, %c0_141] : memref<16x8xf32, #tpu.memory_space<vmem>>, vector<16x8xf32>
    %cst_142 = arith.constant dense<0.000000e+00> : vector<16x256xf32>
    %286 = tpu.matmul %285, %284, %cst_142 {dimension_numbers = #tpu.dot_dimension_numbers<[1], [0], [0], [1], [0, 0, 1, 1], [], []>, precision = #tpu.contract_precision<fp32>} : vector<16x8xf32>, vector<8x256xf32>, vector<16x256xf32> -> vector<16x256xf32>
    %c0_143 = arith.constant 0 : index
    %c0_144 = arith.constant 0 : index
    %287 = vector.load %arg22[%c0_143, %c0_144] : memref<16x1xf32, #tpu.memory_space<vmem>>, vector<16x1xf32>
    %288 = vector.broadcast %287 : vector<16x1xf32> to vector<16x256xf32>
    %289 = arith.mulf %286, %288 : vector<16x256xf32>
    %c0_145 = arith.constant 0 : index
    %c0_146 = arith.constant 0 : index
    %290 = vector.load %arg23[%c0_145, %c0_146] : memref<16x1xf32, #tpu.memory_space<vmem>>, vector<16x1xf32>
    %291 = vector.broadcast %290 : vector<16x1xf32> to vector<16x256xf32>
    %292 = arith.addf %289, %291 : vector<16x256xf32>
    %293 = arith.addf %210, %292 : vector<16x256xf32>
    %c0_147 = arith.constant 0 : index
    %c0_148 = arith.constant 0 : index
    %c0_149 = arith.constant 0 : index
    %294 = vector.load %arg24[%c0_147, %c0_148, %c0_149] : memref<1x16x256xf32, #tpu.memory_space<vmem>>, vector<1x16x256xf32>
    %295 = vector.shape_cast %294 : vector<1x16x256xf32> to vector<16x256xf32>
    %296 = vector.shape_cast %293 : vector<16x256xf32> to vector<1x16x256xf32>
    tpu.vector_store %arg24[%c0_147, %c0_148, %c0_149], %296 {strides = array<i32>} : memref<1x16x256xf32, #tpu.memory_space<vmem>>, vector<1x16x256xf32>,
    return
  }
  func.func @transform_0(%arg0: i32) -> (i32, i32, i32) {
    %c0_i32 = arith.constant 0 : i32
    %c0_i32_0 = arith.constant 0 : i32
    %c0_i32_1 = arith.constant 0 : i32
    return %arg0, %c0_i32, %c0_i32_0 : i32, i32, i32
  }
  func.func @transform_1(%arg0: i32) -> (i32, i32) {
    %c0_i32 = arith.constant 0 : i32
    %c0_i32_0 = arith.constant 0 : i32
    %c0_i32_1 = arith.constant 0 : i32
    return %c0_i32, %c0_i32_0 : i32, i32
  }
  func.func @transform_2(%arg0: i32) -> (i32, i32) {
    %c0_i32 = arith.constant 0 : i32
    %c0_i32_0 = arith.constant 0 : i32
    %c0_i32_1 = arith.constant 0 : i32
    return %c0_i32, %c0_i32_0 : i32, i32
  }
  func.func @transform_3(%arg0: i32) -> (i32, i32) {
    %c0_i32 = arith.constant 0 : i32
    %c0_i32_0 = arith.constant 0 : i32
    %c0_i32_1 = arith.constant 0 : i32
    return %c0_i32, %c0_i32_0 : i32, i32
  }
  func.func @transform_4(%arg0: i32) -> (i32, i32, i32) {
    %c0_i32 = arith.constant 0 : i32
    %c0_i32_0 = arith.constant 0 : i32
    %c0_i32_1 = arith.constant 0 : i32
    %c0_i32_2 = arith.constant 0 : i32
    return %c0_i32, %c0_i32_0, %c0_i32_1 : i32, i32, i32
  }
  func.func @transform_5(%arg0: i32) -> (i32, i32) {
    %c0_i32 = arith.constant 0 : i32
    %c0_i32_0 = arith.constant 0 : i32
    %c0_i32_1 = arith.constant 0 : i32
    return %c0_i32, %c0_i32_0 : i32, i32
  }
  func.func @transform_6(%arg0: i32) -> (i32, i32) {
    %c0_i32 = arith.constant 0 : i32
    %c0_i32_0 = arith.constant 0 : i32
    %c0_i32_1 = arith.constant 0 : i32
    return %c0_i32, %c0_i32_0 : i32, i32
  }
  func.func @transform_7(%arg0: i32) -> (i32, i32) {
    %c0_i32 = arith.constant 0 : i32
    %c0_i32_0 = arith.constant 0 : i32
    %c0_i32_1 = arith.constant 0 : i32
    return %c0_i32, %c0_i32_0 : i32, i32
  }
  func.func @transform_8(%arg0: i32) -> (i32, i32) {
    %c0_i32 = arith.constant 0 : i32
    %c0_i32_0 = arith.constant 0 : i32
    %c0_i32_1 = arith.constant 0 : i32
    return %c0_i32, %c0_i32_0 : i32, i32
  }
  func.func @transform_9(%arg0: i32) -> (i32, i32) {
    %c0_i32 = arith.constant 0 : i32
    %c0_i32_0 = arith.constant 0 : i32
    %c0_i32_1 = arith.constant 0 : i32
    return %c0_i32, %c0_i32_0 : i32, i32
  }
  func.func @transform_10(%arg0: i32) -> (i32, i32) {
    %c0_i32 = arith.constant 0 : i32
    %c0_i32_0 = arith.constant 0 : i32
    %c0_i32_1 = arith.constant 0 : i32
    return %c0_i32, %c0_i32_0 : i32, i32
  }
  func.func @transform_11(%arg0: i32) -> (i32, i32) {
    %c0_i32 = arith.constant 0 : i32
    %c0_i32_0 = arith.constant 0 : i32
    %c0_i32_1 = arith.constant 0 : i32
    return %c0_i32, %c0_i32_0 : i32, i32
  }
  func.func @transform_12(%arg0: i32) -> (i32, i32) {
    %c0_i32 = arith.constant 0 : i32
    %c0_i32_0 = arith.constant 0 : i32
    %c0_i32_1 = arith.constant 0 : i32
    return %c0_i32, %c0_i32_0 : i32, i32
  }
  func.func @transform_13(%arg0: i32) -> (i32, i32) {
    %c0_i32 = arith.constant 0 : i32
    %c0_i32_0 = arith.constant 0 : i32
    %c0_i32_1 = arith.constant 0 : i32
    return %c0_i32, %c0_i32_0 : i32, i32
  }
  func.func @transform_14(%arg0: i32) -> (i32, i32, i32) {
    %c0_i32 = arith.constant 0 : i32
    %c0_i32_0 = arith.constant 0 : i32
    %c0_i32_1 = arith.constant 0 : i32
    %c0_i32_2 = arith.constant 0 : i32
    return %c0_i32, %c0_i32_0, %c0_i32_1 : i32, i32, i32
  }
  func.func @transform_15(%arg0: i32) -> (i32, i32) {
    %c0_i32 = arith.constant 0 : i32
    %c0_i32_0 = arith.constant 0 : i32
    %c0_i32_1 = arith.constant 0 : i32
    return %c0_i32, %c0_i32_0 : i32, i32
  }
  func.func @transform_16(%arg0: i32) -> (i32, i32) {
    %c0_i32 = arith.constant 0 : i32
    %c0_i32_0 = arith.constant 0 : i32
    %c0_i32_1 = arith.constant 0 : i32
    return %c0_i32, %c0_i32_0 : i32, i32
  }
  func.func @transform_17(%arg0: i32) -> (i32, i32, i32) {
    %c0_i32 = arith.constant 0 : i32
    %c0_i32_0 = arith.constant 0 : i32
    %c0_i32_1 = arith.constant 0 : i32
    %c0_i32_2 = arith.constant 0 : i32
    return %c0_i32, %c0_i32_0, %c0_i32_1 : i32, i32, i32
  }
  func.func @transform_18(%arg0: i32) -> (i32, i32) {
    %c0_i32 = arith.constant 0 : i32
    %c0_i32_0 = arith.constant 0 : i32
    %c0_i32_1 = arith.constant 0 : i32
    return %c0_i32, %c0_i32_0 : i32, i32
  }
  func.func @transform_19(%arg0: i32) -> (i32, i32) {
    %c0_i32 = arith.constant 0 : i32
    %c0_i32_0 = arith.constant 0 : i32
    %c0_i32_1 = arith.constant 0 : i32
    return %c0_i32, %c0_i32_0 : i32, i32
  }
  func.func @transform_20(%arg0: i32) -> (i32, i32) {
    %c0_i32 = arith.constant 0 : i32
    %c0_i32_0 = arith.constant 0 : i32
    %c0_i32_1 = arith.constant 0 : i32
    return %c0_i32, %c0_i32_0 : i32, i32
  }
  func.func @transform_21(%arg0: i32) -> (i32, i32) {
    %c0_i32 = arith.constant 0 : i32
    %c0_i32_0 = arith.constant 0 : i32
    %c0_i32_1 = arith.constant 0 : i32
    return %c0_i32, %c0_i32_0 : i32, i32
  }
  func.func @transform_22(%arg0: i32) -> (i32, i32) {
    %c0_i32 = arith.constant 0 : i32
    %c0_i32_0 = arith.constant 0 : i32
    %c0_i32_1 = arith.constant 0 : i32
    return %c0_i32, %c0_i32_0 : i32, i32
  }
  func.func @transform_23(%arg0: i32) -> (i32, i32, i32) {
    %c0_i32 = arith.constant 0 : i32
    %c0_i32_0 = arith.constant 0 : i32
    %c0_i32_1 = arith.constant 0 : i32
    return %arg0, %c0_i32, %c0_i32_0 : i32, i32, i32
  }
}

</mosaic_0001>

<llo_original>
// kernel: tpu_custom_call.1
$region0: #{tpu_custom_call.1}
  #allocation0 [shape = 'u32[]', space=smem, size = 0x4, offset = 0x4, fixed_abs, tag = 'smem constant byte address 0x4 - core index']
  #allocation1 [shape = 'u32[144,128]{1,0:T(1,128)}', space=vmem, size = 0x12000, scoped, tag = 'internal scratch']
  %s0 = inlined_call_operand.vmem [shape: f32[2,8,256], index: 0, kind: input, shape index: {}]
  %s1 = inlined_call_operand.vmem [shape: f32[16,8], index: 1, kind: input, shape index: {}]
  %s2 = inlined_call_operand.vmem [shape: f32[16,1], index: 2, kind: input, shape index: {}]
  %s3 = inlined_call_operand.vmem [shape: f32[16,1], index: 3, kind: input, shape index: {}]
  %s4 = inlined_call_operand.vmem [shape: f32[9,16,1], index: 4, kind: input, shape index: {}]
  %s5 = inlined_call_operand.vmem [shape: f32[16,1], index: 5, kind: input, shape index: {}]
  %s6 = inlined_call_operand.vmem [shape: f32[16,1], index: 6, kind: input, shape index: {}]
  %s7 = inlined_call_operand.vmem [shape: f32[8,32], index: 7, kind: input, shape index: {}]
  %s8 = inlined_call_operand.vmem [shape: f32[8,1], index: 8, kind: input, shape index: {}]
  %s9 = inlined_call_operand.vmem [shape: f32[32,8], index: 9, kind: input, shape index: {}]
  %s10 = inlined_call_operand.vmem [shape: f32[32,1], index: 10, kind: input, shape index: {}]
  %s11 = inlined_call_operand.vmem [shape: f32[8,32], index: 11, kind: input, shape index: {}]
  %s12 = inlined_call_operand.vmem [shape: f32[8,1], index: 12, kind: input, shape index: {}]
  %s13 = inlined_call_operand.vmem [shape: f32[8,1], index: 13, kind: input, shape index: {}]
  %s14 = inlined_call_operand.vmem [shape: f32[9,8,1], index: 14, kind: input, shape index: {}]
  %s15 = inlined_call_operand.vmem [shape: f32[8,1], index: 15, kind: input, shape index: {}]
  %s16 = inlined_call_operand.vmem [shape: f32[8,1], index: 16, kind: input, shape index: {}]
  %s17 = inlined_call_operand.vmem [shape: f32[9,8,1], index: 17, kind: input, shape index: {}]
  %s18 = inlined_call_operand.vmem [shape: f32[8,1], index: 18, kind: input, shape index: {}]
  %s19 = inlined_call_operand.vmem [shape: f32[8,1], index: 19, kind: input, shape index: {}]
  %s20 = inlined_call_operand.vmem [shape: f32[16,8], index: 20, kind: input, shape index: {}]
  %s21 = inlined_call_operand.vmem [shape: f32[16,1], index: 21, kind: input, shape index: {}]
  %s22 = inlined_call_operand.vmem [shape: f32[16,1], index: 22, kind: input, shape index: {}]
  %s23 = inlined_call_operand.hbm [shape: f32[2,16,256], index: 23, kind: output, shape index: {}]
  %s24 = sld [smem:[#allocation0]]
  $region125: #{tpu_custom_call.1} parent=0
    _
  %s26 = ssub.s32 1, %s24
  %s27 = scalar_select 0, %s26, %s24
  $region1: #{tpu_custom_call.1} parent=0
    #allocation2 [shape = 'u8[32768]{0}', space=vmem, size = 0x8000, scoped, tag = 'output window, operand 0']
    #allocation3 [shape = 's32[2]{0}', space=sflag, size = 0x8, scoped, tag = 'scoped memory for tpu_custom_call.1']
    %28 = vsyncpa [#allocation3], 0
    %s29 = scalar_lea.sflag [#allocation3], 1
    %30 = vsyncpa %s29, 0
    loop: start=0, step=1, limit=4
    $region2: #{tpu_custom_call.1} parent=1 // loop_pre_header
      _
    $region3: #{tpu_custom_call.1} parent=1 // loop_header
      %s32 = sphi 0, %s36
      %p33 = scmp.ge.s32.totalorder %s32, 4
      %s42 = sphi 0, %s44
      %s45 = sphi 0, %s42
      %s46 = sphi 0, %s45
      %s62 = sphi 0, %s46
      %s66 = sphi 0, %s66
      %s68 = sphi 0, %s66
      %s69 = sphi 0, %s68
      %s83 = sphi 0, %s69
      %s87 = sphi 0, %s87
      %s89 = sphi 0, %s87
      %s90 = sphi 0, %s89
      %s104 = sphi 0, %s90
      %s108 = sphi 0, %s108
      %s110 = sphi 0, %s108
      %s111 = sphi 0, %s110
      %s125 = sphi 0, %s111
      %s129 = sphi 0, %s129
      %s131 = sphi 0, %s129
      %s132 = sphi 0, %s131
      %s146 = sphi 0, %s132
      %s150 = sphi 0, %s150
      %s152 = sphi 0, %s150
      %s153 = sphi 0, %s152
      %s167 = sphi 0, %s153
      %s171 = sphi 0, %s171
      %s173 = sphi 0, %s171
      %s174 = sphi 0, %s173
      %s188 = sphi 0, %s174
      %s192 = sphi 0, %s192
      %s194 = sphi 0, %s192
      %s195 = sphi 0, %s194
      %s209 = sphi 0, %s195
      %s213 = sphi 0, %s213
      %s215 = sphi 0, %s213
      %s216 = sphi 0, %s215
      %s230 = sphi 0, %s216
      %s234 = sphi 0, %s234
      %s236 = sphi 0, %s234
      %s237 = sphi 0, %s236
      %s251 = sphi 0, %s237
      %s255 = sphi 0, %s255
      %s257 = sphi 0, %s255
      %s258 = sphi 0, %s257
      %s272 = sphi 0, %s258
      %s276 = sphi 0, %s276
      %s278 = sphi 0, %s276
      %s279 = sphi 0, %s278
      %s293 = sphi 0, %s279
      %s297 = sphi 0, %s297
      %s299 = sphi 0, %s297
      %s300 = sphi 0, %s299
      %s314 = sphi 0, %s300
      %s318 = sphi 0, %s318
      %s320 = sphi 0, %s318
      %s321 = sphi 0, %s320
      %s335 = sphi 0, %s321
      %s339 = sphi 0, %s339
      %s341 = sphi 0, %s339
      %s342 = sphi 0, %s341
      %s356 = sphi 0, %s342
      %s360 = sphi 0, %s360
      %s362 = sphi 0, %s360
      %s363 = sphi 0, %s362
      %s377 = sphi 0, %s363
      %s381 = sphi 0, %s381
      %s383 = sphi 0, %s381
      %s384 = sphi 0, %s383
      %s398 = sphi 0, %s384
      %s402 = sphi 0, %s402
      %s404 = sphi 0, %s402
      %s405 = sphi 0, %s404
      %s419 = sphi 0, %s405
      %s423 = sphi 0, %s423
      %s425 = sphi 0, %s423
      %s426 = sphi 0, %s425
      %s440 = sphi 0, %s426
      %s444 = sphi 0, %s444
      %s446 = sphi 0, %s444
      %s447 = sphi 0, %s446
      %s461 = sphi 0, %s447
      %s465 = sphi 0, %s465
      %s467 = sphi 0, %s465
      %s468 = sphi 0, %s467
      %s482 = sphi 0, %s468
      %s486 = sphi 0, %s486
      %s488 = sphi 0, %s486
      %s489 = sphi 0, %s488
      %s503 = sphi 0, %s489
      %s507 = sphi 0, %s507
      %s509 = sphi 0, %s507
      %s510 = sphi 0, %s509
      %s524 = sphi 0, %s510
      %s530 = sphi 0, %s532
      %s533 = sphi 0, %s530
      %s534 = sphi 0, %s533
      %s550 = sphi 0, %s534
    $region4: #{tpu_custom_call.1} parent=1 // loop_header_branch
      %35 = sbr.rel (%p33) target = $region8
    $region5: #{tpu_custom_call.1} parent=1 // loop_body
      %s37 = ssub.s32 %s32, 1
      %s38 = ssub.s32 %s32, 2
      %s39 = sadd.s32 %s32, 1
      %s40 = ssub.s32 %s32, %s39
      %p41 = scmp.eq.s32.totalorder %s40, 0
      %s43 = sadd.s32 %s42, 1
      %s44 = scalar_select %p41, %s42, %s43
      %p47 = pneg %p41
      %p48 = scmp.eq.s32.totalorder %s32, 1
      %p49 = por %p47, %p48
      %p50 = scmp.ne.s32.totalorder %s42, %s45
      %p51 = scmp.eq.s32.totalorder %s32, 0
      %p52 = por %p50, %p51
      %p53 = scmp.ne.s32.totalorder %s42, %s45
      %p54 = scmp.eq.s32.totalorder %s37, 1
      %p55 = por %p53, %p54
      %p56 = scmp.ne.s32.totalorder %s45, %s46
      %p57 = scmp.eq.s32.totalorder %s37, 0
      %p58 = por %p56, %p57
      %p59 = scmp.ne.s32.totalorder %s45, %s46
      %p60 = scmp.eq.s32.totalorder %s38, 1
      %p61 = por %p59, %p60
      %p63 = scmp.ne.s32.totalorder %s46, %s62
      %p64 = scmp.eq.s32.totalorder %s38, 0
      %p65 = por %p63, %p64
      %s67 = sadd.s32 %s66, 1
      %p70 = scmp.eq.s32.totalorder %s32, 1
      %p71 = scmp.ne.s32.totalorder %s66, %s68
      %p72 = scmp.eq.s32.totalorder %s32, 0
      %p73 = por %p71, %p72
      %p74 = scmp.ne.s32.totalorder %s66, %s68
      %p75 = scmp.eq.s32.totalorder %s37, 1
      %p76 = por %p74, %p75
      %p77 = scmp.ne.s32.totalorder %s68, %s69
      %p78 = scmp.eq.s32.totalorder %s37, 0
      %p79 = por %p77, %p78
      %p80 = scmp.ne.s32.totalorder %s68, %s69
      %p81 = scmp.eq.s32.totalorder %s38, 1
      %p82 = por %p80, %p81
      %p84 = scmp.ne.s32.totalorder %s69, %s83
      %p85 = scmp.eq.s32.totalorder %s38, 0
      %p86 = por %p84, %p85
      %s88 = sadd.s32 %s87, 1
      %p91 = scmp.eq.s32.totalorder %s32, 1
      %p92 = scmp.ne.s32.totalorder %s87, %s89
      %p93 = scmp.eq.s32.totalorder %s32, 0
      %p94 = por %p92, %p93
      %p95 = scmp.ne.s32.totalorder %s87, %s89
      %p96 = scmp.eq.s32.totalorder %s37, 1
      %p97 = por %p95, %p96
      %p98 = scmp.ne.s32.totalorder %s89, %s90
      %p99 = scmp.eq.s32.totalorder %s37, 0
      %p100 = por %p98, %p99
      %p101 = scmp.ne.s32.totalorder %s89, %s90
      %p102 = scmp.eq.s32.totalorder %s38, 1
      %p103 = por %p101, %p102
      %p105 = scmp.ne.s32.totalorder %s90, %s104
      %p106 = scmp.eq.s32.totalorder %s38, 0
      %p107 = por %p105, %p106
      %s109 = sadd.s32 %s108, 1
      %p112 = scmp.eq.s32.totalorder %s32, 1
      %p113 = scmp.ne.s32.totalorder %s108, %s110
      %p114 = scmp.eq.s32.totalorder %s32, 0
      %p115 = por %p113, %p114
      %p116 = scmp.ne.s32.totalorder %s108, %s110
      %p117 = scmp.eq.s32.totalorder %s37, 1
      %p118 = por %p116, %p117
      %p119 = scmp.ne.s32.totalorder %s110, %s111
      %p120 = scmp.eq.s32.totalorder %s37, 0
      %p121 = por %p119, %p120
      %p122 = scmp.ne.s32.totalorder %s110, %s111
      %p123 = scmp.eq.s32.totalorder %s38, 1
      %p124 = por %p122, %p123
      %p126 = scmp.ne.s32.totalorder %s111, %s125
      %p127 = scmp.eq.s32.totalorder %s38, 0
      %p128 = por %p126, %p127
      %s130 = sadd.s32 %s129, 1
      %p133 = scmp.eq.s32.totalorder %s32, 1
      %p134 = scmp.ne.s32.totalorder %s129, %s131
      %p135 = scmp.eq.s32.totalorder %s32, 0
      %p136 = por %p134, %p135
      %p137 = scmp.ne.s32.totalorder %s129, %s131
      %p138 = scmp.eq.s32.totalorder %s37, 1
      %p139 = por %p137, %p138
      %p140 = scmp.ne.s32.totalorder %s131, %s132
      %p141 = scmp.eq.s32.totalorder %s37, 0
      %p142 = por %p140, %p141
      %p143 = scmp.ne.s32.totalorder %s131, %s132
      %p144 = scmp.eq.s32.totalorder %s38, 1
      %p145 = por %p143, %p144
      %p147 = scmp.ne.s32.totalorder %s132, %s146
      %p148 = scmp.eq.s32.totalorder %s38, 0
      %p149 = por %p147, %p148
      %s151 = sadd.s32 %s150, 1
      %p154 = scmp.eq.s32.totalorder %s32, 1
      %p155 = scmp.ne.s32.totalorder %s150, %s152
      %p156 = scmp.eq.s32.totalorder %s32, 0
      %p157 = por %p155, %p156
      %p158 = scmp.ne.s32.totalorder %s150, %s152
      %p159 = scmp.eq.s32.totalorder %s37, 1
      %p160 = por %p158, %p159
      %p161 = scmp.ne.s32.totalorder %s152, %s153
      %p162 = scmp.eq.s32.totalorder %s37, 0
      %p163 = por %p161, %p162
      %p164 = scmp.ne.s32.totalorder %s152, %s153
      %p165 = scmp.eq.s32.totalorder %s38, 1
      %p166 = por %p164, %p165
      %p168 = scmp.ne.s32.totalorder %s153, %s167
      %p169 = scmp.eq.s32.totalorder %s38, 0
      %p170 = por %p168, %p169
      %s172 = sadd.s32 %s171, 1
      %p175 = scmp.eq.s32.totalorder %s32, 1
      %p176 = scmp.ne.s32.totalorder %s171, %s173
      %p177 = scmp.eq.s32.totalorder %s32, 0
      %p178 = por %p176, %p177
      %p179 = scmp.ne.s32.totalorder %s171, %s173
      %p180 = scmp.eq.s32.totalorder %s37, 1
      %p181 = por %p179, %p180
      %p182 = scmp.ne.s32.totalorder %s173, %s174
      %p183 = scmp.eq.s32.totalorder %s37, 0
      %p184 = por %p182, %p183
      %p185 = scmp.ne.s32.totalorder %s173, %s174
      %p186 = scmp.eq.s32.totalorder %s38, 1
      %p187 = por %p185, %p186
      %p189 = scmp.ne.s32.totalorder %s174, %s188
      %p190 = scmp.eq.s32.totalorder %s38, 0
      %p191 = por %p189, %p190
      %s193 = sadd.s32 %s192, 1
      %p196 = scmp.eq.s32.totalorder %s32, 1
      %p197 = scmp.ne.s32.totalorder %s192, %s194
      %p198 = scmp.eq.s32.totalorder %s32, 0
      %p199 = por %p197, %p198
      %p200 = scmp.ne.s32.totalorder %s192, %s194
      %p201 = scmp.eq.s32.totalorder %s37, 1
      %p202 = por %p200, %p201
      %p203 = scmp.ne.s32.totalorder %s194, %s195
      %p204 = scmp.eq.s32.totalorder %s37, 0
      %p205 = por %p203, %p204
      %p206 = scmp.ne.s32.totalorder %s194, %s195
      %p207 = scmp.eq.s32.totalorder %s38, 1
      %p208 = por %p206, %p207
      %p210 = scmp.ne.s32.totalorder %s195, %s209
      %p211 = scmp.eq.s32.totalorder %s38, 0
      %p212 = por %p210, %p211
      %s214 = sadd.s32 %s213, 1
      %p217 = scmp.eq.s32.totalorder %s32, 1
      %p218 = scmp.ne.s32.totalorder %s213, %s215
      %p219 = scmp.eq.s32.totalorder %s32, 0
      %p220 = por %p218, %p219
      %p221 = scmp.ne.s32.totalorder %s213, %s215
      %p222 = scmp.eq.s32.totalorder %s37, 1
      %p223 = por %p221, %p222
      %p224 = scmp.ne.s32.totalorder %s215, %s216
      %p225 = scmp.eq.s32.totalorder %s37, 0
      %p226 = por %p224, %p225
      %p227 = scmp.ne.s32.totalorder %s215, %s216
      %p228 = scmp.eq.s32.totalorder %s38, 1
      %p229 = por %p227, %p228
      %p231 = scmp.ne.s32.totalorder %s216, %s230
      %p232 = scmp.eq.s32.totalorder %s38, 0
      %p233 = por %p231, %p232
      %s235 = sadd.s32 %s234, 1
      %p238 = scmp.eq.s32.totalorder %s32, 1
      %p239 = scmp.ne.s32.totalorder %s234, %s236
      %p240 = scmp.eq.s32.totalorder %s32, 0
      %p241 = por %p239, %p240
      %p242 = scmp.ne.s32.totalorder %s234, %s236
      %p243 = scmp.eq.s32.totalorder %s37, 1
      %p244 = por %p242, %p243
      %p245 = scmp.ne.s32.totalorder %s236, %s237
      %p246 = scmp.eq.s32.totalorder %s37, 0
      %p247 = por %p245, %p246
      %p248 = scmp.ne.s32.totalorder %s236, %s237
      %p249 = scmp.eq.s32.totalorder %s38, 1
      %p250 = por %p248, %p249
      %p252 = scmp.ne.s32.totalorder %s237, %s251
      %p253 = scmp.eq.s32.totalorder %s38, 0
      %p254 = por %p252, %p253
      %s256 = sadd.s32 %s255, 1
      %p259 = scmp.eq.s32.totalorder %s32, 1
      %p260 = scmp.ne.s32.totalorder %s255, %s257
      %p261 = scmp.eq.s32.totalorder %s32, 0
      %p262 = por %p260, %p261
      %p263 = scmp.ne.s32.totalorder %s255, %s257
      %p264 = scmp.eq.s32.totalorder %s37, 1
      %p265 = por %p263, %p264
      %p266 = scmp.ne.s32.totalorder %s257, %s258
      %p267 = scmp.eq.s32.totalorder %s37, 0
      %p268 = por %p266, %p267
      %p269 = scmp.ne.s32.totalorder %s257, %s258
      %p270 = scmp.eq.s32.totalorder %s38, 1
      %p271 = por %p269, %p270
      %p273 = scmp.ne.s32.totalorder %s258, %s272
      %p274 = scmp.eq.s32.totalorder %s38, 0
      %p275 = por %p273, %p274
      %s277 = sadd.s32 %s276, 1
      %p280 = scmp.eq.s32.totalorder %s32, 1
      %p281 = scmp.ne.s32.totalorder %s276, %s278
      %p282 = scmp.eq.s32.totalorder %s32, 0
      %p283 = por %p281, %p282
      %p284 = scmp.ne.s32.totalorder %s276, %s278
      %p285 = scmp.eq.s32.totalorder %s37, 1
      %p286 = por %p284, %p285
      %p287 = scmp.ne.s32.totalorder %s278, %s279
      %p288 = scmp.eq.s32.totalorder %s37, 0
      %p289 = por %p287, %p288
      %p290 = scmp.ne.s32.totalorder %s278, %s279
      %p291 = scmp.eq.s32.totalorder %s38, 1
      %p292 = por %p290, %p291
      %p294 = scmp.ne.s32.totalorder %s279, %s293
      %p295 = scmp.eq.s32.totalorder %s38, 0
      %p296 = por %p294, %p295
      %s298 = sadd.s32 %s297, 1
      %p301 = scmp.eq.s32.totalorder %s32, 1
      %p302 = scmp.ne.s32.totalorder %s297, %s299
      %p303 = scmp.eq.s32.totalorder %s32, 0
      %p304 = por %p302, %p303
      %p305 = scmp.ne.s32.totalorder %s297, %s299
      %p306 = scmp.eq.s32.totalorder %s37, 1
      %p307 = por %p305, %p306
      %p308 = scmp.ne.s32.totalorder %s299, %s300
      %p309 = scmp.eq.s32.totalorder %s37, 0
      %p310 = por %p308, %p309
      %p311 = scmp.ne.s32.totalorder %s299, %s300
      %p312 = scmp.eq.s32.totalorder %s38, 1
      %p313 = por %p311, %p312
      %p315 = scmp.ne.s32.totalorder %s300, %s314
      %p316 = scmp.eq.s32.totalorder %s38, 0
      %p317 = por %p315, %p316
      %s319 = sadd.s32 %s318, 1
      %p322 = scmp.eq.s32.totalorder %s32, 1
      %p323 = scmp.ne.s32.totalorder %s318, %s320
      %p324 = scmp.eq.s32.totalorder %s32, 0
      %p325 = por %p323, %p324
      %p326 = scmp.ne.s32.totalorder %s318, %s320
      %p327 = scmp.eq.s32.totalorder %s37, 1
      %p328 = por %p326, %p327
      %p329 = scmp.ne.s32.totalorder %s320, %s321
      %p330 = scmp.eq.s32.totalorder %s37, 0
      %p331 = por %p329, %p330
      %p332 = scmp.ne.s32.totalorder %s320, %s321
      %p333 = scmp.eq.s32.totalorder %s38, 1
      %p334 = por %p332, %p333
      %p336 = scmp.ne.s32.totalorder %s321, %s335
      %p337 = scmp.eq.s32.totalorder %s38, 0
      %p338 = por %p336, %p337
      %s340 = sadd.s32 %s339, 1
      %p343 = scmp.eq.s32.totalorder %s32, 1
      %p344 = scmp.ne.s32.totalorder %s339, %s341
      %p345 = scmp.eq.s32.totalorder %s32, 0
      %p346 = por %p344, %p345
      %p347 = scmp.ne.s32.totalorder %s339, %s341
      %p348 = scmp.eq.s32.totalorder %s37, 1
      %p349 = por %p347, %p348
      %p350 = scmp.ne.s32.totalorder %s341, %s342
      %p351 = scmp.eq.s32.totalorder %s37, 0
      %p352 = por %p350, %p351
      %p353 = scmp.ne.s32.totalorder %s341, %s342
      %p354 = scmp.eq.s32.totalorder %s38, 1
      %p355 = por %p353, %p354
      %p357 = scmp.ne.s32.totalorder %s342, %s356
      %p358 = scmp.eq.s32.totalorder %s38, 0
      %p359 = por %p357, %p358
      %s361 = sadd.s32 %s360, 1
      %p364 = scmp.eq.s32.totalorder %s32, 1
      %p365 = scmp.ne.s32.totalorder %s360, %s362
      %p366 = scmp.eq.s32.totalorder %s32, 0
      %p367 = por %p365, %p366
      %p368 = scmp.ne.s32.totalorder %s360, %s362
      %p369 = scmp.eq.s32.totalorder %s37, 1
      %p370 = por %p368, %p369
      %p371 = scmp.ne.s32.totalorder %s362, %s363
      %p372 = scmp.eq.s32.totalorder %s37, 0
      %p373 = por %p371, %p372
      %p374 = scmp.ne.s32.totalorder %s362, %s363
      %p375 = scmp.eq.s32.totalorder %s38, 1
      %p376 = por %p374, %p375
      %p378 = scmp.ne.s32.totalorder %s363, %s377
      %p379 = scmp.eq.s32.totalorder %s38, 0
      %p380 = por %p378, %p379
      %s382 = sadd.s32 %s381, 1
      %p385 = scmp.eq.s32.totalorder %s32, 1
      %p386 = scmp.ne.s32.totalorder %s381, %s383
      %p387 = scmp.eq.s32.totalorder %s32, 0
      %p388 = por %p386, %p387
      %p389 = scmp.ne.s32.totalorder %s381, %s383
      %p390 = scmp.eq.s32.totalorder %s37, 1
      %p391 = por %p389, %p390
      %p392 = scmp.ne.s32.totalorder %s383, %s384
      %p393 = scmp.eq.s32.totalorder %s37, 0
      %p394 = por %p392, %p393
      %p395 = scmp.ne.s32.totalorder %s383, %s384
      %p396 = scmp.eq.s32.totalorder %s38, 1
      %p397 = por %p395, %p396
      %p399 = scmp.ne.s32.totalorder %s384, %s398
      %p400 = scmp.eq.s32.totalorder %s38, 0
      %p401 = por %p399, %p400
      %s403 = sadd.s32 %s402, 1
      %p406 = scmp.eq.s32.totalorder %s32, 1
      %p407 = scmp.ne.s32.totalorder %s402, %s404
      %p408 = scmp.eq.s32.totalorder %s32, 0
      %p409 = por %p407, %p408
      %p410 = scmp.ne.s32.totalorder %s402, %s404
      %p411 = scmp.eq.s32.totalorder %s37, 1
      %p412 = por %p410, %p411
      %p413 = scmp.ne.s32.totalorder %s404, %s405
      %p414 = scmp.eq.s32.totalorder %s37, 0
      %p415 = por %p413, %p414
      %p416 = scmp.ne.s32.totalorder %s404, %s405
      %p417 = scmp.eq.s32.totalorder %s38, 1
      %p418 = por %p416, %p417
      %p420 = scmp.ne.s32.totalorder %s405, %s419
      %p421 = scmp.eq.s32.totalorder %s38, 0
      %p422 = por %p420, %p421
      %s424 = sadd.s32 %s423, 1
      %p427 = scmp.eq.s32.totalorder %s32, 1
      %p428 = scmp.ne.s32.totalorder %s423, %s425
      %p429 = scmp.eq.s32.totalorder %s32, 0
      %p430 = por %p428, %p429
      %p431 = scmp.ne.s32.totalorder %s423, %s425
      %p432 = scmp.eq.s32.totalorder %s37, 1
      %p433 = por %p431, %p432
      %p434 = scmp.ne.s32.totalorder %s425, %s426
      %p435 = scmp.eq.s32.totalorder %s37, 0
      %p436 = por %p434, %p435
      %p437 = scmp.ne.s32.totalorder %s425, %s426
      %p438 = scmp.eq.s32.totalorder %s38, 1
      %p439 = por %p437, %p438
      %p441 = scmp.ne.s32.totalorder %s426, %s440
      %p442 = scmp.eq.s32.totalorder %s38, 0
      %p443 = por %p441, %p442
      %s445 = sadd.s32 %s444, 1
      %p448 = scmp.eq.s32.totalorder %s32, 1
      %p449 = scmp.ne.s32.totalorder %s444, %s446
      %p450 = scmp.eq.s32.totalorder %s32, 0
      %p451 = por %p449, %p450
      %p452 = scmp.ne.s32.totalorder %s444, %s446
      %p453 = scmp.eq.s32.totalorder %s37, 1
      %p454 = por %p452, %p453
      %p455 = scmp.ne.s32.totalorder %s446, %s447
      %p456 = scmp.eq.s32.totalorder %s37, 0
      %p457 = por %p455, %p456
      %p458 = scmp.ne.s32.totalorder %s446, %s447
      %p459 = scmp.eq.s32.totalorder %s38, 1
      %p460 = por %p458, %p459
      %p462 = scmp.ne.s32.totalorder %s447, %s461
      %p463 = scmp.eq.s32.totalorder %s38, 0
      %p464 = por %p462, %p463
      %s466 = sadd.s32 %s465, 1
      %p469 = scmp.eq.s32.totalorder %s32, 1
      %p470 = scmp.ne.s32.totalorder %s465, %s467
      %p471 = scmp.eq.s32.totalorder %s32, 0
      %p472 = por %p470, %p471
      %p473 = scmp.ne.s32.totalorder %s465, %s467
      %p474 = scmp.eq.s32.totalorder %s37, 1
      %p475 = por %p473, %p474
      %p476 = scmp.ne.s32.totalorder %s467, %s468
      %p477 = scmp.eq.s32.totalorder %s37, 0
      %p478 = por %p476, %p477
      %p479 = scmp.ne.s32.totalorder %s467, %s468
      %p480 = scmp.eq.s32.totalorder %s38, 1
      %p481 = por %p479, %p480
      %p483 = scmp.ne.s32.totalorder %s468, %s482
      %p484 = scmp.eq.s32.totalorder %s38, 0
      %p485 = por %p483, %p484
      %s487 = sadd.s32 %s486, 1
      %p490 = scmp.eq.s32.totalorder %s32, 1
      %p491 = scmp.ne.s32.totalorder %s486, %s488
      %p492 = scmp.eq.s32.totalorder %s32, 0
      %p493 = por %p491, %p492
      %p494 = scmp.ne.s32.totalorder %s486, %s488
      %p495 = scmp.eq.s32.totalorder %s37, 1
      %p496 = por %p494, %p495
      %p497 = scmp.ne.s32.totalorder %s488, %s489
      %p498 = scmp.eq.s32.totalorder %s37, 0
      %p499 = por %p497, %p498
      %p500 = scmp.ne.s32.totalorder %s488, %s489
      %p501 = scmp.eq.s32.totalorder %s38, 1
      %p502 = por %p500, %p501
      %p504 = scmp.ne.s32.totalorder %s489, %s503
      %p505 = scmp.eq.s32.totalorder %s38, 0
      %p506 = por %p504, %p505
      %s508 = sadd.s32 %s507, 1
      %p511 = scmp.eq.s32.totalorder %s32, 1
      %p512 = scmp.ne.s32.totalorder %s507, %s509
      %p513 = scmp.eq.s32.totalorder %s32, 0
      %p514 = por %p512, %p513
      %p515 = scmp.ne.s32.totalorder %s507, %s509
      %p516 = scmp.eq.s32.totalorder %s37, 1
      %p517 = por %p515, %p516
      %p518 = scmp.ne.s32.totalorder %s509, %s510
      %p519 = scmp.eq.s32.totalorder %s37, 0
      %p520 = por %p518, %p519
      %p521 = scmp.ne.s32.totalorder %s509, %s510
      %p522 = scmp.eq.s32.totalorder %s38, 1
      %p523 = por %p521, %p522
      %p525 = scmp.ne.s32.totalorder %s510, %s524
      %p526 = scmp.eq.s32.totalorder %s38, 0
      %p527 = por %p525, %p526
      %s528 = ssub.s32 %s32, %s39
      %p529 = scmp.eq.s32.totalorder %s528, 0
      %s531 = sadd.s32 %s530, 1
      %s532 = scalar_select %p529, %s530, %s531
      %p535 = pneg %p529
      %p536 = scmp.eq.s32.totalorder %s32, 1
      %p537 = por %p535, %p536
      %p538 = scmp.ne.s32.totalorder %s530, %s533
      %p539 = scmp.eq.s32.totalorder %s32, 0
      %p540 = por %p538, %p539
      %p541 = scmp.ne.s32.totalorder %s530, %s533
      %p542 = scmp.eq.s32.totalorder %s37, 1
      %p543 = por %p541, %p542
      %p544 = scmp.ne.s32.totalorder %s533, %s534
      %p545 = scmp.eq.s32.totalorder %s37, 0
      %p546 = por %p544, %p545
      %p547 = scmp.ne.s32.totalorder %s533, %s534
      %p548 = scmp.eq.s32.totalorder %s38, 1
      %p549 = por %p547, %p548
      %p551 = scmp.ne.s32.totalorder %s534, %s550
      %p552 = scmp.eq.s32.totalorder %s38, 0
      %p553 = por %p551, %p552
      %p554 = scmp.le.s32.totalorder 1, %s32
      %p555 = scmp.lt.s32.totalorder %s32, 3
      %p556 = pnand %p554, %p555
      %p557 = pneg %p556
      // Predicated region
      $region9: #{tpu_custom_call.1} parent=5 // pred_check
        _
      $region10: #{tpu_custom_call.1} parent=5 // pred_check_branch
        %559 = sbr.rel (%p556) target = $region12
      $region11: #{tpu_custom_call.1} parent=5 // pred_region
        %s560 = ssub.s32 %s32, 1
        // Predicated region
        $region13: #{tpu_custom_call.1} parent=11 // pred_check
          %p561 = pneg %p79
        $region14: #{tpu_custom_call.1} parent=11 // pred_check_branch
          %563 = sbr.rel (%p561) target = $region16
        $region15: #{tpu_custom_call.1} parent=11 // pred_region
          _
        $region16: #{tpu_custom_call.1} parent=11 // pred_fallthru
          _
        // Predicated region
        $region17: #{tpu_custom_call.1} parent=11 // pred_check
          %p564 = pneg %p100
        $region18: #{tpu_custom_call.1} parent=11 // pred_check_branch
          %566 = sbr.rel (%p564) target = $region20
        $region19: #{tpu_custom_call.1} parent=11 // pred_region
          _
        $region20: #{tpu_custom_call.1} parent=11 // pred_fallthru
          _
        // Predicated region
        $region21: #{tpu_custom_call.1} parent=11 // pred_check
          %p567 = pneg %p121
        $region22: #{tpu_custom_call.1} parent=11 // pred_check_branch
          %569 = sbr.rel (%p567) target = $region24
        $region23: #{tpu_custom_call.1} parent=11 // pred_region
          _
        $region24: #{tpu_custom_call.1} parent=11 // pred_fallthru
          _
        // Predicated region
        $region25: #{tpu_custom_call.1} parent=11 // pred_check
          %p570 = pneg %p142
        $region26: #{tpu_custom_call.1} parent=11 // pred_check_branch
          %572 = sbr.rel (%p570) target = $region28
        $region27: #{tpu_custom_call.1} parent=11 // pred_region
          _
        $region28: #{tpu_custom_call.1} parent=11 // pred_fallthru
          _
        // Predicated region
        $region29: #{tpu_custom_call.1} parent=11 // pred_check
          %p573 = pneg %p163
        $region30: #{tpu_custom_call.1} parent=11 // pred_check_branch
          %575 = sbr.rel (%p573) target = $region32
        $region31: #{tpu_custom_call.1} parent=11 // pred_region
          _
        $region32: #{tpu_custom_call.1} parent=11 // pred_fallthru
          _
        // Predicated region
        $region33: #{tpu_custom_call.1} parent=11 // pred_check
          %p576 = pneg %p184
        $region34: #{tpu_custom_call.1} parent=11 // pred_check_branch
          %578 = sbr.rel (%p576) target = $region36
        $region35: #{tpu_custom_call.1} parent=11 // pred_region
          _
        $region36: #{tpu_custom_call.1} parent=11 // pred_fallthru
          _
        // Predicated region
        $region37: #{tpu_custom_call.1} parent=11 // pred_check
          %p579 = pneg %p205
        $region38: #{tpu_custom_call.1} parent=11 // pred_check_branch
          %581 = sbr.rel (%p579) target = $region40
        $region39: #{tpu_custom_call.1} parent=11 // pred_region
          _
        $region40: #{tpu_custom_call.1} parent=11 // pred_fallthru
          _
        // Predicated region
        $region41: #{tpu_custom_call.1} parent=11 // pred_check
          %p582 = pneg %p226
        $region42: #{tpu_custom_call.1} parent=11 // pred_check_branch
          %584 = sbr.rel (%p582) target = $region44
        $region43: #{tpu_custom_call.1} parent=11 // pred_region
          _
        $region44: #{tpu_custom_call.1} parent=11 // pred_fallthru
          _
        // Predicated region
        $region45: #{tpu_custom_call.1} parent=11 // pred_check
          %p585 = pneg %p247
        $region46: #{tpu_custom_call.1} parent=11 // pred_check_branch
          %587 = sbr.rel (%p585) target = $region48
        $region47: #{tpu_custom_call.1} parent=11 // pred_region
          _
        $region48: #{tpu_custom_call.1} parent=11 // pred_fallthru
          _
        // Predicated region
        $region49: #{tpu_custom_call.1} parent=11 // pred_check
          %p588 = pneg %p268
        $region50: #{tpu_custom_call.1} parent=11 // pred_check_branch
          %590 = sbr.rel (%p588) target = $region52
        $region51: #{tpu_custom_call.1} parent=11 // pred_region
          _
        $region52: #{tpu_custom_call.1} parent=11 // pred_fallthru
          _
        // Predicated region
        $region53: #{tpu_custom_call.1} parent=11 // pred_check
          %p591 = pneg %p289
        $region54: #{tpu_custom_call.1} parent=11 // pred_check_branch
          %593 = sbr.rel (%p591) target = $region56
        $region55: #{tpu_custom_call.1} parent=11 // pred_region
          _
        $region56: #{tpu_custom_call.1} parent=11 // pred_fallthru
          _
        // Predicated region
        $region57: #{tpu_custom_call.1} parent=11 // pred_check
          %p594 = pneg %p310
        $region58: #{tpu_custom_call.1} parent=11 // pred_check_branch
          %596 = sbr.rel (%p594) target = $region60
        $region59: #{tpu_custom_call.1} parent=11 // pred_region
          _
        $region60: #{tpu_custom_call.1} parent=11 // pred_fallthru
          _
        // Predicated region
        $region61: #{tpu_custom_call.1} parent=11 // pred_check
          %p597 = pneg %p331
        $region62: #{tpu_custom_call.1} parent=11 // pred_check_branch
          %599 = sbr.rel (%p597) target = $region64
        $region63: #{tpu_custom_call.1} parent=11 // pred_region
          _
        $region64: #{tpu_custom_call.1} parent=11 // pred_fallthru
          _
        // Predicated region
        $region65: #{tpu_custom_call.1} parent=11 // pred_check
          %p600 = pneg %p352
        $region66: #{tpu_custom_call.1} parent=11 // pred_check_branch
          %602 = sbr.rel (%p600) target = $region68
        $region67: #{tpu_custom_call.1} parent=11 // pred_region
          _
        $region68: #{tpu_custom_call.1} parent=11 // pred_fallthru
          _
        // Predicated region
        $region69: #{tpu_custom_call.1} parent=11 // pred_check
          %p603 = pneg %p373
        $region70: #{tpu_custom_call.1} parent=11 // pred_check_branch
          %605 = sbr.rel (%p603) target = $region72
        $region71: #{tpu_custom_call.1} parent=11 // pred_region
          _
        $region72: #{tpu_custom_call.1} parent=11 // pred_fallthru
          _
        // Predicated region
        $region73: #{tpu_custom_call.1} parent=11 // pred_check
          %p606 = pneg %p394
        $region74: #{tpu_custom_call.1} parent=11 // pred_check_branch
          %608 = sbr.rel (%p606) target = $region76
        $region75: #{tpu_custom_call.1} parent=11 // pred_region
          _
        $region76: #{tpu_custom_call.1} parent=11 // pred_fallthru
          _
        // Predicated region
        $region77: #{tpu_custom_call.1} parent=11 // pred_check
          %p609 = pneg %p415
        $region78: #{tpu_custom_call.1} parent=11 // pred_check_branch
          %611 = sbr.rel (%p609) target = $region80
        $region79: #{tpu_custom_call.1} parent=11 // pred_region
          _
        $region80: #{tpu_custom_call.1} parent=11 // pred_fallthru
          _
        // Predicated region
        $region81: #{tpu_custom_call.1} parent=11 // pred_check
          %p612 = pneg %p436
        $region82: #{tpu_custom_call.1} parent=11 // pred_check_branch
          %614 = sbr.rel (%p612) target = $region84
        $region83: #{tpu_custom_call.1} parent=11 // pred_region
          _
        $region84: #{tpu_custom_call.1} parent=11 // pred_fallthru
          _
        // Predicated region
        $region85: #{tpu_custom_call.1} parent=11 // pred_check
          %p615 = pneg %p457
        $region86: #{tpu_custom_call.1} parent=11 // pred_check_branch
          %617 = sbr.rel (%p615) target = $region88
        $region87: #{tpu_custom_call.1} parent=11 // pred_region
          _
        $region88: #{tpu_custom_call.1} parent=11 // pred_fallthru
          _
        // Predicated region
        $region89: #{tpu_custom_call.1} parent=11 // pred_check
          %p618 = pneg %p478
        $region90: #{tpu_custom_call.1} parent=11 // pred_check_branch
          %620 = sbr.rel (%p618) target = $region92
        $region91: #{tpu_custom_call.1} parent=11 // pred_region
          _
        $region92: #{tpu_custom_call.1} parent=11 // pred_fallthru
          _
        // Predicated region
        $region93: #{tpu_custom_call.1} parent=11 // pred_check
          %p621 = pneg %p499
        $region94: #{tpu_custom_call.1} parent=11 // pred_check_branch
          %623 = sbr.rel (%p621) target = $region96
        $region95: #{tpu_custom_call.1} parent=11 // pred_region
          _
        $region96: #{tpu_custom_call.1} parent=11 // pred_fallthru
          _
        // Predicated region
        $region97: #{tpu_custom_call.1} parent=11 // pred_check
          %p624 = pneg %p520
        $region98: #{tpu_custom_call.1} parent=11 // pred_check_branch
          %626 = sbr.rel (%p624) target = $region100
        $region99: #{tpu_custom_call.1} parent=11 // pred_region
          _
        $region100: #{tpu_custom_call.1} parent=11 // pred_fallthru
          _
      $region12: #{tpu_custom_call.1} parent=5 // pred_fallthru
        _
      %p627 = scmp.lt.s32.totalorder %s32, 2
      // Predicated region
      $region101: #{tpu_custom_call.1} parent=5 // pred_check
        %p628 = pneg %p627
      $region102: #{tpu_custom_call.1} parent=5 // pred_check_branch
        %630 = sbr.rel (%p628) target = $region104
      $region103: #{tpu_custom_call.1} parent=5 // pred_region
        // Predicated region
        $region105: #{tpu_custom_call.1} parent=103 // pred_check
          %p631 = pneg %p52
        $region106: #{tpu_custom_call.1} parent=103 // pred_check_branch
          %633 = sbr.rel (%p631) target = $region108
        $region107: #{tpu_custom_call.1} parent=103 // pred_region
          %p634 = scmp.lt.s32.totalorder %s32, 1
          %s635 = scalar_select %p634, %s32, 1
          %s636 = smul.addr %s635, 2
          %s637 = smul.addr %s636, 8
          %s638 = scalar_lea.vmem %s0, %s637
        $region108: #{tpu_custom_call.1} parent=103 // pred_fallthru
          _
      $region104: #{tpu_custom_call.1} parent=5 // pred_fallthru
        _
      %p639 = scmp.le.s32.totalorder 1, %s32
      %p640 = scmp.lt.s32.totalorder %s32, 3
      %p641 = pnand %p639, %p640
      %p642 = pneg %p641
      // Predicated region
      $region109: #{tpu_custom_call.1} parent=5 // pred_check
        _
      $region110: #{tpu_custom_call.1} parent=5 // pred_check_branch
        %644 = sbr.rel (%p641) target = $region112
      $region111: #{tpu_custom_call.1} parent=5 // pred_region
        %s645 = ssub.s32 %s32, 1
        %p646 = scmp.lt.s32.totalorder %s37, 1
        %s647 = scalar_select %p646, %s37, 1
        %s648 = smul.addr %s647, 2
        %s649 = smul.addr %s648, 8
        %s650 = scalar_lea.vmem %s0, %s649
        %p651 = pneg %p58
        %p652 = pneg %p55
        %p653 = pneg %p79
        %p654 = pneg %p76
        %p655 = pneg %p100
        %p656 = pneg %p97
        %p657 = pneg %p121
        %p658 = pneg %p118
        %p659 = pneg %p142
        %p660 = pneg %p139
        %p661 = pneg %p163
        %p662 = pneg %p160
        %p663 = pneg %p184
        %p664 = pneg %p181
        %p665 = pneg %p205
        %p666 = pneg %p202
        %p667 = pneg %p226
        %p668 = pneg %p223
        %p669 = pneg %p247
        %p670 = pneg %p244
        %p671 = pneg %p268
        %p672 = pneg %p265
        %p673 = pneg %p289
        %p674 = pneg %p286
        %p675 = pneg %p310
        %p676 = pneg %p307
        %p677 = pneg %p331
        %p678 = pneg %p328
        %p679 = pneg %p352
        %p680 = pneg %p349
        %p681 = pneg %p373
        %p682 = pneg %p370
        %p683 = pneg %p394
        %p684 = pneg %p391
        %p685 = pneg %p415
        %p686 = pneg %p412
        %p687 = pneg %p436
        %p688 = pneg %p433
        %p689 = pneg %p457
        %p690 = pneg %p454
        %p691 = pneg %p478
        %p692 = pneg %p475
        %p693 = pneg %p499
        %p694 = pneg %p496
        %p695 = pneg %p520
        %p696 = pneg %p517
        %p697 = pneg %p546
        %p698 = pneg %p543
        %s699 = sand.u32 %s533, 1
        %s700 = scalar_lea.sflag [#allocation3], %s699
        %s701 = sand.u32 %s533, 1
        %s702 = smul.addr %s701, 32
        %s703 = scalar_lea.vmem [#allocation2], %s702
        %p704 = scmp.lt.s32.totalorder %s37, 1
        %s705 = scalar_select %p704, %s37, 1
        %s706 = smul.addr %s705, 2
        %s707 = smul.addr %s706, 8
        %s708 = scalar_lea.vmem %s0, %s707
        %v709 = vlaneseq
        %v710 = vand.u32 %v709, 127
        %v711 = vadd.s32 %v710, 128
        %v712 = vand.u32 %v710, 15
        %v713 = vand.u32 %v711, 15
        %vm714 = vcmp.ne.s32.totalorder %v712, 0
        %vm715 = vcmp.ne.s32.totalorder %v713, 0
        %v716 = vsel %vm714, 1, 0
        %v717 = vsel %vm715, 1, 0
        %v718 = vcvt.s32.f32 %v716
        %v719 = vcvt.s32.f32 %v717
        %vm720 = vcmp.ne.s32.totalorder %v712, 15
        %vm721 = vcmp.ne.s32.totalorder %v713, 15
        %v722 = vsel %vm720, 1, 0
        %v723 = vsel %vm721, 1, 0
        %v724 = vcvt.s32.f32 %v722
        %v725 = vcvt.s32.f32 %v723
        %vm726 = vcmp.ge.s32.totalorder %v710, 16
        %vm727 = vcmp.ge.s32.totalorder %v711, 16
        %v728 = vsel %vm726, 1, 0
        %v729 = vsel %vm727, 1, 0
        %v730 = vcvt.s32.f32 %v728
        %v731 = vcvt.s32.f32 %v729
        %vm732 = vcmp.lt.s32.totalorder %v710, 240
        %vm733 = vcmp.lt.s32.totalorder %v711, 240
        %v734 = vsel %vm732, 1, 0
        %v735 = vsel %vm733, 1, 0
        %v736 = vcvt.s32.f32 %v734
        %v737 = vcvt.s32.f32 %v735
        %v738 = vld [vmem:[%s708] sm:$0xff]
        %v739 = vld [vmem:[%s708 + $0x8] sm:$0xff]
        %v740 = vld [vmem:[%s1] sm:$0xff]
        %v741 = vld [vmem:[%s1 + $0x8] sm:$0xff]
        %vm742 = vcmask 64512
        %v744 = vsel %vm742, %v740, 0
        %v747 = vsel %vm742, %v741, 0
        %v749 = vand.u32 %v739, 4294901760
        %750 = vmatprep.subr.mxu0 %v749
        %v751 = vand.u32 %v738, 4294901760
        %752 = vmatpush1.msra.mxu0 %v751
        %753 = vmatprep.subr.mxu0 0.0
        %754 = vmatpush1.msra.mxu0 0.0
        %755 = vmatprep.subr.mxu0 0.0
        %756 = vmatpush1.msra.mxu0 0.0
        %757 = vmatprep.subr.mxu0 0.0
        %758 = vmatpush1.msra.mxu0 0.0
        %759 = vmatprep.subr.mxu0 0.0
        %760 = vmatpush1.msra.mxu0 0.0
        %761 = vmatprep.subr.mxu0 0.0
        %762 = vmatpush1.msra.mxu0 0.0
        %763 = vmatprep.subr.mxu0 0.0
        %764 = vmatpush1.msra.mxu0 0.0
        %765 = vmatprep.subr.mxu0 0.0
        %766 = vmatpush1.msra.mxu0 0.0
        %767 = vmatprep.subr.mxu0 0.0
        %768 = vmatpush1.msra.mxu0 0.0
        %769 = vmatprep.subr.mxu0 0.0
        %770 = vmatpush1.msra.mxu0 0.0
        %771 = vmatprep.subr.mxu0 0.0
        %772 = vmatpush1.msra.mxu0 0.0
        %773 = vmatprep.subr.mxu0 0.0
        %774 = vmatpush1.msra.mxu0 0.0
        %775 = vmatprep.subr.mxu0 0.0
        %776 = vmatpush1.msra.mxu0 0.0
        %777 = vmatprep.subr.mxu0 0.0
        %778 = vmatpush1.msra.mxu0 0.0
        %779 = vmatprep.subr.mxu0 0.0
        %780 = vmatpush1.msra.mxu0 0.0
        %781 = vmatprep.subr.mxu0 0.0
        %782 = vmatpush1.msra.mxu0 0.0
        %783 = vmatprep.subr.mxu0 0.0
        %784 = vmatpush1.msra.mxu0 0.0
        %785 = vmatprep.subr.mxu0 0.0
        %786 = vmatpush1.msra.mxu0 0.0
        %787 = vmatprep.subr.mxu0 0.0
        %788 = vmatpush1.msra.mxu0 0.0
        %789 = vmatprep.subr.mxu0 0.0
        %790 = vmatpush1.msra.mxu0 0.0
        %791 = vmatprep.subr.mxu0 0.0
        %792 = vmatpush1.msra.mxu0 0.0
        %793 = vmatprep.subr.mxu0 0.0
        %794 = vmatpush1.msra.mxu0 0.0
        %795 = vmatprep.subr.mxu0 0.0
        %796 = vmatpush1.msra.mxu0 0.0
        %797 = vmatprep.subr.mxu0 0.0
        %798 = vmatpush1.msra.mxu0 0.0
        %799 = vmatprep.subr.mxu0 0.0
        %800 = vmatpush1.msra.mxu0 0.0
        %801 = vmatprep.subr.mxu0 0.0
        %802 = vmatpush1.msra.mxu0 0.0
        %803 = vmatprep.subr.mxu0 0.0
        %804 = vmatpush1.msra.mxu0 0.0
        %805 = vmatprep.subr.mxu0 0.0
        %806 = vmatpush1.msra.mxu0 0.0
        %807 = vmatprep.subr.mxu0 0.0
        %808 = vmatpush1.msra.mxu0 0.0
        %809 = vmatprep.subr.mxu0 0.0
        %810 = vmatpush1.msra.mxu0 0.0
        %811 = vmatprep.subr.mxu0 0.0
        %812 = vmatpush1.msra.mxu0 0.0
        %813 = vmatprep.subr.mxu0 0.0
        %814 = vmatpush1.msra.mxu0 0.0
        %815 = vmatprep.mubr.f32.mxu0 0.0
        %v816 = vand.u32 %v744, 4294901760
        %v817 = vsub.f32 %v744, %v816
        %v818 = vand.u32 %v817, 4294901760
        %v819 = vsub.f32 %v817, %v818
        %v820 = vand.u32 %v819, 4294901760
        %821 = vmatmul.mubr.f32.gmra.mrb[0].mxu0 %v820
        %v822 = vpop.f32.mrb[0].mxu0
        %v823 = vadd.f32 0.0, %v822
        %v824 = vpop.f32.mrb[0].mxu0
        %v825 = vadd.f32 0.0, %v824
        %826 = vmatprep.mubr.f32.mxu0 0.0
        %v827 = vand.u32 %v747, 4294901760
        %v828 = vsub.f32 %v747, %v827
        %v829 = vand.u32 %v828, 4294901760
        %v830 = vsub.f32 %v828, %v829
        %v831 = vand.u32 %v830, 4294901760
        %832 = vmatmul.mubr.f32.gmra.mrb[0].mxu0 %v831
        %v833 = vpop.f32.mrb[0].mxu0
        %v834 = vadd.f32 0.0, %v833
        %v835 = vpop.f32.mrb[0].mxu0
        %v836 = vadd.f32 0.0, %v835
        %837 = vdwg.mxu0
        %v838 = vand.u32 %v739, 4294901760
        %v839 = vsub.f32 %v739, %v838
        %v840 = vand.u32 %v839, 4294901760
        %v841 = vsub.f32 %v839, %v840
        %v842 = vand.u32 %v841, 4294901760
        %843 = vmatprep.subr.mxu0 %v842
        %v844 = vand.u32 %v738, 4294901760
        %v845 = vsub.f32 %v738, %v844
        %v846 = vand.u32 %v845, 4294901760
        %v847 = vsub.f32 %v845, %v846
        %v848 = vand.u32 %v847, 4294901760
        %849 = vmatpush1.msra.mxu0 %v848
        %850 = vmatprep.subr.mxu0 0.0
        %851 = vmatpush1.msra.mxu0 0.0
        %852 = vmatprep.subr.mxu0 0.0
        %853 = vmatpush1.msra.mxu0 0.0
        %854 = vmatprep.subr.mxu0 0.0
        %855 = vmatpush1.msra.mxu0 0.0
        %856 = vmatprep.subr.mxu0 0.0
        %857 = vmatpush1.msra.mxu0 0.0
        %858 = vmatprep.subr.mxu0 0.0
        %859 = vmatpush1.msra.mxu0 0.0
        %860 = vmatprep.subr.mxu0 0.0
        %861 = vmatpush1.msra.mxu0 0.0
        %862 = vmatprep.subr.mxu0 0.0
        %863 = vmatpush1.msra.mxu0 0.0
        %864 = vmatprep.subr.mxu0 0.0
        %865 = vmatpush1.msra.mxu0 0.0
        %866 = vmatprep.subr.mxu0 0.0
        %867 = vmatpush1.msra.mxu0 0.0
        %868 = vmatprep.subr.mxu0 0.0
        %869 = vmatpush1.msra.mxu0 0.0
        %870 = vmatprep.subr.mxu0 0.0
        %871 = vmatpush1.msra.mxu0 0.0
        %872 = vmatprep.subr.mxu0 0.0
        %873 = vmatpush1.msra.mxu0 0.0
        %874 = vmatprep.subr.mxu0 0.0
        %875 = vmatpush1.msra.mxu0 0.0
        %876 = vmatprep.subr.mxu0 0.0
        %877 = vmatpush1.msra.mxu0 0.0
        %878 = vmatprep.subr.mxu0 0.0
        %879 = vmatpush1.msra.mxu0 0.0
        %880 = vmatprep.subr.mxu0 0.0
        %881 = vmatpush1.msra.mxu0 0.0
        %882 = vmatprep.subr.mxu0 0.0
        %883 = vmatpush1.msra.mxu0 0.0
        %884 = vmatprep.subr.mxu0 0.0
        %885 = vmatpush1.msra.mxu0 0.0
        %886 = vmatprep.subr.mxu0 0.0
        %887 = vmatpush1.msra.mxu0 0.0
        %888 = vmatprep.subr.mxu0 0.0
        %889 = vmatpush1.msra.mxu0 0.0
        %890 = vmatprep.subr.mxu0 0.0
        %891 = vmatpush1.msra.mxu0 0.0
        %892 = vmatprep.subr.mxu0 0.0
        %893 = vmatpush1.msra.mxu0 0.0
        %894 = vmatprep.subr.mxu0 0.0
        %895 = vmatpush1.msra.mxu0 0.0
        %896 = vmatprep.subr.mxu0 0.0
        %897 = vmatpush1.msra.mxu0 0.0
        %898 = vmatprep.subr.mxu0 0.0
        %899 = vmatpush1.msra.mxu0 0.0
        %900 = vmatprep.subr.mxu0 0.0
        %901 = vmatpush1.msra.mxu0 0.0
        %902 = vmatprep.subr.mxu0 0.0
        %903 = vmatpush1.msra.mxu0 0.0
        %904 = vmatprep.subr.mxu0 0.0
        %905 = vmatpush1.msra.mxu0 0.0
        %906 = vmatprep.subr.mxu0 0.0
        %907 = vmatpush1.msra.mxu0 0.0
        %908 = vmatprep.subr.mxu0 0.0
        %909 = vmatpush1.msra.mxu0 0.0
        %910 = vmatprep.subr.mxu0 0.0
        %911 = vmatpush1.msra.mxu0 0.0
        %912 = vmatprep.mubr.f32.mxu0 0.0
        %v913 = vand.u32 %v744, 4294901760
        %914 = vmatmul.mubr.f32.gmra.mrb[0].mxu0 %v913
        %v915 = vpop.f32.mrb[0].mxu0
        %v916 = vadd.f32 %v823, %v915
        %v917 = vpop.f32.mrb[0].mxu0
        %v918 = vadd.f32 %v825, %v917
        %919 = vmatprep.mubr.f32.mxu0 0.0
        %v920 = vand.u32 %v747, 4294901760
        %921 = vmatmul.mubr.f32.gmra.mrb[0].mxu0 %v920
        %v922 = vpop.f32.mrb[0].mxu0
        %v923 = vadd.f32 %v834, %v922
        %v924 = vpop.f32.mrb[0].mxu0
        %v925 = vadd.f32 %v836, %v924
        %926 = vdwg.mxu0
        %v927 = vand.u32 %v739, 4294901760
        %v928 = vsub.f32 %v739, %v927
        %929 = vmatprep.subr.mxu0 %v928
        %v930 = vand.u32 %v738, 4294901760
        %v931 = vsub.f32 %v738, %v930
        %932 = vmatpush1.msra.mxu0 %v931
        %933 = vmatprep.subr.mxu0 0.0
        %934 = vmatpush1.msra.mxu0 0.0
        %935 = vmatprep.subr.mxu0 0.0
        %936 = vmatpush1.msra.mxu0 0.0
        %937 = vmatprep.subr.mxu0 0.0
        %938 = vmatpush1.msra.mxu0 0.0
        %939 = vmatprep.subr.mxu0 0.0
        %940 = vmatpush1.msra.mxu0 0.0
        %941 = vmatprep.subr.mxu0 0.0
        %942 = vmatpush1.msra.mxu0 0.0
        %943 = vmatprep.subr.mxu0 0.0
        %944 = vmatpush1.msra.mxu0 0.0
        %945 = vmatprep.subr.mxu0 0.0
        %946 = vmatpush1.msra.mxu0 0.0
        %947 = vmatprep.subr.mxu0 0.0
        %948 = vmatpush1.msra.mxu0 0.0
        %949 = vmatprep.subr.mxu0 0.0
        %950 = vmatpush1.msra.mxu0 0.0
        %951 = vmatprep.subr.mxu0 0.0
        %952 = vmatpush1.msra.mxu0 0.0
        %953 = vmatprep.subr.mxu0 0.0
        %954 = vmatpush1.msra.mxu0 0.0
        %955 = vmatprep.subr.mxu0 0.0
        %956 = vmatpush1.msra.mxu0 0.0
        %957 = vmatprep.subr.mxu0 0.0
        %958 = vmatpush1.msra.mxu0 0.0
        %959 = vmatprep.subr.mxu0 0.0
        %960 = vmatpush1.msra.mxu0 0.0
        %961 = vmatprep.subr.mxu0 0.0
        %962 = vmatpush1.msra.mxu0 0.0
        %963 = vmatprep.subr.mxu0 0.0
        %964 = vmatpush1.msra.mxu0 0.0
        %965 = vmatprep.subr.mxu0 0.0
        %966 = vmatpush1.msra.mxu0 0.0
        %967 = vmatprep.subr.mxu0 0.0
        %968 = vmatpush1.msra.mxu0 0.0
        %969 = vmatprep.subr.mxu0 0.0
        %970 = vmatpush1.msra.mxu0 0.0
        %971 = vmatprep.subr.mxu0 0.0
        %972 = vmatpush1.msra.mxu0 0.0
        %973 = vmatprep.subr.mxu0 0.0
        %974 = vmatpush1.msra.mxu0 0.0
        %975 = vmatprep.subr.mxu0 0.0
        %976 = vmatpush1.msra.mxu0 0.0
        %977 = vmatprep.subr.mxu0 0.0
        %978 = vmatpush1.msra.mxu0 0.0
        %979 = vmatprep.subr.mxu0 0.0
        %980 = vmatpush1.msra.mxu0 0.0
        %981 = vmatprep.subr.mxu0 0.0
        %982 = vmatpush1.msra.mxu0 0.0
        %983 = vmatprep.subr.mxu0 0.0
        %984 = vmatpush1.msra.mxu0 0.0
        %985 = vmatprep.subr.mxu0 0.0
        %986 = vmatpush1.msra.mxu0 0.0
        %987 = vmatprep.subr.mxu0 0.0
        %988 = vmatpush1.msra.mxu0 0.0
        %989 = vmatprep.subr.mxu0 0.0
        %990 = vmatpush1.msra.mxu0 0.0
        %991 = vmatprep.subr.mxu0 0.0
        %992 = vmatpush1.msra.mxu0 0.0
        %993 = vmatprep.subr.mxu0 0.0
        %994 = vmatpush1.msra.mxu0 0.0
        %995 = vmatprep.mubr.f32.mxu0 0.0
        %v996 = vand.u32 %v744, 4294901760
        %v997 = vsub.f32 %v744, %v996
        %998 = vmatmul.mubr.f32.gmra.mrb[0].mxu0 %v997
        %v999 = vpop.f32.mrb[0].mxu0
        %v1000 = vadd.f32 %v916, %v999
        %v1001 = vpop.f32.mrb[0].mxu0
        %v1002 = vadd.f32 %v918, %v1001
        %1003 = vmatprep.mubr.f32.mxu0 0.0
        %v1004 = vand.u32 %v747, 4294901760
        %v1005 = vsub.f32 %v747, %v1004
        %1006 = vmatmul.mubr.f32.gmra.mrb[0].mxu0 %v1005
        %v1007 = vpop.f32.mrb[0].mxu0
        %v1008 = vadd.f32 %v923, %v1007
        %v1009 = vpop.f32.mrb[0].mxu0
        %v1010 = vadd.f32 %v925, %v1009
        %1011 = vdwg.mxu0
        %v1012 = vand.u32 %v739, 4294901760
        %1013 = vmatprep.subr.mxu0 %v1012
        %v1014 = vand.u32 %v738, 4294901760
        %1015 = vmatpush1.msra.mxu0 %v1014
        %1016 = vmatprep.subr.mxu0 0.0
        %1017 = vmatpush1.msra.mxu0 0.0
        %1018 = vmatprep.subr.mxu0 0.0
        %1019 = vmatpush1.msra.mxu0 0.0
        %1020 = vmatprep.subr.mxu0 0.0
        %1021 = vmatpush1.msra.mxu0 0.0
        %1022 = vmatprep.subr.mxu0 0.0
        %1023 = vmatpush1.msra.mxu0 0.0
        %1024 = vmatprep.subr.mxu0 0.0
        %1025 = vmatpush1.msra.mxu0 0.0
        %1026 = vmatprep.subr.mxu0 0.0
        %1027 = vmatpush1.msra.mxu0 0.0
        %1028 = vmatprep.subr.mxu0 0.0
        %1029 = vmatpush1.msra.mxu0 0.0
        %1030 = vmatprep.subr.mxu0 0.0
        %1031 = vmatpush1.msra.mxu0 0.0
        %1032 = vmatprep.subr.mxu0 0.0
        %1033 = vmatpush1.msra.mxu0 0.0
        %1034 = vmatprep.subr.mxu0 0.0
        %1035 = vmatpush1.msra.mxu0 0.0
        %1036 = vmatprep.subr.mxu0 0.0
        %1037 = vmatpush1.msra.mxu0 0.0
        %1038 = vmatprep.subr.mxu0 0.0
        %1039 = vmatpush1.msra.mxu0 0.0
        %1040 = vmatprep.subr.mxu0 0.0
        %1041 = vmatpush1.msra.mxu0 0.0
        %1042 = vmatprep.subr.mxu0 0.0
        %1043 = vmatpush1.msra.mxu0 0.0
        %1044 = vmatprep.subr.mxu0 0.0
        %1045 = vmatpush1.msra.mxu0 0.0
        %1046 = vmatprep.subr.mxu0 0.0
        %1047 = vmatpush1.msra.mxu0 0.0
        %1048 = vmatprep.subr.mxu0 0.0
        %1049 = vmatpush1.msra.mxu0 0.0
        %1050 = vmatprep.subr.mxu0 0.0
        %1051 = vmatpush1.msra.mxu0 0.0
        %1052 = vmatprep.subr.mxu0 0.0
        %1053 = vmatpush1.msra.mxu0 0.0
        %1054 = vmatprep.subr.mxu0 0.0
        %1055 = vmatpush1.msra.mxu0 0.0
        %1056 = vmatprep.subr.mxu0 0.0
        %1057 = vmatpush1.msra.mxu0 0.0
        %1058 = vmatprep.subr.mxu0 0.0
        %1059 = vmatpush1.msra.mxu0 0.0
        %1060 = vmatprep.subr.mxu0 0.0
        %1061 = vmatpush1.msra.mxu0 0.0
        %1062 = vmatprep.subr.mxu0 0.0
        %1063 = vmatpush1.msra.mxu0 0.0
        %1064 = vmatprep.subr.mxu0 0.0
        %1065 = vmatpush1.msra.mxu0 0.0
        %1066 = vmatprep.subr.mxu0 0.0
        %1067 = vmatpush1.msra.mxu0 0.0
        %1068 = vmatprep.subr.mxu0 0.0
        %1069 = vmatpush1.msra.mxu0 0.0
        %1070 = vmatprep.subr.mxu0 0.0
        %1071 = vmatpush1.msra.mxu0 0.0
        %1072 = vmatprep.subr.mxu0 0.0
        %1073 = vmatpush1.msra.mxu0 0.0
        %1074 = vmatprep.subr.mxu0 0.0
        %1075 = vmatpush1.msra.mxu0 0.0
        %1076 = vmatprep.subr.mxu0 0.0
        %1077 = vmatpush1.msra.mxu0 0.0
        %1078 = vmatprep.mubr.f32.mxu0 0.0
        %v1079 = vand.u32 %v744, 4294901760
        %v1080 = vsub.f32 %v744, %v1079
        %v1081 = vand.u32 %v1080, 4294901760
        %1082 = vmatmul.mubr.f32.gmra.mrb[0].mxu0 %v1081
        %v1083 = vpop.f32.mrb[0].mxu0
        %v1084 = vadd.f32 %v1000, %v1083
        %v1085 = vpop.f32.mrb[0].mxu0
        %v1086 = vadd.f32 %v1002, %v1085
        %1087 = vmatprep.mubr.f32.mxu0 0.0
        %v1088 = vand.u32 %v747, 4294901760
        %v1089 = vsub.f32 %v747, %v1088
        %v1090 = vand.u32 %v1089, 4294901760
        %1091 = vmatmul.mubr.f32.gmra.mrb[0].mxu0 %v1090
        %v1092 = vpop.f32.mrb[0].mxu0
        %v1093 = vadd.f32 %v1008, %v1092
        %v1094 = vpop.f32.mrb[0].mxu0
        %v1095 = vadd.f32 %v1010, %v1094
        %1096 = vdwg.mxu0
        %v1097 = vand.u32 %v739, 4294901760
        %v1098 = vsub.f32 %v739, %v1097
        %v1099 = vand.u32 %v1098, 4294901760
        %1100 = vmatprep.subr.mxu0 %v1099
        %v1101 = vand.u32 %v738, 4294901760
        %v1102 = vsub.f32 %v738, %v1101
        %v1103 = vand.u32 %v1102, 4294901760
        %1104 = vmatpush1.msra.mxu0 %v1103
        %1105 = vmatprep.subr.mxu0 0.0
        %1106 = vmatpush1.msra.mxu0 0.0
        %1107 = vmatprep.subr.mxu0 0.0
        %1108 = vmatpush1.msra.mxu0 0.0
        %1109 = vmatprep.subr.mxu0 0.0
        %1110 = vmatpush1.msra.mxu0 0.0
        %1111 = vmatprep.subr.mxu0 0.0
        %1112 = vmatpush1.msra.mxu0 0.0
        %1113 = vmatprep.subr.mxu0 0.0
        %1114 = vmatpush1.msra.mxu0 0.0
        %1115 = vmatprep.subr.mxu0 0.0
        %1116 = vmatpush1.msra.mxu0 0.0
        %1117 = vmatprep.subr.mxu0 0.0
        %1118 = vmatpush1.msra.mxu0 0.0
        %1119 = vmatprep.subr.mxu0 0.0
        %1120 = vmatpush1.msra.mxu0 0.0
        %1121 = vmatprep.subr.mxu0 0.0
        %1122 = vmatpush1.msra.mxu0 0.0
        %1123 = vmatprep.subr.mxu0 0.0
        %1124 = vmatpush1.msra.mxu0 0.0
        %1125 = vmatprep.subr.mxu0 0.0
        %1126 = vmatpush1.msra.mxu0 0.0
        %1127 = vmatprep.subr.mxu0 0.0
        %1128 = vmatpush1.msra.mxu0 0.0
        %1129 = vmatprep.subr.mxu0 0.0
        %1130 = vmatpush1.msra.mxu0 0.0
        %1131 = vmatprep.subr.mxu0 0.0
        %1132 = vmatpush1.msra.mxu0 0.0
        %1133 = vmatprep.subr.mxu0 0.0
        %1134 = vmatpush1.msra.mxu0 0.0
        %1135 = vmatprep.subr.mxu0 0.0
        %1136 = vmatpush1.msra.mxu0 0.0
        %1137 = vmatprep.subr.mxu0 0.0
        %1138 = vmatpush1.msra.mxu0 0.0
        %1139 = vmatprep.subr.mxu0 0.0
        %1140 = vmatpush1.msra.mxu0 0.0
        %1141 = vmatprep.subr.mxu0 0.0
        %1142 = vmatpush1.msra.mxu0 0.0
        %1143 = vmatprep.subr.mxu0 0.0
        %1144 = vmatpush1.msra.mxu0 0.0
        %1145 = vmatprep.subr.mxu0 0.0
        %1146 = vmatpush1.msra.mxu0 0.0
        %1147 = vmatprep.subr.mxu0 0.0
        %1148 = vmatpush1.msra.mxu0 0.0
        %1149 = vmatprep.subr.mxu0 0.0
        %1150 = vmatpush1.msra.mxu0 0.0
        %1151 = vmatprep.subr.mxu0 0.0
        %1152 = vmatpush1.msra.mxu0 0.0
        %1153 = vmatprep.subr.mxu0 0.0
        %1154 = vmatpush1.msra.mxu0 0.0
        %1155 = vmatprep.subr.mxu0 0.0
        %1156 = vmatpush1.msra.mxu0 0.0
        %1157 = vmatprep.subr.mxu0 0.0
        %1158 = vmatpush1.msra.mxu0 0.0
        %1159 = vmatprep.subr.mxu0 0.0
        %1160 = vmatpush1.msra.mxu0 0.0
        %1161 = vmatprep.subr.mxu0 0.0
        %1162 = vmatpush1.msra.mxu0 0.0
        %1163 = vmatprep.subr.mxu0 0.0
        %1164 = vmatpush1.msra.mxu0 0.0
        %1165 = vmatprep.subr.mxu0 0.0
        %1166 = vmatpush1.msra.mxu0 0.0
        %1167 = vmatprep.mubr.f32.mxu0 0.0
        %v1168 = vand.u32 %v744, 4294901760
        %1169 = vmatmul.mubr.f32.gmra.mrb[0].mxu0 %v1168
        %v1170 = vpop.f32.mrb[0].mxu0
        %v1171 = vadd.f32 %v1084, %v1170
        %v1172 = vpop.f32.mrb[0].mxu0
        %v1173 = vadd.f32 %v1086, %v1172
        %1174 = vmatprep.mubr.f32.mxu0 0.0
        %v1175 = vand.u32 %v747, 4294901760
        %1176 = vmatmul.mubr.f32.gmra.mrb[0].mxu0 %v1175
        %v1177 = vpop.f32.mrb[0].mxu0
        %v1178 = vadd.f32 %v1093, %v1177
        %v1179 = vpop.f32.mrb[0].mxu0
        %v1180 = vadd.f32 %v1095, %v1179
        %1181 = vdwg.mxu0
        %v1182 = vand.u32 %v739, 4294901760
        %1183 = vmatprep.subr.mxu0 %v1182
        %v1184 = vand.u32 %v738, 4294901760
        %1185 = vmatpush1.msra.mxu0 %v1184
        %1186 = vmatprep.subr.mxu0 0.0
        %1187 = vmatpush1.msra.mxu0 0.0
        %1188 = vmatprep.subr.mxu0 0.0
        %1189 = vmatpush1.msra.mxu0 0.0
        %1190 = vmatprep.subr.mxu0 0.0
        %1191 = vmatpush1.msra.mxu0 0.0
        %1192 = vmatprep.subr.mxu0 0.0
        %1193 = vmatpush1.msra.mxu0 0.0
        %1194 = vmatprep.subr.mxu0 0.0
        %1195 = vmatpush1.msra.mxu0 0.0
        %1196 = vmatprep.subr.mxu0 0.0
        %1197 = vmatpush1.msra.mxu0 0.0
        %1198 = vmatprep.subr.mxu0 0.0
        %1199 = vmatpush1.msra.mxu0 0.0
        %1200 = vmatprep.subr.mxu0 0.0
        %1201 = vmatpush1.msra.mxu0 0.0
        %1202 = vmatprep.subr.mxu0 0.0
        %1203 = vmatpush1.msra.mxu0 0.0
        %1204 = vmatprep.subr.mxu0 0.0
        %1205 = vmatpush1.msra.mxu0 0.0
        %1206 = vmatprep.subr.mxu0 0.0
        %1207 = vmatpush1.msra.mxu0 0.0
        %1208 = vmatprep.subr.mxu0 0.0
        %1209 = vmatpush1.msra.mxu0 0.0
        %1210 = vmatprep.subr.mxu0 0.0
        %1211 = vmatpush1.msra.mxu0 0.0
        %1212 = vmatprep.subr.mxu0 0.0
        %1213 = vmatpush1.msra.mxu0 0.0
        %1214 = vmatprep.subr.mxu0 0.0
        %1215 = vmatpush1.msra.mxu0 0.0
        %1216 = vmatprep.subr.mxu0 0.0
        %1217 = vmatpush1.msra.mxu0 0.0
        %1218 = vmatprep.subr.mxu0 0.0
        %1219 = vmatpush1.msra.mxu0 0.0
        %1220 = vmatprep.subr.mxu0 0.0
        %1221 = vmatpush1.msra.mxu0 0.0
        %1222 = vmatprep.subr.mxu0 0.0
        %1223 = vmatpush1.msra.mxu0 0.0
        %1224 = vmatprep.subr.mxu0 0.0
        %1225 = vmatpush1.msra.mxu0 0.0
        %1226 = vmatprep.subr.mxu0 0.0
        %1227 = vmatpush1.msra.mxu0 0.0
        %1228 = vmatprep.subr.mxu0 0.0
        %1229 = vmatpush1.msra.mxu0 0.0
        %1230 = vmatprep.subr.mxu0 0.0
        %1231 = vmatpush1.msra.mxu0 0.0
        %1232 = vmatprep.subr.mxu0 0.0
        %1233 = vmatpush1.msra.mxu0 0.0
        %1234 = vmatprep.subr.mxu0 0.0
        %1235 = vmatpush1.msra.mxu0 0.0
        %1236 = vmatprep.subr.mxu0 0.0
        %1237 = vmatpush1.msra.mxu0 0.0
        %1238 = vmatprep.subr.mxu0 0.0
        %1239 = vmatpush1.msra.mxu0 0.0
        %1240 = vmatprep.subr.mxu0 0.0
        %1241 = vmatpush1.msra.mxu0 0.0
        %1242 = vmatprep.subr.mxu0 0.0
        %1243 = vmatpush1.msra.mxu0 0.0
        %1244 = vmatprep.subr.mxu0 0.0
        %1245 = vmatpush1.msra.mxu0 0.0
        %1246 = vmatprep.subr.mxu0 0.0
        %1247 = vmatpush1.msra.mxu0 0.0
        %1248 = vmatprep.mubr.f32.mxu0 0.0
        %v1249 = vand.u32 %v744, 4294901760
        %1250 = vmatmul.mubr.f32.gmra.mrb[0].mxu0 %v1249
        %v1251 = vpop.f32.mrb[0].mxu0
        %v1252 = vadd.f32 %v1171, %v1251
        %v1253 = vpop.f32.mrb[0].mxu0
        %v1254 = vadd.f32 %v1173, %v1253
        %1255 = vmatprep.mubr.f32.mxu0 0.0
        %v1256 = vand.u32 %v747, 4294901760
        %1257 = vmatmul.mubr.f32.gmra.mrb[0].mxu0 %v1256
        %v1258 = vpop.f32.mrb[0].mxu0
        %v1259 = vadd.f32 %v1178, %v1258
        %v1260 = vpop.f32.mrb[0].mxu0
        %v1261 = vadd.f32 %v1180, %v1260
        %1262 = vdwg.mxu0
        %v1263 = vld [vmem:[%s2] sm:$0xff]
        %v1264 = vld [vmem:[%s2 + $0x8] sm:$0xff]
        %1266 = vset.pattern.permute.xlu0 0
        %1267 = vperm.xlu0 %1266, %v1263
        %v1268 = vpop.permute.xlu0 %1267
        %1271 = vset.pattern.permute.xlu0 0
        %1272 = vperm.xlu0 %1271, %v1264
        %v1273 = vpop.permute.xlu0 %1272
        %v1275 = vmul.f32 %v1252, %v1268
        %v1276 = vmul.f32 %v1254, %v1268
        %v1277 = vmul.f32 %v1259, %v1273
        %v1278 = vmul.f32 %v1261, %v1273
        %v1279 = vld [vmem:[%s3] sm:$0xff]
        %v1280 = vld [vmem:[%s3 + $0x8] sm:$0xff]
        %1282 = vset.pattern.permute.xlu0 0
        %1283 = vperm.xlu0 %1282, %v1279
        %v1284 = vpop.permute.xlu0 %1283
        %1287 = vset.pattern.permute.xlu0 0
        %1288 = vperm.xlu0 %1287, %v1280
        %v1289 = vpop.permute.xlu0 %1288
        %v1291 = vadd.f32 %v1275, %v1284
        %v1292 = vadd.f32 %v1276, %v1284
        %v1293 = vadd.f32 %v1277, %v1289
        %v1294 = vadd.f32 %v1278, %v1289
        %v1295 = vmax.f32 %v1291, 0.0
        %v1296 = vmax.f32 %v1292, 0.0
        %v1297 = vmax.f32 %v1293, 0.0
        %v1298 = vmax.f32 %v1294, 0.0
        %1299 = vrot.lane.b32.xlu0 %v1295, 1
        %v1300 = vpop.permute.xlu0 %1299
        %1301 = vrot.lane.b32.xlu0 %v1297, 1
        %v1302 = vpop.permute.xlu0 %1301
        %1303 = vrot.lane.b32.xlu0 %v1296, 1
        %v1304 = vpop.permute.xlu0 %1303
        %1305 = vrot.lane.b32.xlu0 %v1298, 1
        %v1306 = vpop.permute.xlu0 %1305
        %vm1307 = vcmp.lt.s32.totalorder %v710, 1
        %v1308 = vsel %vm1307, %v1300, %v1304
        %v1309 = vsel %vm1307, %v1302, %v1306
        %v1310 = vsel %vm1307, %v1304, %v1300
        %v1311 = vsel %vm1307, %v1306, %v1302
        %v1312 = vmul.f32 %v1310, %v718
        %v1313 = vmul.f32 %v1308, %v719
        %v1314 = vmul.f32 %v1311, %v718
        %v1315 = vmul.f32 %v1309, %v719
        %1316 = vrot.lane.b32.xlu0 %v1295, 127
        %v1317 = vpop.permute.xlu0 %1316
        %1318 = vrot.lane.b32.xlu0 %v1297, 127
        %v1319 = vpop.permute.xlu0 %1318
        %1320 = vrot.lane.b32.xlu0 %v1296, 127
        %v1321 = vpop.permute.xlu0 %1320
        %1322 = vrot.lane.b32.xlu0 %v1298, 127
        %v1323 = vpop.permute.xlu0 %1322
        %vm1324 = vcmp.lt.s32.totalorder %v710, 127
        %v1325 = vsel %vm1324, %v1317, %v1321
        %v1326 = vsel %vm1324, %v1319, %v1323
        %v1327 = vsel %vm1324, %v1321, %v1317
        %v1328 = vsel %vm1324, %v1323, %v1319
        %v1329 = vmul.f32 %v1325, %v724
        %v1330 = vmul.f32 %v1327, %v725
        %v1331 = vmul.f32 %v1326, %v724
        %v1332 = vmul.f32 %v1328, %v725
        %1333 = vrot.lane.b32.xlu0 %v1312, 16
        %v1334 = vpop.permute.xlu0 %1333
        %1335 = vrot.lane.b32.xlu0 %v1314, 16
        %v1336 = vpop.permute.xlu0 %1335
        %1337 = vrot.lane.b32.xlu0 %v1313, 16
        %v1338 = vpop.permute.xlu0 %1337
        %1339 = vrot.lane.b32.xlu0 %v1315, 16
        %v1340 = vpop.permute.xlu0 %1339
        %vm1341 = vcmp.lt.s32.totalorder %v710, 16
        %v1342 = vsel %vm1341, %v1334, %v1338
        %v1343 = vsel %vm1341, %v1336, %v1340
        %v1344 = vsel %vm1341, %v1338, %v1334
        %v1345 = vsel %vm1341, %v1340, %v1336
        %v1346 = vmul.f32 %v1344, %v730
        %v1347 = vmul.f32 %v1342, %v731
        %v1348 = vmul.f32 %v1345, %v730
        %v1349 = vmul.f32 %v1343, %v731
        %v1350 = vld [vmem:[%s4] sm:$0xff]
        %v1351 = vld [vmem:[%s4 + $0x8] sm:$0xff]
        %1353 = vset.pattern.permute.xlu0 0
        %1354 = vperm.xlu0 %1353, %v1350
        %v1355 = vpop.permute.xlu0 %1354
        %1358 = vset.pattern.permute.xlu0 0
        %1359 = vperm.xlu0 %1358, %v1351
        %v1360 = vpop.permute.xlu0 %1359
        %v1362 = vmul.f32 %v1346, %v1355
        %v1363 = vmul.f32 %v1347, %v1355
        %v1364 = vmul.f32 %v1348, %v1360
        %v1365 = vmul.f32 %v1349, %v1360
        %1366 = vrot.lane.b32.xlu0 %v1295, 16
        %v1367 = vpop.permute.xlu0 %1366
        %1368 = vrot.lane.b32.xlu0 %v1297, 16
        %v1369 = vpop.permute.xlu0 %1368
        %1370 = vrot.lane.b32.xlu0 %v1296, 16
        %v1371 = vpop.permute.xlu0 %1370
        %1372 = vrot.lane.b32.xlu0 %v1298, 16
        %v1373 = vpop.permute.xlu0 %1372
        %v1374 = vsel %vm1341, %v1367, %v1371
        %v1375 = vsel %vm1341, %v1369, %v1373
        %v1376 = vsel %vm1341, %v1371, %v1367
        %v1377 = vsel %vm1341, %v1373, %v1369
        %v1378 = vmul.f32 %v1376, %v730
        %v1379 = vmul.f32 %v1374, %v731
        %v1380 = vmul.f32 %v1377, %v730
        %v1381 = vmul.f32 %v1375, %v731
        %s1382 = scalar_lea.vmem %s4, 16
        %v1383 = vld [vmem:[%s1382] sm:$0xff]
        %v1384 = vld [vmem:[%s1382 + $0x8] sm:$0xff]
        %1386 = vset.pattern.permute.xlu0 0
        %1387 = vperm.xlu0 %1386, %v1383
        %v1388 = vpop.permute.xlu0 %1387
        %1391 = vset.pattern.permute.xlu0 0
        %1392 = vperm.xlu0 %1391, %v1384
        %v1393 = vpop.permute.xlu0 %1392
        %v1395 = vmul.f32 %v1378, %v1388
        %v1396 = vmul.f32 %v1379, %v1388
        %v1397 = vmul.f32 %v1380, %v1393
        %v1398 = vmul.f32 %v1381, %v1393
        %v1399 = vadd.f32 %v1362, %v1395
        %v1400 = vadd.f32 %v1363, %v1396
        %v1401 = vadd.f32 %v1364, %v1397
        %v1402 = vadd.f32 %v1365, %v1398
        %1403 = vrot.lane.b32.xlu0 %v1329, 16
        %v1404 = vpop.permute.xlu0 %1403
        %1405 = vrot.lane.b32.xlu0 %v1331, 16
        %v1406 = vpop.permute.xlu0 %1405
        %1407 = vrot.lane.b32.xlu0 %v1330, 16
        %v1408 = vpop.permute.xlu0 %1407
        %1409 = vrot.lane.b32.xlu0 %v1332, 16
        %v1410 = vpop.permute.xlu0 %1409
        %v1411 = vsel %vm1341, %v1404, %v1408
        %v1412 = vsel %vm1341, %v1406, %v1410
        %v1413 = vsel %vm1341, %v1408, %v1404
        %v1414 = vsel %vm1341, %v1410, %v1406
        %v1415 = vmul.f32 %v1413, %v730
        %v1416 = vmul.f32 %v1411, %v731
        %v1417 = vmul.f32 %v1414, %v730
        %v1418 = vmul.f32 %v1412, %v731
        %s1419 = scalar_lea.vmem %s4, 32
        %v1420 = vld [vmem:[%s1419] sm:$0xff]
        %v1421 = vld [vmem:[%s1419 + $0x8] sm:$0xff]
        %1423 = vset.pattern.permute.xlu0 0
        %1424 = vperm.xlu0 %1423, %v1420
        %v1425 = vpop.permute.xlu0 %1424
        %1428 = vset.pattern.permute.xlu0 0
        %1429 = vperm.xlu0 %1428, %v1421
        %v1430 = vpop.permute.xlu0 %1429
        %v1432 = vmul.f32 %v1415, %v1425
        %v1433 = vmul.f32 %v1416, %v1425
        %v1434 = vmul.f32 %v1417, %v1430
        %v1435 = vmul.f32 %v1418, %v1430
        %v1436 = vadd.f32 %v1399, %v1432
        %v1437 = vadd.f32 %v1400, %v1433
        %v1438 = vadd.f32 %v1401, %v1434
        %v1439 = vadd.f32 %v1402, %v1435
        %s1440 = scalar_lea.vmem %s4, 48
        %v1441 = vld [vmem:[%s1440] sm:$0xff]
        %v1442 = vld [vmem:[%s1440 + $0x8] sm:$0xff]
        %1444 = vset.pattern.permute.xlu0 0
        %1445 = vperm.xlu0 %1444, %v1441
        %v1446 = vpop.permute.xlu0 %1445
        %1449 = vset.pattern.permute.xlu0 0
        %1450 = vperm.xlu0 %1449, %v1442
        %v1451 = vpop.permute.xlu0 %1450
        %v1453 = vmul.f32 %v1312, %v1446
        %v1454 = vmul.f32 %v1313, %v1446
        %v1455 = vmul.f32 %v1314, %v1451
        %v1456 = vmul.f32 %v1315, %v1451
        %v1457 = vadd.f32 %v1436, %v1453
        %v1458 = vadd.f32 %v1437, %v1454
        %v1459 = vadd.f32 %v1438, %v1455
        %v1460 = vadd.f32 %v1439, %v1456
        %s1461 = scalar_lea.vmem %s4, 64
        %v1462 = vld [vmem:[%s1461] sm:$0xff]
        %v1463 = vld [vmem:[%s1461 + $0x8] sm:$0xff]
        %1465 = vset.pattern.permute.xlu0 0
        %1466 = vperm.xlu0 %1465, %v1462
        %v1467 = vpop.permute.xlu0 %1466
        %1470 = vset.pattern.permute.xlu0 0
        %1471 = vperm.xlu0 %1470, %v1463
        %v1472 = vpop.permute.xlu0 %1471
        %v1474 = vmul.f32 %v1295, %v1467
        %v1475 = vmul.f32 %v1296, %v1467
        %v1476 = vmul.f32 %v1297, %v1472
        %v1477 = vmul.f32 %v1298, %v1472
        %v1478 = vadd.f32 %v1457, %v1474
        %v1479 = vadd.f32 %v1458, %v1475
        %v1480 = vadd.f32 %v1459, %v1476
        %v1481 = vadd.f32 %v1460, %v1477
        %s1482 = scalar_lea.vmem %s4, 80
        %v1483 = vld [vmem:[%s1482] sm:$0xff]
        %v1484 = vld [vmem:[%s1482 + $0x8] sm:$0xff]
        %1486 = vset.pattern.permute.xlu0 0
        %1487 = vperm.xlu0 %1486, %v1483
        %v1488 = vpop.permute.xlu0 %1487
        %1491 = vset.pattern.permute.xlu0 0
        %1492 = vperm.xlu0 %1491, %v1484
        %v1493 = vpop.permute.xlu0 %1492
        %v1495 = vmul.f32 %v1329, %v1488
        %v1496 = vmul.f32 %v1330, %v1488
        %v1497 = vmul.f32 %v1331, %v1493
        %v1498 = vmul.f32 %v1332, %v1493
        %v1499 = vadd.f32 %v1478, %v1495
        %v1500 = vadd.f32 %v1479, %v1496
        %v1501 = vadd.f32 %v1480, %v1497
        %v1502 = vadd.f32 %v1481, %v1498
        %1503 = vrot.lane.b32.xlu0 %v1312, 112
        %v1504 = vpop.permute.xlu0 %1503
        %1505 = vrot.lane.b32.xlu0 %v1314, 112
        %v1506 = vpop.permute.xlu0 %1505
        %1507 = vrot.lane.b32.xlu0 %v1313, 112
        %v1508 = vpop.permute.xlu0 %1507
        %1509 = vrot.lane.b32.xlu0 %v1315, 112
        %v1510 = vpop.permute.xlu0 %1509
        %vm1511 = vcmp.lt.s32.totalorder %v710, 112
        %v1512 = vsel %vm1511, %v1504, %v1508
        %v1513 = vsel %vm1511, %v1506, %v1510
        %v1514 = vsel %vm1511, %v1508, %v1504
        %v1515 = vsel %vm1511, %v1510, %v1506
        %v1516 = vmul.f32 %v1512, %v736
        %v1517 = vmul.f32 %v1514, %v737
        %v1518 = vmul.f32 %v1513, %v736
        %v1519 = vmul.f32 %v1515, %v737
        %s1520 = scalar_lea.vmem %s4, 96
        %v1521 = vld [vmem:[%s1520] sm:$0xff]
        %v1522 = vld [vmem:[%s1520 + $0x8] sm:$0xff]
        %1524 = vset.pattern.permute.xlu0 0
        %1525 = vperm.xlu0 %1524, %v1521
        %v1526 = vpop.permute.xlu0 %1525
        %1529 = vset.pattern.permute.xlu0 0
        %1530 = vperm.xlu0 %1529, %v1522
        %v1531 = vpop.permute.xlu0 %1530
        %v1533 = vmul.f32 %v1516, %v1526
        %v1534 = vmul.f32 %v1517, %v1526
        %v1535 = vmul.f32 %v1518, %v1531
        %v1536 = vmul.f32 %v1519, %v1531
        %v1537 = vadd.f32 %v1499, %v1533
        %v1538 = vadd.f32 %v1500, %v1534
        %v1539 = vadd.f32 %v1501, %v1535
        %v1540 = vadd.f32 %v1502, %v1536
        %1541 = vrot.lane.b32.xlu0 %v1295, 112
        %v1542 = vpop.permute.xlu0 %1541
        %1543 = vrot.lane.b32.xlu0 %v1297, 112
        %v1544 = vpop.permute.xlu0 %1543
        %1545 = vrot.lane.b32.xlu0 %v1296, 112
        %v1546 = vpop.permute.xlu0 %1545
        %1547 = vrot.lane.b32.xlu0 %v1298, 112
        %v1548 = vpop.permute.xlu0 %1547
        %v1549 = vsel %vm1511, %v1542, %v1546
        %v1550 = vsel %vm1511, %v1544, %v1548
        %v1551 = vsel %vm1511, %v1546, %v1542
        %v1552 = vsel %vm1511, %v1548, %v1544
        %v1553 = vmul.f32 %v1549, %v736
        %v1554 = vmul.f32 %v1551, %v737
        %v1555 = vmul.f32 %v1550, %v736
        %v1556 = vmul.f32 %v1552, %v737
        %s1557 = scalar_lea.vmem %s4, 112
        %v1558 = vld [vmem:[%s1557] sm:$0xff]
        %v1559 = vld [vmem:[%s1557 + $0x8] sm:$0xff]
        %1561 = vset.pattern.permute.xlu0 0
        %1562 = vperm.xlu0 %1561, %v1558
        %v1563 = vpop.permute.xlu0 %1562
        %1566 = vset.pattern.permute.xlu0 0
        %1567 = vperm.xlu0 %1566, %v1559
        %v1568 = vpop.permute.xlu0 %1567
        %v1570 = vmul.f32 %v1553, %v1563
        %v1571 = vmul.f32 %v1554, %v1563
        %v1572 = vmul.f32 %v1555, %v1568
        %v1573 = vmul.f32 %v1556, %v1568
        %v1574 = vadd.f32 %v1537, %v1570
        %v1575 = vadd.f32 %v1538, %v1571
        %v1576 = vadd.f32 %v1539, %v1572
        %v1577 = vadd.f32 %v1540, %v1573
        %1578 = vrot.lane.b32.xlu0 %v1329, 112
        %v1579 = vpop.permute.xlu0 %1578
        %1580 = vrot.lane.b32.xlu0 %v1331, 112
        %v1581 = vpop.permute.xlu0 %1580
        %1582 = vrot.lane.b32.xlu0 %v1330, 112
        %v1583 = vpop.permute.xlu0 %1582
        %1584 = vrot.lane.b32.xlu0 %v1332, 112
        %v1585 = vpop.permute.xlu0 %1584
        %v1586 = vsel %vm1511, %v1579, %v1583
        %v1587 = vsel %vm1511, %v1581, %v1585
        %v1588 = vsel %vm1511, %v1583, %v1579
        %v1589 = vsel %vm1511, %v1585, %v1581
        %v1590 = vmul.f32 %v1586, %v736
        %v1591 = vmul.f32 %v1588, %v737
        %v1592 = vmul.f32 %v1587, %v736
        %v1593 = vmul.f32 %v1589, %v737
        %s1594 = scalar_lea.vmem %s4, 128
        %v1595 = vld [vmem:[%s1594] sm:$0xff]
        %v1596 = vld [vmem:[%s1594 + $0x8] sm:$0xff]
        %1598 = vset.pattern.permute.xlu0 0
        %1599 = vperm.xlu0 %1598, %v1595
        %v1600 = vpop.permute.xlu0 %1599
        %1603 = vset.pattern.permute.xlu0 0
        %1604 = vperm.xlu0 %1603, %v1596
        %v1605 = vpop.permute.xlu0 %1604
        %v1607 = vmul.f32 %v1590, %v1600
        %v1608 = vmul.f32 %v1591, %v1600
        %v1609 = vmul.f32 %v1592, %v1605
        %v1610 = vmul.f32 %v1593, %v1605
        %v1611 = vadd.f32 %v1574, %v1607
        %v1612 = vadd.f32 %v1575, %v1608
        %v1613 = vadd.f32 %v1576, %v1609
        %v1614 = vadd.f32 %v1577, %v1610
        %v1615 = vld [vmem:[%s5] sm:$0xff]
        %v1616 = vld [vmem:[%s5 + $0x8] sm:$0xff]
        %1618 = vset.pattern.permute.xlu0 0
        %1619 = vperm.xlu0 %1618, %v1615
        %v1620 = vpop.permute.xlu0 %1619
        %1623 = vset.pattern.permute.xlu0 0
        %1624 = vperm.xlu0 %1623, %v1616
        %v1625 = vpop.permute.xlu0 %1624
        %v1627 = vmul.f32 %v1611, %v1620
        %v1628 = vmul.f32 %v1612, %v1620
        %v1629 = vmul.f32 %v1613, %v1625
        %v1630 = vmul.f32 %v1614, %v1625
        %v1631 = vld [vmem:[%s6] sm:$0xff]
        %v1632 = vld [vmem:[%s6 + $0x8] sm:$0xff]
        %1634 = vset.pattern.permute.xlu0 0
        %1635 = vperm.xlu0 %1634, %v1631
        %v1636 = vpop.permute.xlu0 %1635
        %1639 = vset.pattern.permute.xlu0 0
        %1640 = vperm.xlu0 %1639, %v1632
        %v1641 = vpop.permute.xlu0 %1640
        %v1643 = vadd.f32 %v1627, %v1636
        %v1644 = vadd.f32 %v1628, %v1636
        %v1645 = vadd.f32 %v1629, %v1641
        %v1646 = vadd.f32 %v1630, %v1641
        %v1647 = vmax.f32 %v1643, 0.0
        %v1648 = vmax.f32 %v1644, 0.0
        %v1649 = vmax.f32 %v1645, 0.0
        %v1650 = vmax.f32 %v1646, 0.0
        %v1651 = vadd.f32 %v1295, %v1296
        %1652 = vadd.xlane.f32.xlu0 %v1651
        %v1653 = vpop.xlane.xlu0 %1652
        %v1654 = vadd.f32 %v1297, %v1298
        %1655 = vadd.xlane.f32.xlu0 %v1654
        %v1656 = vpop.xlane.xlu0 %1655
        %v1657 = vadd.f32 %v1647, %v1648
        %1658 = vadd.xlane.f32.xlu0 %v1657
        %v1659 = vpop.xlane.xlu0 %1658
        %v1660 = vadd.f32 %v1649, %v1650
        %1661 = vadd.xlane.f32.xlu0 %v1660
        %v1662 = vpop.xlane.xlu0 %1661
        %v1663 = vrcp.pop 256.0
        %v1664 = vmul.f32 %v1653, %v1663
        %v1665 = vmul.f32 %v1656, %v1663
        %v1666 = vmul.f32 %v1659, %v1663
        %v1667 = vmul.f32 %v1662, %v1663
        %v1668 = vld [vmem:[%s7] sm:$0xff]
        %v1669 = vld [vmem:[%s8] sm:$0xff]
        %vm1670 = vcmask 261120
        %v1672 = vsel %vm1670, %v1668, 0
        %1674 = vmatprep.subr.mxu0 0.0
        %v1675 = vand.u32 %v1664, 4294901760
        %1676 = vmatpush1.msra.mxu0 %v1675
        %1677 = vmatprep.subr.mxu0 0.0
        %v1678 = vand.u32 %v1665, 4294901760
        %1679 = vmatpush1.msra.mxu0 %v1678
        %1680 = vmatprep.subr.mxu0 0.0
        %v1681 = vand.u32 %v1666, 4294901760
        %1682 = vmatpush1.msra.mxu0 %v1681
        %1683 = vmatprep.subr.mxu0 0.0
        %v1684 = vand.u32 %v1667, 4294901760
        %1685 = vmatpush1.msra.mxu0 %v1684
        %1686 = vmatprep.subr.mxu0 0.0
        %1687 = vmatpush1.msra.mxu0 0.0
        %1688 = vmatprep.subr.mxu0 0.0
        %1689 = vmatpush1.msra.mxu0 0.0
        %1690 = vmatprep.subr.mxu0 0.0
        %1691 = vmatpush1.msra.mxu0 0.0
        %1692 = vmatprep.subr.mxu0 0.0
        %1693 = vmatpush1.msra.mxu0 0.0
        %1694 = vmatprep.subr.mxu0 0.0
        %1695 = vmatpush1.msra.mxu0 0.0
        %1696 = vmatprep.subr.mxu0 0.0
        %1697 = vmatpush1.msra.mxu0 0.0
        %1698 = vmatprep.subr.mxu0 0.0
        %1699 = vmatpush1.msra.mxu0 0.0
        %1700 = vmatprep.subr.mxu0 0.0
        %1701 = vmatpush1.msra.mxu0 0.0
        %1702 = vmatprep.subr.mxu0 0.0
        %1703 = vmatpush1.msra.mxu0 0.0
        %1704 = vmatprep.subr.mxu0 0.0
        %1705 = vmatpush1.msra.mxu0 0.0
        %1706 = vmatprep.subr.mxu0 0.0
        %1707 = vmatpush1.msra.mxu0 0.0
        %1708 = vmatprep.subr.mxu0 0.0
        %1709 = vmatpush1.msra.mxu0 0.0
        %1710 = vmatprep.subr.mxu0 0.0
        %1711 = vmatpush1.msra.mxu0 0.0
        %1712 = vmatprep.subr.mxu0 0.0
        %1713 = vmatpush1.msra.mxu0 0.0
        %1714 = vmatprep.subr.mxu0 0.0
        %1715 = vmatpush1.msra.mxu0 0.0
        %1716 = vmatprep.subr.mxu0 0.0
        %1717 = vmatpush1.msra.mxu0 0.0
        %1718 = vmatprep.subr.mxu0 0.0
        %1719 = vmatpush1.msra.mxu0 0.0
        %1720 = vmatprep.subr.mxu0 0.0
        %1721 = vmatpush1.msra.mxu0 0.0
        %1722 = vmatprep.subr.mxu0 0.0
        %1723 = vmatpush1.msra.mxu0 0.0
        %1724 = vmatprep.subr.mxu0 0.0
        %1725 = vmatpush1.msra.mxu0 0.0
        %1726 = vmatprep.subr.mxu0 0.0
        %1727 = vmatpush1.msra.mxu0 0.0
        %1728 = vmatprep.subr.mxu0 0.0
        %1729 = vmatpush1.msra.mxu0 0.0
        %1730 = vmatprep.subr.mxu0 0.0
        %1731 = vmatpush1.msra.mxu0 0.0
        %1732 = vmatprep.subr.mxu0 0.0
        %1733 = vmatpush1.msra.mxu0 0.0
        %1734 = vmatprep.subr.mxu0 0.0
        %1735 = vmatpush1.msra.mxu0 0.0
        %1736 = vmatprep.subr.mxu0 0.0
        %1737 = vmatpush1.msra.mxu0 0.0
        %1738 = vmatprep.subr.mxu0 0.0
        %1739 = vmatpush1.msra.mxu0 0.0
        %1740 = vmatprep.subr.mxu0 0.0
        %1741 = vmatpush1.msra.mxu0 0.0
        %1742 = vmatprep.mubr.f32.mxu0 0.0
        %v1743 = vand.u32 %v1672, 4294901760
        %v1744 = vsub.f32 %v1672, %v1743
        %v1745 = vand.u32 %v1744, 4294901760
        %v1746 = vsub.f32 %v1744, %v1745
        %v1747 = vand.u32 %v1746, 4294901760
        %1748 = vmatmul.mubr.f32.gmra.mrb[0].mxu0 %v1747
        %v1749 = vpop.f32.mrb[0].mxu0
        %v1750 = vadd.f32 %v1669, %v1749
        %v1751 = vpop.f32.mrb[0].mxu0
        %1752 = vdwg.mxu0
        %1753 = vmatprep.subr.mxu0 0.0
        %v1754 = vand.u32 %v1664, 4294901760
        %v1755 = vsub.f32 %v1664, %v1754
        %v1756 = vand.u32 %v1755, 4294901760
        %v1757 = vsub.f32 %v1755, %v1756
        %v1758 = vand.u32 %v1757, 4294901760
        %1759 = vmatpush1.msra.mxu0 %v1758
        %1760 = vmatprep.subr.mxu0 0.0
        %v1761 = vand.u32 %v1665, 4294901760
        %v1762 = vsub.f32 %v1665, %v1761
        %v1763 = vand.u32 %v1762, 4294901760
        %v1764 = vsub.f32 %v1762, %v1763
        %v1765 = vand.u32 %v1764, 4294901760
        %1766 = vmatpush1.msra.mxu0 %v1765
        %1767 = vmatprep.subr.mxu0 0.0
        %v1768 = vand.u32 %v1666, 4294901760
        %v1769 = vsub.f32 %v1666, %v1768
        %v1770 = vand.u32 %v1769, 4294901760
        %v1771 = vsub.f32 %v1769, %v1770
        %v1772 = vand.u32 %v1771, 4294901760
        %1773 = vmatpush1.msra.mxu0 %v1772
        %1774 = vmatprep.subr.mxu0 0.0
        %v1775 = vand.u32 %v1667, 4294901760
        %v1776 = vsub.f32 %v1667, %v1775
        %v1777 = vand.u32 %v1776, 4294901760
        %v1778 = vsub.f32 %v1776, %v1777
        %v1779 = vand.u32 %v1778, 4294901760
        %1780 = vmatpush1.msra.mxu0 %v1779
        %1781 = vmatprep.subr.mxu0 0.0
        %1782 = vmatpush1.msra.mxu0 0.0
        %1783 = vmatprep.subr.mxu0 0.0
        %1784 = vmatpush1.msra.mxu0 0.0
        %1785 = vmatprep.subr.mxu0 0.0
        %1786 = vmatpush1.msra.mxu0 0.0
        %1787 = vmatprep.subr.mxu0 0.0
        %1788 = vmatpush1.msra.mxu0 0.0
        %1789 = vmatprep.subr.mxu0 0.0
        %1790 = vmatpush1.msra.mxu0 0.0
        %1791 = vmatprep.subr.mxu0 0.0
        %1792 = vmatpush1.msra.mxu0 0.0
        %1793 = vmatprep.subr.mxu0 0.0
        %1794 = vmatpush1.msra.mxu0 0.0
        %1795 = vmatprep.subr.mxu0 0.0
        %1796 = vmatpush1.msra.mxu0 0.0
        %1797 = vmatprep.subr.mxu0 0.0
        %1798 = vmatpush1.msra.mxu0 0.0
        %1799 = vmatprep.subr.mxu0 0.0
        %1800 = vmatpush1.msra.mxu0 0.0
        %1801 = vmatprep.subr.mxu0 0.0
        %1802 = vmatpush1.msra.mxu0 0.0
        %1803 = vmatprep.subr.mxu0 0.0
        %1804 = vmatpush1.msra.mxu0 0.0
        %1805 = vmatprep.subr.mxu0 0.0
        %1806 = vmatpush1.msra.mxu0 0.0
        %1807 = vmatprep.subr.mxu0 0.0
        %1808 = vmatpush1.msra.mxu0 0.0
        %1809 = vmatprep.subr.mxu0 0.0
        %1810 = vmatpush1.msra.mxu0 0.0
        %1811 = vmatprep.subr.mxu0 0.0
        %1812 = vmatpush1.msra.mxu0 0.0
        %1813 = vmatprep.subr.mxu0 0.0
        %1814 = vmatpush1.msra.mxu0 0.0
        %1815 = vmatprep.subr.mxu0 0.0
        %1816 = vmatpush1.msra.mxu0 0.0
        %1817 = vmatprep.subr.mxu0 0.0
        %1818 = vmatpush1.msra.mxu0 0.0
        %1819 = vmatprep.subr.mxu0 0.0
        %1820 = vmatpush1.msra.mxu0 0.0
        %1821 = vmatprep.subr.mxu0 0.0
        %1822 = vmatpush1.msra.mxu0 0.0
        %1823 = vmatprep.subr.mxu0 0.0
        %1824 = vmatpush1.msra.mxu0 0.0
        %1825 = vmatprep.subr.mxu0 0.0
        %1826 = vmatpush1.msra.mxu0 0.0
        %1827 = vmatprep.subr.mxu0 0.0
        %1828 = vmatpush1.msra.mxu0 0.0
        %1829 = vmatprep.subr.mxu0 0.0
        %1830 = vmatpush1.msra.mxu0 0.0
        %1831 = vmatprep.subr.mxu0 0.0
        %1832 = vmatpush1.msra.mxu0 0.0
        %1833 = vmatprep.subr.mxu0 0.0
        %1834 = vmatpush1.msra.mxu0 0.0
        %1835 = vmatprep.subr.mxu0 0.0
        %1836 = vmatpush1.msra.mxu0 0.0
        %1837 = vmatprep.mubr.f32.mxu0 0.0
        %v1838 = vand.u32 %v1672, 4294901760
        %1839 = vmatmul.mubr.f32.gmra.mrb[0].mxu0 %v1838
        %v1840 = vpop.f32.mrb[0].mxu0
        %v1841 = vadd.f32 %v1750, %v1840
        %v1842 = vpop.f32.mrb[0].mxu0
        %1843 = vdwg.mxu0
        %1844 = vmatprep.subr.mxu0 0.0
        %v1845 = vand.u32 %v1664, 4294901760
        %v1846 = vsub.f32 %v1664, %v1845
        %1847 = vmatpush1.msra.mxu0 %v1846
        %1848 = vmatprep.subr.mxu0 0.0
        %v1849 = vand.u32 %v1665, 4294901760
        %v1850 = vsub.f32 %v1665, %v1849
        %1851 = vmatpush1.msra.mxu0 %v1850
        %1852 = vmatprep.subr.mxu0 0.0
        %v1853 = vand.u32 %v1666, 4294901760
        %v1854 = vsub.f32 %v1666, %v1853
        %1855 = vmatpush1.msra.mxu0 %v1854
        %1856 = vmatprep.subr.mxu0 0.0
        %v1857 = vand.u32 %v1667, 4294901760
        %v1858 = vsub.f32 %v1667, %v1857
        %1859 = vmatpush1.msra.mxu0 %v1858
        %1860 = vmatprep.subr.mxu0 0.0
        %1861 = vmatpush1.msra.mxu0 0.0
        %1862 = vmatprep.subr.mxu0 0.0
        %1863 = vmatpush1.msra.mxu0 0.0
        %1864 = vmatprep.subr.mxu0 0.0
        %1865 = vmatpush1.msra.mxu0 0.0
        %1866 = vmatprep.subr.mxu0 0.0
        %1867 = vmatpush1.msra.mxu0 0.0
        %1868 = vmatprep.subr.mxu0 0.0
        %1869 = vmatpush1.msra.mxu0 0.0
        %1870 = vmatprep.subr.mxu0 0.0
        %1871 = vmatpush1.msra.mxu0 0.0
        %1872 = vmatprep.subr.mxu0 0.0
        %1873 = vmatpush1.msra.mxu0 0.0
        %1874 = vmatprep.subr.mxu0 0.0
        %1875 = vmatpush1.msra.mxu0 0.0
        %1876 = vmatprep.subr.mxu0 0.0
        %1877 = vmatpush1.msra.mxu0 0.0
        %1878 = vmatprep.subr.mxu0 0.0
        %1879 = vmatpush1.msra.mxu0 0.0
        %1880 = vmatprep.subr.mxu0 0.0
        %1881 = vmatpush1.msra.mxu0 0.0
        %1882 = vmatprep.subr.mxu0 0.0
        %1883 = vmatpush1.msra.mxu0 0.0
        %1884 = vmatprep.subr.mxu0 0.0
        %1885 = vmatpush1.msra.mxu0 0.0
        %1886 = vmatprep.subr.mxu0 0.0
        %1887 = vmatpush1.msra.mxu0 0.0
        %1888 = vmatprep.subr.mxu0 0.0
        %1889 = vmatpush1.msra.mxu0 0.0
        %1890 = vmatprep.subr.mxu0 0.0
        %1891 = vmatpush1.msra.mxu0 0.0
        %1892 = vmatprep.subr.mxu0 0.0
        %1893 = vmatpush1.msra.mxu0 0.0
        %1894 = vmatprep.subr.mxu0 0.0
        %1895 = vmatpush1.msra.mxu0 0.0
        %1896 = vmatprep.subr.mxu0 0.0
        %1897 = vmatpush1.msra.mxu0 0.0
        %1898 = vmatprep.subr.mxu0 0.0
        %1899 = vmatpush1.msra.mxu0 0.0
        %1900 = vmatprep.subr.mxu0 0.0
        %1901 = vmatpush1.msra.mxu0 0.0
        %1902 = vmatprep.subr.mxu0 0.0
        %1903 = vmatpush1.msra.mxu0 0.0
        %1904 = vmatprep.subr.mxu0 0.0
        %1905 = vmatpush1.msra.mxu0 0.0
        %1906 = vmatprep.subr.mxu0 0.0
        %1907 = vmatpush1.msra.mxu0 0.0
        %1908 = vmatprep.subr.mxu0 0.0
        %1909 = vmatpush1.msra.mxu0 0.0
        %1910 = vmatprep.subr.mxu0 0.0
        %1911 = vmatpush1.msra.mxu0 0.0
        %1912 = vmatprep.subr.mxu0 0.0
        %1913 = vmatpush1.msra.mxu0 0.0
        %1914 = vmatprep.subr.mxu0 0.0
        %1915 = vmatpush1.msra.mxu0 0.0
        %1916 = vmatprep.mubr.f32.mxu0 0.0
        %v1917 = vand.u32 %v1672, 4294901760
        %v1918 = vsub.f32 %v1672, %v1917
        %1919 = vmatmul.mubr.f32.gmra.mrb[0].mxu0 %v1918
        %v1920 = vpop.f32.mrb[0].mxu0
        %v1921 = vadd.f32 %v1841, %v1920
        %v1922 = vpop.f32.mrb[0].mxu0
        %1923 = vdwg.mxu0
        %1924 = vmatprep.subr.mxu0 0.0
        %v1925 = vand.u32 %v1664, 4294901760
        %1926 = vmatpush1.msra.mxu0 %v1925
        %1927 = vmatprep.subr.mxu0 0.0
        %v1928 = vand.u32 %v1665, 4294901760
        %1929 = vmatpush1.msra.mxu0 %v1928
        %1930 = vmatprep.subr.mxu0 0.0
        %v1931 = vand.u32 %v1666, 4294901760
        %1932 = vmatpush1.msra.mxu0 %v1931
        %1933 = vmatprep.subr.mxu0 0.0
        %v1934 = vand.u32 %v1667, 4294901760
        %1935 = vmatpush1.msra.mxu0 %v1934
        %1936 = vmatprep.subr.mxu0 0.0
        %1937 = vmatpush1.msra.mxu0 0.0
        %1938 = vmatprep.subr.mxu0 0.0
        %1939 = vmatpush1.msra.mxu0 0.0
        %1940 = vmatprep.subr.mxu0 0.0
        %1941 = vmatpush1.msra.mxu0 0.0
        %1942 = vmatprep.subr.mxu0 0.0
        %1943 = vmatpush1.msra.mxu0 0.0
        %1944 = vmatprep.subr.mxu0 0.0
        %1945 = vmatpush1.msra.mxu0 0.0
        %1946 = vmatprep.subr.mxu0 0.0
        %1947 = vmatpush1.msra.mxu0 0.0
        %1948 = vmatprep.subr.mxu0 0.0
        %1949 = vmatpush1.msra.mxu0 0.0
        %1950 = vmatprep.subr.mxu0 0.0
        %1951 = vmatpush1.msra.mxu0 0.0
        %1952 = vmatprep.subr.mxu0 0.0
        %1953 = vmatpush1.msra.mxu0 0.0
        %1954 = vmatprep.subr.mxu0 0.0
        %1955 = vmatpush1.msra.mxu0 0.0
        %1956 = vmatprep.subr.mxu0 0.0
        %1957 = vmatpush1.msra.mxu0 0.0
        %1958 = vmatprep.subr.mxu0 0.0
        %1959 = vmatpush1.msra.mxu0 0.0
        %1960 = vmatprep.subr.mxu0 0.0
        %1961 = vmatpush1.msra.mxu0 0.0
        %1962 = vmatprep.subr.mxu0 0.0
        %1963 = vmatpush1.msra.mxu0 0.0
        %1964 = vmatprep.subr.mxu0 0.0
        %1965 = vmatpush1.msra.mxu0 0.0
        %1966 = vmatprep.subr.mxu0 0.0
        %1967 = vmatpush1.msra.mxu0 0.0
        %1968 = vmatprep.subr.mxu0 0.0
        %1969 = vmatpush1.msra.mxu0 0.0
        %1970 = vmatprep.subr.mxu0 0.0
        %1971 = vmatpush1.msra.mxu0 0.0
        %1972 = vmatprep.subr.mxu0 0.0
        %1973 = vmatpush1.msra.mxu0 0.0
        %1974 = vmatprep.subr.mxu0 0.0
        %1975 = vmatpush1.msra.mxu0 0.0
        %1976 = vmatprep.subr.mxu0 0.0
        %1977 = vmatpush1.msra.mxu0 0.0
        %1978 = vmatprep.subr.mxu0 0.0
        %1979 = vmatpush1.msra.mxu0 0.0
        %1980 = vmatprep.subr.mxu0 0.0
        %1981 = vmatpush1.msra.mxu0 0.0
        %1982 = vmatprep.subr.mxu0 0.0
        %1983 = vmatpush1.msra.mxu0 0.0
        %1984 = vmatprep.subr.mxu0 0.0
        %1985 = vmatpush1.msra.mxu0 0.0
        %1986 = vmatprep.subr.mxu0 0.0
        %1987 = vmatpush1.msra.mxu0 0.0
        %1988 = vmatprep.subr.mxu0 0.0
        %1989 = vmatpush1.msra.mxu0 0.0
        %1990 = vmatprep.subr.mxu0 0.0
        %1991 = vmatpush1.msra.mxu0 0.0
        %1992 = vmatprep.mubr.f32.mxu0 0.0
        %v1993 = vand.u32 %v1672, 4294901760
        %v1994 = vsub.f32 %v1672, %v1993
        %v1995 = vand.u32 %v1994, 4294901760
        %1996 = vmatmul.mubr.f32.gmra.mrb[0].mxu0 %v1995
        %v1997 = vpop.f32.mrb[0].mxu0
        %v1998 = vadd.f32 %v1921, %v1997
        %v1999 = vpop.f32.mrb[0].mxu0
        %2000 = vdwg.mxu0
        %2001 = vmatprep.subr.mxu0 0.0
        %v2002 = vand.u32 %v1664, 4294901760
        %v2003 = vsub.f32 %v1664, %v2002
        %v2004 = vand.u32 %v2003, 4294901760
        %2005 = vmatpush1.msra.mxu0 %v2004
        %2006 = vmatprep.subr.mxu0 0.0
        %v2007 = vand.u32 %v1665, 4294901760
        %v2008 = vsub.f32 %v1665, %v2007
        %v2009 = vand.u32 %v2008, 4294901760
        %2010 = vmatpush1.msra.mxu0 %v2009
        %2011 = vmatprep.subr.mxu0 0.0
        %v2012 = vand.u32 %v1666, 4294901760
        %v2013 = vsub.f32 %v1666, %v2012
        %v2014 = vand.u32 %v2013, 4294901760
        %2015 = vmatpush1.msra.mxu0 %v2014
        %2016 = vmatprep.subr.mxu0 0.0
        %v2017 = vand.u32 %v1667, 4294901760
        %v2018 = vsub.f32 %v1667, %v2017
        %v2019 = vand.u32 %v2018, 4294901760
        %2020 = vmatpush1.msra.mxu0 %v2019
        %2021 = vmatprep.subr.mxu0 0.0
        %2022 = vmatpush1.msra.mxu0 0.0
        %2023 = vmatprep.subr.mxu0 0.0
        %2024 = vmatpush1.msra.mxu0 0.0
        %2025 = vmatprep.subr.mxu0 0.0
        %2026 = vmatpush1.msra.mxu0 0.0
        %2027 = vmatprep.subr.mxu0 0.0
        %2028 = vmatpush1.msra.mxu0 0.0
        %2029 = vmatprep.subr.mxu0 0.0
        %2030 = vmatpush1.msra.mxu0 0.0
        %2031 = vmatprep.subr.mxu0 0.0
        %2032 = vmatpush1.msra.mxu0 0.0
        %2033 = vmatprep.subr.mxu0 0.0
        %2034 = vmatpush1.msra.mxu0 0.0
        %2035 = vmatprep.subr.mxu0 0.0
        %2036 = vmatpush1.msra.mxu0 0.0
        %2037 = vmatprep.subr.mxu0 0.0
        %2038 = vmatpush1.msra.mxu0 0.0
        %2039 = vmatprep.subr.mxu0 0.0
        %2040 = vmatpush1.msra.mxu0 0.0
        %2041 = vmatprep.subr.mxu0 0.0
        %2042 = vmatpush1.msra.mxu0 0.0
        %2043 = vmatprep.subr.mxu0 0.0
        %2044 = vmatpush1.msra.mxu0 0.0
        %2045 = vmatprep.subr.mxu0 0.0
        %2046 = vmatpush1.msra.mxu0 0.0
        %2047 = vmatprep.subr.mxu0 0.0
        %2048 = vmatpush1.msra.mxu0 0.0
        %2049 = vmatprep.subr.mxu0 0.0
        %2050 = vmatpush1.msra.mxu0 0.0
        %2051 = vmatprep.subr.mxu0 0.0
        %2052 = vmatpush1.msra.mxu0 0.0
        %2053 = vmatprep.subr.mxu0 0.0
        %2054 = vmatpush1.msra.mxu0 0.0
        %2055 = vmatprep.subr.mxu0 0.0
        %2056 = vmatpush1.msra.mxu0 0.0
        %2057 = vmatprep.subr.mxu0 0.0
        %2058 = vmatpush1.msra.mxu0 0.0
        %2059 = vmatprep.subr.mxu0 0.0
        %2060 = vmatpush1.msra.mxu0 0.0
        %2061 = vmatprep.subr.mxu0 0.0
        %2062 = vmatpush1.msra.mxu0 0.0
        %2063 = vmatprep.subr.mxu0 0.0
        %2064 = vmatpush1.msra.mxu0 0.0
        %2065 = vmatprep.subr.mxu0 0.0
        %2066 = vmatpush1.msra.mxu0 0.0
        %2067 = vmatprep.subr.mxu0 0.0
        %2068 = vmatpush1.msra.mxu0 0.0
        %2069 = vmatprep.subr.mxu0 0.0
        %2070 = vmatpush1.msra.mxu0 0.0
        %2071 = vmatprep.subr.mxu0 0.0
        %2072 = vmatpush1.msra.mxu0 0.0
        %2073 = vmatprep.subr.mxu0 0.0
        %2074 = vmatpush1.msra.mxu0 0.0
        %2075 = vmatprep.subr.mxu0 0.0
        %2076 = vmatpush1.msra.mxu0 0.0
        %2077 = vmatprep.mubr.f32.mxu0 0.0
        %v2078 = vand.u32 %v1672, 4294901760
        %2079 = vmatmul.mubr.f32.gmra.mrb[0].mxu0 %v2078
        %v2080 = vpop.f32.mrb[0].mxu0
        %v2081 = vadd.f32 %v1998, %v2080
        %v2082 = vpop.f32.mrb[0].mxu0
        %2083 = vdwg.mxu0
        %2084 = vmatprep.subr.mxu0 0.0
        %v2085 = vand.u32 %v1664, 4294901760
        %2086 = vmatpush1.msra.mxu0 %v2085
        %2087 = vmatprep.subr.mxu0 0.0
        %v2088 = vand.u32 %v1665, 4294901760
        %2089 = vmatpush1.msra.mxu0 %v2088
        %2090 = vmatprep.subr.mxu0 0.0
        %v2091 = vand.u32 %v1666, 4294901760
        %2092 = vmatpush1.msra.mxu0 %v2091
        %2093 = vmatprep.subr.mxu0 0.0
        %v2094 = vand.u32 %v1667, 4294901760
        %2095 = vmatpush1.msra.mxu0 %v2094
        %2096 = vmatprep.subr.mxu0 0.0
        %2097 = vmatpush1.msra.mxu0 0.0
        %2098 = vmatprep.subr.mxu0 0.0
        %2099 = vmatpush1.msra.mxu0 0.0
        %2100 = vmatprep.subr.mxu0 0.0
        %2101 = vmatpush1.msra.mxu0 0.0
        %2102 = vmatprep.subr.mxu0 0.0
        %2103 = vmatpush1.msra.mxu0 0.0
        %2104 = vmatprep.subr.mxu0 0.0
        %2105 = vmatpush1.msra.mxu0 0.0
        %2106 = vmatprep.subr.mxu0 0.0
        %2107 = vmatpush1.msra.mxu0 0.0
        %2108 = vmatprep.subr.mxu0 0.0
        %2109 = vmatpush1.msra.mxu0 0.0
        %2110 = vmatprep.subr.mxu0 0.0
        %2111 = vmatpush1.msra.mxu0 0.0
        %2112 = vmatprep.subr.mxu0 0.0
        %2113 = vmatpush1.msra.mxu0 0.0
        %2114 = vmatprep.subr.mxu0 0.0
        %2115 = vmatpush1.msra.mxu0 0.0
        %2116 = vmatprep.subr.mxu0 0.0
        %2117 = vmatpush1.msra.mxu0 0.0
        %2118 = vmatprep.subr.mxu0 0.0
        %2119 = vmatpush1.msra.mxu0 0.0
        %2120 = vmatprep.subr.mxu0 0.0
        %2121 = vmatpush1.msra.mxu0 0.0
        %2122 = vmatprep.subr.mxu0 0.0
        %2123 = vmatpush1.msra.mxu0 0.0
        %2124 = vmatprep.subr.mxu0 0.0
        %2125 = vmatpush1.msra.mxu0 0.0
        %2126 = vmatprep.subr.mxu0 0.0
        %2127 = vmatpush1.msra.mxu0 0.0
        %2128 = vmatprep.subr.mxu0 0.0
        %2129 = vmatpush1.msra.mxu0 0.0
        %2130 = vmatprep.subr.mxu0 0.0
        %2131 = vmatpush1.msra.mxu0 0.0
        %2132 = vmatprep.subr.mxu0 0.0
        %2133 = vmatpush1.msra.mxu0 0.0
        %2134 = vmatprep.subr.mxu0 0.0
        %2135 = vmatpush1.msra.mxu0 0.0
        %2136 = vmatprep.subr.mxu0 0.0
        %2137 = vmatpush1.msra.mxu0 0.0
        %2138 = vmatprep.subr.mxu0 0.0
        %2139 = vmatpush1.msra.mxu0 0.0
        %2140 = vmatprep.subr.mxu0 0.0
        %2141 = vmatpush1.msra.mxu0 0.0
        %2142 = vmatprep.subr.mxu0 0.0
        %2143 = vmatpush1.msra.mxu0 0.0
        %2144 = vmatprep.subr.mxu0 0.0
        %2145 = vmatpush1.msra.mxu0 0.0
        %2146 = vmatprep.subr.mxu0 0.0
        %2147 = vmatpush1.msra.mxu0 0.0
        %2148 = vmatprep.subr.mxu0 0.0
        %2149 = vmatpush1.msra.mxu0 0.0
        %2150 = vmatprep.subr.mxu0 0.0
        %2151 = vmatpush1.msra.mxu0 0.0
        %2152 = vmatprep.mubr.f32.mxu0 0.0
        %v2153 = vand.u32 %v1672, 4294901760
        %2154 = vmatmul.mubr.f32.gmra.mrb[0].mxu0 %v2153
        %v2155 = vpop.f32.mrb[0].mxu0
        %v2156 = vadd.f32 %v2081, %v2155
        %v2157 = vpop.f32.mrb[0].mxu0
        %2158 = vdwg.mxu0
        %v2159 = vmax.f32 %v2156, 0.0
        %v2160 = vld [vmem:[%s9] sm:$0xff]
        %v2161 = vld [vmem:[%s9 + $0x8] sm:$0xff]
        %v2162 = vld [vmem:[%s9 + $0x10] sm:$0xff]
        %v2163 = vld [vmem:[%s9 + $0x18] sm:$0xff]
        %v2164 = vld [vmem:[%s10] sm:$0xff]
        %v2165 = vld [vmem:[%s10 + $0x8] sm:$0xff]
        %v2166 = vld [vmem:[%s10 + $0x10] sm:$0xff]
        %v2167 = vld [vmem:[%s10 + $0x18] sm:$0xff]
        %v2169 = vsel %vm742, %v2160, 0
        %v2172 = vsel %vm742, %v2161, 0
        %v2175 = vsel %vm742, %v2162, 0
        %v2178 = vsel %vm742, %v2163, 0
        %2180 = vmatprep.subr.mxu0 0.0
        %v2181 = vand.u32 %v2159, 4294901760
        %2182 = vmatpush1.msra.mxu0 %v2181
        %2183 = vmatprep.subr.mxu0 0.0
        %2184 = vmatpush1.msra.mxu0 0.0
        %2185 = vmatprep.subr.mxu0 0.0
        %2186 = vmatpush1.msra.mxu0 0.0
        %2187 = vmatprep.subr.mxu0 0.0
        %2188 = vmatpush1.msra.mxu0 0.0
        %2189 = vmatprep.subr.mxu0 0.0
        %2190 = vmatpush1.msra.mxu0 0.0
        %2191 = vmatprep.subr.mxu0 0.0
        %2192 = vmatpush1.msra.mxu0 0.0
        %2193 = vmatprep.subr.mxu0 0.0
        %2194 = vmatpush1.msra.mxu0 0.0
        %2195 = vmatprep.subr.mxu0 0.0
        %2196 = vmatpush1.msra.mxu0 0.0
        %2197 = vmatprep.subr.mxu0 0.0
        %2198 = vmatpush1.msra.mxu0 0.0
        %2199 = vmatprep.subr.mxu0 0.0
        %2200 = vmatpush1.msra.mxu0 0.0
        %2201 = vmatprep.subr.mxu0 0.0
        %2202 = vmatpush1.msra.mxu0 0.0
        %2203 = vmatprep.subr.mxu0 0.0
        %2204 = vmatpush1.msra.mxu0 0.0
        %2205 = vmatprep.subr.mxu0 0.0
        %2206 = vmatpush1.msra.mxu0 0.0
        %2207 = vmatprep.subr.mxu0 0.0
        %2208 = vmatpush1.msra.mxu0 0.0
        %2209 = vmatprep.subr.mxu0 0.0
        %2210 = vmatpush1.msra.mxu0 0.0
        %2211 = vmatprep.subr.mxu0 0.0
        %2212 = vmatpush1.msra.mxu0 0.0
        %2213 = vmatprep.subr.mxu0 0.0
        %2214 = vmatpush1.msra.mxu0 0.0
        %2215 = vmatprep.subr.mxu0 0.0
        %2216 = vmatpush1.msra.mxu0 0.0
        %2217 = vmatprep.subr.mxu0 0.0
        %2218 = vmatpush1.msra.mxu0 0.0
        %2219 = vmatprep.subr.mxu0 0.0
        %2220 = vmatpush1.msra.mxu0 0.0
        %2221 = vmatprep.subr.mxu0 0.0
        %2222 = vmatpush1.msra.mxu0 0.0
        %2223 = vmatprep.subr.mxu0 0.0
        %2224 = vmatpush1.msra.mxu0 0.0
        %2225 = vmatprep.subr.mxu0 0.0
        %2226 = vmatpush1.msra.mxu0 0.0
        %2227 = vmatprep.subr.mxu0 0.0
        %2228 = vmatpush1.msra.mxu0 0.0
        %2229 = vmatprep.subr.mxu0 0.0
        %2230 = vmatpush1.msra.mxu0 0.0
        %2231 = vmatprep.subr.mxu0 0.0
        %2232 = vmatpush1.msra.mxu0 0.0
        %2233 = vmatprep.subr.mxu0 0.0
        %2234 = vmatpush1.msra.mxu0 0.0
        %2235 = vmatprep.subr.mxu0 0.0
        %2236 = vmatpush1.msra.mxu0 0.0
        %2237 = vmatprep.subr.mxu0 0.0
        %2238 = vmatpush1.msra.mxu0 0.0
        %2239 = vmatprep.subr.mxu0 0.0
        %2240 = vmatpush1.msra.mxu0 0.0
        %2241 = vmatprep.subr.mxu0 0.0
        %2242 = vmatpush1.msra.mxu0 0.0
        %2243 = vmatprep.subr.mxu0 0.0
        %2244 = vmatpush1.msra.mxu0 0.0
        %2245 = vmatprep.mubr.f32.mxu0 0.0
        %v2246 = vand.u32 %v2169, 4294901760
        %v2247 = vsub.f32 %v2169, %v2246
        %v2248 = vand.u32 %v2247, 4294901760
        %v2249 = vsub.f32 %v2247, %v2248
        %v2250 = vand.u32 %v2249, 4294901760
        %2251 = vmatmul.mubr.f32.gmra.mrb[0].mxu0 %v2250
        %v2252 = vpop.f32.mrb[0].mxu0
        %v2253 = vadd.f32 %v2164, %v2252
        %v2254 = vpop.f32.mrb[0].mxu0
        %2255 = vmatprep.mubr.f32.mxu0 0.0
        %v2256 = vand.u32 %v2172, 4294901760
        %v2257 = vsub.f32 %v2172, %v2256
        %v2258 = vand.u32 %v2257, 4294901760
        %v2259 = vsub.f32 %v2257, %v2258
        %v2260 = vand.u32 %v2259, 4294901760
        %2261 = vmatmul.mubr.f32.gmra.mrb[0].mxu0 %v2260
        %v2262 = vpop.f32.mrb[0].mxu0
        %v2263 = vadd.f32 %v2165, %v2262
        %v2264 = vpop.f32.mrb[0].mxu0
        %2265 = vmatprep.mubr.f32.mxu0 0.0
        %v2266 = vand.u32 %v2175, 4294901760
        %v2267 = vsub.f32 %v2175, %v2266
        %v2268 = vand.u32 %v2267, 4294901760
        %v2269 = vsub.f32 %v2267, %v2268
        %v2270 = vand.u32 %v2269, 4294901760
        %2271 = vmatmul.mubr.f32.gmra.mrb[0].mxu0 %v2270
        %v2272 = vpop.f32.mrb[0].mxu0
        %v2273 = vadd.f32 %v2166, %v2272
        %v2274 = vpop.f32.mrb[0].mxu0
        %2275 = vmatprep.mubr.f32.mxu0 0.0
        %v2276 = vand.u32 %v2178, 4294901760
        %v2277 = vsub.f32 %v2178, %v2276
        %v2278 = vand.u32 %v2277, 4294901760
        %v2279 = vsub.f32 %v2277, %v2278
        %v2280 = vand.u32 %v2279, 4294901760
        %2281 = vmatmul.mubr.f32.gmra.mrb[0].mxu0 %v2280
        %v2282 = vpop.f32.mrb[0].mxu0
        %v2283 = vadd.f32 %v2167, %v2282
        %v2284 = vpop.f32.mrb[0].mxu0
        %2285 = vdwg.mxu0
        %2286 = vmatprep.subr.mxu0 0.0
        %v2287 = vand.u32 %v2159, 4294901760
        %v2288 = vsub.f32 %v2159, %v2287
        %v2289 = vand.u32 %v2288, 4294901760
        %v2290 = vsub.f32 %v2288, %v2289
        %v2291 = vand.u32 %v2290, 4294901760
        %2292 = vmatpush1.msra.mxu0 %v2291
        %2293 = vmatprep.subr.mxu0 0.0
        %2294 = vmatpush1.msra.mxu0 0.0
        %2295 = vmatprep.subr.mxu0 0.0
        %2296 = vmatpush1.msra.mxu0 0.0
        %2297 = vmatprep.subr.mxu0 0.0
        %2298 = vmatpush1.msra.mxu0 0.0
        %2299 = vmatprep.subr.mxu0 0.0
        %2300 = vmatpush1.msra.mxu0 0.0
        %2301 = vmatprep.subr.mxu0 0.0
        %2302 = vmatpush1.msra.mxu0 0.0
        %2303 = vmatprep.subr.mxu0 0.0
        %2304 = vmatpush1.msra.mxu0 0.0
        %2305 = vmatprep.subr.mxu0 0.0
        %2306 = vmatpush1.msra.mxu0 0.0
        %2307 = vmatprep.subr.mxu0 0.0
        %2308 = vmatpush1.msra.mxu0 0.0
        %2309 = vmatprep.subr.mxu0 0.0
        %2310 = vmatpush1.msra.mxu0 0.0
        %2311 = vmatprep.subr.mxu0 0.0
        %2312 = vmatpush1.msra.mxu0 0.0
        %2313 = vmatprep.subr.mxu0 0.0
        %2314 = vmatpush1.msra.mxu0 0.0
        %2315 = vmatprep.subr.mxu0 0.0
        %2316 = vmatpush1.msra.mxu0 0.0
        %2317 = vmatprep.subr.mxu0 0.0
        %2318 = vmatpush1.msra.mxu0 0.0
        %2319 = vmatprep.subr.mxu0 0.0
        %2320 = vmatpush1.msra.mxu0 0.0
        %2321 = vmatprep.subr.mxu0 0.0
        %2322 = vmatpush1.msra.mxu0 0.0
        %2323 = vmatprep.subr.mxu0 0.0
        %2324 = vmatpush1.msra.mxu0 0.0
        %2325 = vmatprep.subr.mxu0 0.0
        %2326 = vmatpush1.msra.mxu0 0.0
        %2327 = vmatprep.subr.mxu0 0.0
        %2328 = vmatpush1.msra.mxu0 0.0
        %2329 = vmatprep.subr.mxu0 0.0
        %2330 = vmatpush1.msra.mxu0 0.0
        %2331 = vmatprep.subr.mxu0 0.0
        %2332 = vmatpush1.msra.mxu0 0.0
        %2333 = vmatprep.subr.mxu0 0.0
        %2334 = vmatpush1.msra.mxu0 0.0
        %2335 = vmatprep.subr.mxu0 0.0
        %2336 = vmatpush1.msra.mxu0 0.0
        %2337 = vmatprep.subr.mxu0 0.0
        %2338 = vmatpush1.msra.mxu0 0.0
        %2339 = vmatprep.subr.mxu0 0.0
        %2340 = vmatpush1.msra.mxu0 0.0
        %2341 = vmatprep.subr.mxu0 0.0
        %2342 = vmatpush1.msra.mxu0 0.0
        %2343 = vmatprep.subr.mxu0 0.0
        %2344 = vmatpush1.msra.mxu0 0.0
        %2345 = vmatprep.subr.mxu0 0.0
        %2346 = vmatpush1.msra.mxu0 0.0
        %2347 = vmatprep.subr.mxu0 0.0
        %2348 = vmatpush1.msra.mxu0 0.0
        %2349 = vmatprep.subr.mxu0 0.0
        %2350 = vmatpush1.msra.mxu0 0.0
        %2351 = vmatprep.subr.mxu0 0.0
        %2352 = vmatpush1.msra.mxu0 0.0
        %2353 = vmatprep.subr.mxu0 0.0
        %2354 = vmatpush1.msra.mxu0 0.0
        %2355 = vmatprep.mubr.f32.mxu0 0.0
        %v2356 = vand.u32 %v2169, 4294901760
        %2357 = vmatmul.mubr.f32.gmra.mrb[0].mxu0 %v2356
        %v2358 = vpop.f32.mrb[0].mxu0
        %v2359 = vadd.f32 %v2253, %v2358
        %v2360 = vpop.f32.mrb[0].mxu0
        %2361 = vmatprep.mubr.f32.mxu0 0.0
        %v2362 = vand.u32 %v2172, 4294901760
        %2363 = vmatmul.mubr.f32.gmra.mrb[0].mxu0 %v2362
        %v2364 = vpop.f32.mrb[0].mxu0
        %v2365 = vadd.f32 %v2263, %v2364
        %v2366 = vpop.f32.mrb[0].mxu0
        %2367 = vmatprep.mubr.f32.mxu0 0.0
        %v2368 = vand.u32 %v2175, 4294901760
        %2369 = vmatmul.mubr.f32.gmra.mrb[0].mxu0 %v2368
        %v2370 = vpop.f32.mrb[0].mxu0
        %v2371 = vadd.f32 %v2273, %v2370
        %v2372 = vpop.f32.mrb[0].mxu0
        %2373 = vmatprep.mubr.f32.mxu0 0.0
        %v2374 = vand.u32 %v2178, 4294901760
        %2375 = vmatmul.mubr.f32.gmra.mrb[0].mxu0 %v2374
        %v2376 = vpop.f32.mrb[0].mxu0
        %v2377 = vadd.f32 %v2283, %v2376
        %v2378 = vpop.f32.mrb[0].mxu0
        %2379 = vdwg.mxu0
        %2380 = vmatprep.subr.mxu0 0.0
        %v2381 = vand.u32 %v2159, 4294901760
        %v2382 = vsub.f32 %v2159, %v2381
        %2383 = vmatpush1.msra.mxu0 %v2382
        %2384 = vmatprep.subr.mxu0 0.0
        %2385 = vmatpush1.msra.mxu0 0.0
        %2386 = vmatprep.subr.mxu0 0.0
        %2387 = vmatpush1.msra.mxu0 0.0
        %2388 = vmatprep.subr.mxu0 0.0
        %2389 = vmatpush1.msra.mxu0 0.0
        %2390 = vmatprep.subr.mxu0 0.0
        %2391 = vmatpush1.msra.mxu0 0.0
        %2392 = vmatprep.subr.mxu0 0.0
        %2393 = vmatpush1.msra.mxu0 0.0
        %2394 = vmatprep.subr.mxu0 0.0
        %2395 = vmatpush1.msra.mxu0 0.0
        %2396 = vmatprep.subr.mxu0 0.0
        %2397 = vmatpush1.msra.mxu0 0.0
        %2398 = vmatprep.subr.mxu0 0.0
        %2399 = vmatpush1.msra.mxu0 0.0
        %2400 = vmatprep.subr.mxu0 0.0
        %2401 = vmatpush1.msra.mxu0 0.0
        %2402 = vmatprep.subr.mxu0 0.0
        %2403 = vmatpush1.msra.mxu0 0.0
        %2404 = vmatprep.subr.mxu0 0.0
        %2405 = vmatpush1.msra.mxu0 0.0
        %2406 = vmatprep.subr.mxu0 0.0
        %2407 = vmatpush1.msra.mxu0 0.0
        %2408 = vmatprep.subr.mxu0 0.0
        %2409 = vmatpush1.msra.mxu0 0.0
        %2410 = vmatprep.subr.mxu0 0.0
        %2411 = vmatpush1.msra.mxu0 0.0
        %2412 = vmatprep.subr.mxu0 0.0
        %2413 = vmatpush1.msra.mxu0 0.0
        %2414 = vmatprep.subr.mxu0 0.0
        %2415 = vmatpush1.msra.mxu0 0.0
        %2416 = vmatprep.subr.mxu0 0.0
        %2417 = vmatpush1.msra.mxu0 0.0
        %2418 = vmatprep.subr.mxu0 0.0
        %2419 = vmatpush1.msra.mxu0 0.0
        %2420 = vmatprep.subr.mxu0 0.0
        %2421 = vmatpush1.msra.mxu0 0.0
        %2422 = vmatprep.subr.mxu0 0.0
        %2423 = vmatpush1.msra.mxu0 0.0
        %2424 = vmatprep.subr.mxu0 0.0
        %2425 = vmatpush1.msra.mxu0 0.0
        %2426 = vmatprep.subr.mxu0 0.0
        %2427 = vmatpush1.msra.mxu0 0.0
        %2428 = vmatprep.subr.mxu0 0.0
        %2429 = vmatpush1.msra.mxu0 0.0
        %2430 = vmatprep.subr.mxu0 0.0
        %2431 = vmatpush1.msra.mxu0 0.0
        %2432 = vmatprep.subr.mxu0 0.0
        %2433 = vmatpush1.msra.mxu0 0.0
        %2434 = vmatprep.subr.mxu0 0.0
        %2435 = vmatpush1.msra.mxu0 0.0
        %2436 = vmatprep.subr.mxu0 0.0
        %2437 = vmatpush1.msra.mxu0 0.0
        %2438 = vmatprep.subr.mxu0 0.0
        %2439 = vmatpush1.msra.mxu0 0.0
        %2440 = vmatprep.subr.mxu0 0.0
        %2441 = vmatpush1.msra.mxu0 0.0
        %2442 = vmatprep.subr.mxu0 0.0
        %2443 = vmatpush1.msra.mxu0 0.0
        %2444 = vmatprep.subr.mxu0 0.0
        %2445 = vmatpush1.msra.mxu0 0.0
        %2446 = vmatprep.mubr.f32.mxu0 0.0
        %v2447 = vand.u32 %v2169, 4294901760
        %v2448 = vsub.f32 %v2169, %v2447
        %2449 = vmatmul.mubr.f32.gmra.mrb[0].mxu0 %v2448
        %v2450 = vpop.f32.mrb[0].mxu0
        %v2451 = vadd.f32 %v2359, %v2450
        %v2452 = vpop.f32.mrb[0].mxu0
        %2453 = vmatprep.mubr.f32.mxu0 0.0
        %v2454 = vand.u32 %v2172, 4294901760
        %v2455 = vsub.f32 %v2172, %v2454
        %2456 = vmatmul.mubr.f32.gmra.mrb[0].mxu0 %v2455
        %v2457 = vpop.f32.mrb[0].mxu0
        %v2458 = vadd.f32 %v2365, %v2457
        %v2459 = vpop.f32.mrb[0].mxu0
        %2460 = vmatprep.mubr.f32.mxu0 0.0
        %v2461 = vand.u32 %v2175, 4294901760
        %v2462 = vsub.f32 %v2175, %v2461
        %2463 = vmatmul.mubr.f32.gmra.mrb[0].mxu0 %v2462
        %v2464 = vpop.f32.mrb[0].mxu0
        %v2465 = vadd.f32 %v2371, %v2464
        %v2466 = vpop.f32.mrb[0].mxu0
        %2467 = vmatprep.mubr.f32.mxu0 0.0
        %v2468 = vand.u32 %v2178, 4294901760
        %v2469 = vsub.f32 %v2178, %v2468
        %2470 = vmatmul.mubr.f32.gmra.mrb[0].mxu0 %v2469
        %v2471 = vpop.f32.mrb[0].mxu0
        %v2472 = vadd.f32 %v2377, %v2471
        %v2473 = vpop.f32.mrb[0].mxu0
        %2474 = vdwg.mxu0
        %2475 = vmatprep.subr.mxu0 0.0
        %v2476 = vand.u32 %v2159, 4294901760
        %2477 = vmatpush1.msra.mxu0 %v2476
        %2478 = vmatprep.subr.mxu0 0.0
        %2479 = vmatpush1.msra.mxu0 0.0
        %2480 = vmatprep.subr.mxu0 0.0
        %2481 = vmatpush1.msra.mxu0 0.0
        %2482 = vmatprep.subr.mxu0 0.0
        %2483 = vmatpush1.msra.mxu0 0.0
        %2484 = vmatprep.subr.mxu0 0.0
        %2485 = vmatpush1.msra.mxu0 0.0
        %2486 = vmatprep.subr.mxu0 0.0
        %2487 = vmatpush1.msra.mxu0 0.0
        %2488 = vmatprep.subr.mxu0 0.0
        %2489 = vmatpush1.msra.mxu0 0.0
        %2490 = vmatprep.subr.mxu0 0.0
        %2491 = vmatpush1.msra.mxu0 0.0
        %2492 = vmatprep.subr.mxu0 0.0
        %2493 = vmatpush1.msra.mxu0 0.0
        %2494 = vmatprep.subr.mxu0 0.0
        %2495 = vmatpush1.msra.mxu0 0.0
        %2496 = vmatprep.subr.mxu0 0.0
        %2497 = vmatpush1.msra.mxu0 0.0
        %2498 = vmatprep.subr.mxu0 0.0
        %2499 = vmatpush1.msra.mxu0 0.0
        %2500 = vmatprep.subr.mxu0 0.0
        %2501 = vmatpush1.msra.mxu0 0.0
        %2502 = vmatprep.subr.mxu0 0.0
        %2503 = vmatpush1.msra.mxu0 0.0
        %2504 = vmatprep.subr.mxu0 0.0
        %2505 = vmatpush1.msra.mxu0 0.0
        %2506 = vmatprep.subr.mxu0 0.0
        %2507 = vmatpush1.msra.mxu0 0.0
        %2508 = vmatprep.subr.mxu0 0.0
        %2509 = vmatpush1.msra.mxu0 0.0
        %2510 = vmatprep.subr.mxu0 0.0
        %2511 = vmatpush1.msra.mxu0 0.0
        %2512 = vmatprep.subr.mxu0 0.0
        %2513 = vmatpush1.msra.mxu0 0.0
        %2514 = vmatprep.subr.mxu0 0.0
        %2515 = vmatpush1.msra.mxu0 0.0
        %2516 = vmatprep.subr.mxu0 0.0
        %2517 = vmatpush1.msra.mxu0 0.0
        %2518 = vmatprep.subr.mxu0 0.0
        %2519 = vmatpush1.msra.mxu0 0.0
        %2520 = vmatprep.subr.mxu0 0.0
        %2521 = vmatpush1.msra.mxu0 0.0
        %2522 = vmatprep.subr.mxu0 0.0
        %2523 = vmatpush1.msra.mxu0 0.0
        %2524 = vmatprep.subr.mxu0 0.0
        %2525 = vmatpush1.msra.mxu0 0.0
        %2526 = vmatprep.subr.mxu0 0.0
        %2527 = vmatpush1.msra.mxu0 0.0
        %2528 = vmatprep.subr.mxu0 0.0
        %2529 = vmatpush1.msra.mxu0 0.0
        %2530 = vmatprep.subr.mxu0 0.0
        %2531 = vmatpush1.msra.mxu0 0.0
        %2532 = vmatprep.subr.mxu0 0.0
        %2533 = vmatpush1.msra.mxu0 0.0
        %2534 = vmatprep.subr.mxu0 0.0
        %2535 = vmatpush1.msra.mxu0 0.0
        %2536 = vmatprep.subr.mxu0 0.0
        %2537 = vmatpush1.msra.mxu0 0.0
        %2538 = vmatprep.subr.mxu0 0.0
        %2539 = vmatpush1.msra.mxu0 0.0
        %2540 = vmatprep.mubr.f32.mxu0 0.0
        %v2541 = vand.u32 %v2169, 4294901760
        %v2542 = vsub.f32 %v2169, %v2541
        %v2543 = vand.u32 %v2542, 4294901760
        %2544 = vmatmul.mubr.f32.gmra.mrb[0].mxu0 %v2543
        %v2545 = vpop.f32.mrb[0].mxu0
        %v2546 = vadd.f32 %v2451, %v2545
        %v2547 = vpop.f32.mrb[0].mxu0
        %2548 = vmatprep.mubr.f32.mxu0 0.0
        %v2549 = vand.u32 %v2172, 4294901760
        %v2550 = vsub.f32 %v2172, %v2549
        %v2551 = vand.u32 %v2550, 4294901760
        %2552 = vmatmul.mubr.f32.gmra.mrb[0].mxu0 %v2551
        %v2553 = vpop.f32.mrb[0].mxu0
        %v2554 = vadd.f32 %v2458, %v2553
        %v2555 = vpop.f32.mrb[0].mxu0
        %2556 = vmatprep.mubr.f32.mxu0 0.0
        %v2557 = vand.u32 %v2175, 4294901760
        %v2558 = vsub.f32 %v2175, %v2557
        %v2559 = vand.u32 %v2558, 4294901760
        %2560 = vmatmul.mubr.f32.gmra.mrb[0].mxu0 %v2559
        %v2561 = vpop.f32.mrb[0].mxu0
        %v2562 = vadd.f32 %v2465, %v2561
        %v2563 = vpop.f32.mrb[0].mxu0
        %2564 = vmatprep.mubr.f32.mxu0 0.0
        %v2565 = vand.u32 %v2178, 4294901760
        %v2566 = vsub.f32 %v2178, %v2565
        %v2567 = vand.u32 %v2566, 4294901760
        %2568 = vmatmul.mubr.f32.gmra.mrb[0].mxu0 %v2567
        %v2569 = vpop.f32.mrb[0].mxu0
        %v2570 = vadd.f32 %v2472, %v2569
        %v2571 = vpop.f32.mrb[0].mxu0
        %2572 = vdwg.mxu0
        %2573 = vmatprep.subr.mxu0 0.0
        %v2574 = vand.u32 %v2159, 4294901760
        %v2575 = vsub.f32 %v2159, %v2574
        %v2576 = vand.u32 %v2575, 4294901760
        %2577 = vmatpush1.msra.mxu0 %v2576
        %2578 = vmatprep.subr.mxu0 0.0
        %2579 = vmatpush1.msra.mxu0 0.0
        %2580 = vmatprep.subr.mxu0 0.0
        %2581 = vmatpush1.msra.mxu0 0.0
        %2582 = vmatprep.subr.mxu0 0.0
        %2583 = vmatpush1.msra.mxu0 0.0
        %2584 = vmatprep.subr.mxu0 0.0
        %2585 = vmatpush1.msra.mxu0 0.0
        %2586 = vmatprep.subr.mxu0 0.0
        %2587 = vmatpush1.msra.mxu0 0.0
        %2588 = vmatprep.subr.mxu0 0.0
        %2589 = vmatpush1.msra.mxu0 0.0
        %2590 = vmatprep.subr.mxu0 0.0
        %2591 = vmatpush1.msra.mxu0 0.0
        %2592 = vmatprep.subr.mxu0 0.0
        %2593 = vmatpush1.msra.mxu0 0.0
        %2594 = vmatprep.subr.mxu0 0.0
        %2595 = vmatpush1.msra.mxu0 0.0
        %2596 = vmatprep.subr.mxu0 0.0
        %2597 = vmatpush1.msra.mxu0 0.0
        %2598 = vmatprep.subr.mxu0 0.0
        %2599 = vmatpush1.msra.mxu0 0.0
        %2600 = vmatprep.subr.mxu0 0.0
        %2601 = vmatpush1.msra.mxu0 0.0
        %2602 = vmatprep.subr.mxu0 0.0
        %2603 = vmatpush1.msra.mxu0 0.0
        %2604 = vmatprep.subr.mxu0 0.0
        %2605 = vmatpush1.msra.mxu0 0.0
        %2606 = vmatprep.subr.mxu0 0.0
        %2607 = vmatpush1.msra.mxu0 0.0
        %2608 = vmatprep.subr.mxu0 0.0
        %2609 = vmatpush1.msra.mxu0 0.0
        %2610 = vmatprep.subr.mxu0 0.0
        %2611 = vmatpush1.msra.mxu0 0.0
        %2612 = vmatprep.subr.mxu0 0.0
        %2613 = vmatpush1.msra.mxu0 0.0
        %2614 = vmatprep.subr.mxu0 0.0
        %2615 = vmatpush1.msra.mxu0 0.0
        %2616 = vmatprep.subr.mxu0 0.0
        %2617 = vmatpush1.msra.mxu0 0.0
        %2618 = vmatprep.subr.mxu0 0.0
        %2619 = vmatpush1.msra.mxu0 0.0
        %2620 = vmatprep.subr.mxu0 0.0
        %2621 = vmatpush1.msra.mxu0 0.0
        %2622 = vmatprep.subr.mxu0 0.0
        %2623 = vmatpush1.msra.mxu0 0.0
        %2624 = vmatprep.subr.mxu0 0.0
        %2625 = vmatpush1.msra.mxu0 0.0
        %2626 = vmatprep.subr.mxu0 0.0
        %2627 = vmatpush1.msra.mxu0 0.0
        %2628 = vmatprep.subr.mxu0 0.0
        %2629 = vmatpush1.msra.mxu0 0.0
        %2630 = vmatprep.subr.mxu0 0.0
        %2631 = vmatpush1.msra.mxu0 0.0
        %2632 = vmatprep.subr.mxu0 0.0
        %2633 = vmatpush1.msra.mxu0 0.0
        %2634 = vmatprep.subr.mxu0 0.0
        %2635 = vmatpush1.msra.mxu0 0.0
        %2636 = vmatprep.subr.mxu0 0.0
        %2637 = vmatpush1.msra.mxu0 0.0
        %2638 = vmatprep.subr.mxu0 0.0
        %2639 = vmatpush1.msra.mxu0 0.0
        %2640 = vmatprep.mubr.f32.mxu0 0.0
        %v2641 = vand.u32 %v2169, 4294901760
        %2642 = vmatmul.mubr.f32.gmra.mrb[0].mxu0 %v2641
        %v2643 = vpop.f32.mrb[0].mxu0
        %v2644 = vadd.f32 %v2546, %v2643
        %v2645 = vpop.f32.mrb[0].mxu0
        %2646 = vmatprep.mubr.f32.mxu0 0.0
        %v2647 = vand.u32 %v2172, 4294901760
        %2648 = vmatmul.mubr.f32.gmra.mrb[0].mxu0 %v2647
        %v2649 = vpop.f32.mrb[0].mxu0
        %v2650 = vadd.f32 %v2554, %v2649
        %v2651 = vpop.f32.mrb[0].mxu0
        %2652 = vmatprep.mubr.f32.mxu0 0.0
        %v2653 = vand.u32 %v2175, 4294901760
        %2654 = vmatmul.mubr.f32.gmra.mrb[0].mxu0 %v2653
        %v2655 = vpop.f32.mrb[0].mxu0
        %v2656 = vadd.f32 %v2562, %v2655
        %v2657 = vpop.f32.mrb[0].mxu0
        %2658 = vmatprep.mubr.f32.mxu0 0.0
        %v2659 = vand.u32 %v2178, 4294901760
        %2660 = vmatmul.mubr.f32.gmra.mrb[0].mxu0 %v2659
        %v2661 = vpop.f32.mrb[0].mxu0
        %v2662 = vadd.f32 %v2570, %v2661
        %v2663 = vpop.f32.mrb[0].mxu0
        %2664 = vdwg.mxu0
        %2665 = vmatprep.subr.mxu0 0.0
        %v2666 = vand.u32 %v2159, 4294901760
        %2667 = vmatpush1.msra.mxu0 %v2666
        %2668 = vmatprep.subr.mxu0 0.0
        %2669 = vmatpush1.msra.mxu0 0.0
        %2670 = vmatprep.subr.mxu0 0.0
        %2671 = vmatpush1.msra.mxu0 0.0
        %2672 = vmatprep.subr.mxu0 0.0
        %2673 = vmatpush1.msra.mxu0 0.0
        %2674 = vmatprep.subr.mxu0 0.0
        %2675 = vmatpush1.msra.mxu0 0.0
        %2676 = vmatprep.subr.mxu0 0.0
        %2677 = vmatpush1.msra.mxu0 0.0
        %2678 = vmatprep.subr.mxu0 0.0
        %2679 = vmatpush1.msra.mxu0 0.0
        %2680 = vmatprep.subr.mxu0 0.0
        %2681 = vmatpush1.msra.mxu0 0.0
        %2682 = vmatprep.subr.mxu0 0.0
        %2683 = vmatpush1.msra.mxu0 0.0
        %2684 = vmatprep.subr.mxu0 0.0
        %2685 = vmatpush1.msra.mxu0 0.0
        %2686 = vmatprep.subr.mxu0 0.0
        %2687 = vmatpush1.msra.mxu0 0.0
        %2688 = vmatprep.subr.mxu0 0.0
        %2689 = vmatpush1.msra.mxu0 0.0
        %2690 = vmatprep.subr.mxu0 0.0
        %2691 = vmatpush1.msra.mxu0 0.0
        %2692 = vmatprep.subr.mxu0 0.0
        %2693 = vmatpush1.msra.mxu0 0.0
        %2694 = vmatprep.subr.mxu0 0.0
        %2695 = vmatpush1.msra.mxu0 0.0
        %2696 = vmatprep.subr.mxu0 0.0
        %2697 = vmatpush1.msra.mxu0 0.0
        %2698 = vmatprep.subr.mxu0 0.0
        %2699 = vmatpush1.msra.mxu0 0.0
        %2700 = vmatprep.subr.mxu0 0.0
        %2701 = vmatpush1.msra.mxu0 0.0
        %2702 = vmatprep.subr.mxu0 0.0
        %2703 = vmatpush1.msra.mxu0 0.0
        %2704 = vmatprep.subr.mxu0 0.0
        %2705 = vmatpush1.msra.mxu0 0.0
        %2706 = vmatprep.subr.mxu0 0.0
        %2707 = vmatpush1.msra.mxu0 0.0
        %2708 = vmatprep.subr.mxu0 0.0
        %2709 = vmatpush1.msra.mxu0 0.0
        %2710 = vmatprep.subr.mxu0 0.0
        %2711 = vmatpush1.msra.mxu0 0.0
        %2712 = vmatprep.subr.mxu0 0.0
        %2713 = vmatpush1.msra.mxu0 0.0
        %2714 = vmatprep.subr.mxu0 0.0
        %2715 = vmatpush1.msra.mxu0 0.0
        %2716 = vmatprep.subr.mxu0 0.0
        %2717 = vmatpush1.msra.mxu0 0.0
        %2718 = vmatprep.subr.mxu0 0.0
        %2719 = vmatpush1.msra.mxu0 0.0
        %2720 = vmatprep.subr.mxu0 0.0
        %2721 = vmatpush1.msra.mxu0 0.0
        %2722 = vmatprep.subr.mxu0 0.0
        %2723 = vmatpush1.msra.mxu0 0.0
        %2724 = vmatprep.subr.mxu0 0.0
        %2725 = vmatpush1.msra.mxu0 0.0
        %2726 = vmatprep.subr.mxu0 0.0
        %2727 = vmatpush1.msra.mxu0 0.0
        %2728 = vmatprep.subr.mxu0 0.0
        %2729 = vmatpush1.msra.mxu0 0.0
        %2730 = vmatprep.mubr.f32.mxu0 0.0
        %v2731 = vand.u32 %v2169, 4294901760
        %2732 = vmatmul.mubr.f32.gmra.mrb[0].mxu0 %v2731
        %v2733 = vpop.f32.mrb[0].mxu0
        %v2734 = vadd.f32 %v2644, %v2733
        %v2735 = vpop.f32.mrb[0].mxu0
        %2736 = vmatprep.mubr.f32.mxu0 0.0
        %v2737 = vand.u32 %v2172, 4294901760
        %2738 = vmatmul.mubr.f32.gmra.mrb[0].mxu0 %v2737
        %v2739 = vpop.f32.mrb[0].mxu0
        %v2740 = vadd.f32 %v2650, %v2739
        %v2741 = vpop.f32.mrb[0].mxu0
        %2742 = vmatprep.mubr.f32.mxu0 0.0
        %v2743 = vand.u32 %v2175, 4294901760
        %2744 = vmatmul.mubr.f32.gmra.mrb[0].mxu0 %v2743
        %v2745 = vpop.f32.mrb[0].mxu0
        %v2746 = vadd.f32 %v2656, %v2745
        %v2747 = vpop.f32.mrb[0].mxu0
        %2748 = vmatprep.mubr.f32.mxu0 0.0
        %v2749 = vand.u32 %v2178, 4294901760
        %2750 = vmatmul.mubr.f32.gmra.mrb[0].mxu0 %v2749
        %v2751 = vpop.f32.mrb[0].mxu0
        %v2752 = vadd.f32 %v2662, %v2751
        %v2753 = vpop.f32.mrb[0].mxu0
        %2754 = vdwg.mxu0
        %v2755 = vmax.f32 %v2734, 0.0
        %v2756 = vmax.f32 %v2740, 0.0
        %v2757 = vmax.f32 %v2746, 0.0
        %v2758 = vmax.f32 %v2752, 0.0
        %v2759 = vmin.f32 %v2755, 1.0
        %v2760 = vmin.f32 %v2756, 1.0
        %v2761 = vmin.f32 %v2757, 1.0
        %v2762 = vmin.f32 %v2758, 1.0
        %2764 = vset.pattern.permute.xlu0 0
        %2765 = vperm.xlu0 %2764, %v2759
        %v2766 = vpop.permute.xlu0 %2765
        %2769 = vset.pattern.permute.xlu0 0
        %2770 = vperm.xlu0 %2769, %v2760
        %v2771 = vpop.permute.xlu0 %2770
        %2774 = vset.pattern.permute.xlu0 0
        %2775 = vperm.xlu0 %2774, %v2761
        %v2776 = vpop.permute.xlu0 %2775
        %2779 = vset.pattern.permute.xlu0 0
        %2780 = vperm.xlu0 %2779, %v2762
        %v2781 = vpop.permute.xlu0 %2780
        %v2783 = vmul.f32 %v1295, %v2766
        %v2784 = vmul.f32 %v1296, %v2766
        %v2785 = vmul.f32 %v1297, %v2771
        %v2786 = vmul.f32 %v1298, %v2771
        %v2787 = vmul.f32 %v1647, %v2776
        %v2788 = vmul.f32 %v1648, %v2776
        %v2789 = vmul.f32 %v1649, %v2781
        %v2790 = vmul.f32 %v1650, %v2781
        %v2791 = vld [vmem:[%s11] sm:$0xff]
        %v2793 = vsel %vm1670, %v2791, 0
        %v2795 = vand.u32 %v2784, 4294901760
        %2796 = vmatprep.subr.mxu0 %v2795
        %v2797 = vand.u32 %v2783, 4294901760
        %2798 = vmatpush1.msra.mxu0 %v2797
        %v2799 = vand.u32 %v2786, 4294901760
        %2800 = vmatprep.subr.mxu0 %v2799
        %v2801 = vand.u32 %v2785, 4294901760
        %2802 = vmatpush1.msra.mxu0 %v2801
        %v2803 = vand.u32 %v2788, 4294901760
        %2804 = vmatprep.subr.mxu0 %v2803
        %v2805 = vand.u32 %v2787, 4294901760
        %2806 = vmatpush1.msra.mxu0 %v2805
        %v2807 = vand.u32 %v2790, 4294901760
        %2808 = vmatprep.subr.mxu0 %v2807
        %v2809 = vand.u32 %v2789, 4294901760
        %2810 = vmatpush1.msra.mxu0 %v2809
        %2811 = vmatprep.subr.mxu0 0.0
        %2812 = vmatpush1.msra.mxu0 0.0
        %2813 = vmatprep.subr.mxu0 0.0
        %2814 = vmatpush1.msra.mxu0 0.0
        %2815 = vmatprep.subr.mxu0 0.0
        %2816 = vmatpush1.msra.mxu0 0.0
        %2817 = vmatprep.subr.mxu0 0.0
        %2818 = vmatpush1.msra.mxu0 0.0
        %2819 = vmatprep.subr.mxu0 0.0
        %2820 = vmatpush1.msra.mxu0 0.0
        %2821 = vmatprep.subr.mxu0 0.0
        %2822 = vmatpush1.msra.mxu0 0.0
        %2823 = vmatprep.subr.mxu0 0.0
        %2824 = vmatpush1.msra.mxu0 0.0
        %2825 = vmatprep.subr.mxu0 0.0
        %2826 = vmatpush1.msra.mxu0 0.0
        %2827 = vmatprep.subr.mxu0 0.0
        %2828 = vmatpush1.msra.mxu0 0.0
        %2829 = vmatprep.subr.mxu0 0.0
        %2830 = vmatpush1.msra.mxu0 0.0
        %2831 = vmatprep.subr.mxu0 0.0
        %2832 = vmatpush1.msra.mxu0 0.0
        %2833 = vmatprep.subr.mxu0 0.0
        %2834 = vmatpush1.msra.mxu0 0.0
        %2835 = vmatprep.subr.mxu0 0.0
        %2836 = vmatpush1.msra.mxu0 0.0
        %2837 = vmatprep.subr.mxu0 0.0
        %2838 = vmatpush1.msra.mxu0 0.0
        %2839 = vmatprep.subr.mxu0 0.0
        %2840 = vmatpush1.msra.mxu0 0.0
        %2841 = vmatprep.subr.mxu0 0.0
        %2842 = vmatpush1.msra.mxu0 0.0
        %2843 = vmatprep.subr.mxu0 0.0
        %2844 = vmatpush1.msra.mxu0 0.0
        %2845 = vmatprep.subr.mxu0 0.0
        %2846 = vmatpush1.msra.mxu0 0.0
        %2847 = vmatprep.subr.mxu0 0.0
        %2848 = vmatpush1.msra.mxu0 0.0
        %2849 = vmatprep.subr.mxu0 0.0
        %2850 = vmatpush1.msra.mxu0 0.0
        %2851 = vmatprep.subr.mxu0 0.0
        %2852 = vmatpush1.msra.mxu0 0.0
        %2853 = vmatprep.subr.mxu0 0.0
        %2854 = vmatpush1.msra.mxu0 0.0
        %2855 = vmatprep.subr.mxu0 0.0
        %2856 = vmatpush1.msra.mxu0 0.0
        %2857 = vmatprep.subr.mxu0 0.0
        %2858 = vmatpush1.msra.mxu0 0.0
        %2859 = vmatprep.subr.mxu0 0.0
        %2860 = vmatpush1.msra.mxu0 0.0
        %2861 = vmatprep.subr.mxu0 0.0
        %2862 = vmatpush1.msra.mxu0 0.0
        %2863 = vmatprep.subr.mxu0 0.0
        %2864 = vmatpush1.msra.mxu0 0.0
        %2865 = vmatprep.subr.mxu0 0.0
        %2866 = vmatpush1.msra.mxu0 0.0
        %2867 = vmatprep.mubr.f32.mxu0 0.0
        %v2868 = vand.u32 %v2793, 4294901760
        %v2869 = vsub.f32 %v2793, %v2868
        %v2870 = vand.u32 %v2869, 4294901760
        %v2871 = vsub.f32 %v2869, %v2870
        %v2872 = vand.u32 %v2871, 4294901760
        %2873 = vmatmul.mubr.f32.gmra.mrb[0].mxu0 %v2872
        %v2874 = vpop.f32.mrb[0].mxu0
        %v2875 = vadd.f32 0.0, %v2874
        %v2876 = vpop.f32.mrb[0].mxu0
        %v2877 = vadd.f32 0.0, %v2876
        %2878 = vdwg.mxu0
        %v2879 = vand.u32 %v2784, 4294901760
        %v2880 = vsub.f32 %v2784, %v2879
        %v2881 = vand.u32 %v2880, 4294901760
        %v2882 = vsub.f32 %v2880, %v2881
        %v2883 = vand.u32 %v2882, 4294901760
        %2884 = vmatprep.subr.mxu0 %v2883
        %v2885 = vand.u32 %v2783, 4294901760
        %v2886 = vsub.f32 %v2783, %v2885
        %v2887 = vand.u32 %v2886, 4294901760
        %v2888 = vsub.f32 %v2886, %v2887
        %v2889 = vand.u32 %v2888, 4294901760
        %2890 = vmatpush1.msra.mxu0 %v2889
        %v2891 = vand.u32 %v2786, 4294901760
        %v2892 = vsub.f32 %v2786, %v2891
        %v2893 = vand.u32 %v2892, 4294901760
        %v2894 = vsub.f32 %v2892, %v2893
        %v2895 = vand.u32 %v2894, 4294901760
        %2896 = vmatprep.subr.mxu0 %v2895
        %v2897 = vand.u32 %v2785, 4294901760
        %v2898 = vsub.f32 %v2785, %v2897
        %v2899 = vand.u32 %v2898, 4294901760
        %v2900 = vsub.f32 %v2898, %v2899
        %v2901 = vand.u32 %v2900, 4294901760
        %2902 = vmatpush1.msra.mxu0 %v2901
        %v2903 = vand.u32 %v2788, 4294901760
        %v2904 = vsub.f32 %v2788, %v2903
        %v2905 = vand.u32 %v2904, 4294901760
        %v2906 = vsub.f32 %v2904, %v2905
        %v2907 = vand.u32 %v2906, 4294901760
        %2908 = vmatprep.subr.mxu0 %v2907
        %v2909 = vand.u32 %v2787, 4294901760
        %v2910 = vsub.f32 %v2787, %v2909
        %v2911 = vand.u32 %v2910, 4294901760
        %v2912 = vsub.f32 %v2910, %v2911
        %v2913 = vand.u32 %v2912, 4294901760
        %2914 = vmatpush1.msra.mxu0 %v2913
        %v2915 = vand.u32 %v2790, 4294901760
        %v2916 = vsub.f32 %v2790, %v2915
        %v2917 = vand.u32 %v2916, 4294901760
        %v2918 = vsub.f32 %v2916, %v2917
        %v2919 = vand.u32 %v2918, 4294901760
        %2920 = vmatprep.subr.mxu0 %v2919
        %v2921 = vand.u32 %v2789, 4294901760
        %v2922 = vsub.f32 %v2789, %v2921
        %v2923 = vand.u32 %v2922, 4294901760
        %v2924 = vsub.f32 %v2922, %v2923
        %v2925 = vand.u32 %v2924, 4294901760
        %2926 = vmatpush1.msra.mxu0 %v2925
        %2927 = vmatprep.subr.mxu0 0.0
        %2928 = vmatpush1.msra.mxu0 0.0
        %2929 = vmatprep.subr.mxu0 0.0
        %2930 = vmatpush1.msra.mxu0 0.0
        %2931 = vmatprep.subr.mxu0 0.0
        %2932 = vmatpush1.msra.mxu0 0.0
        %2933 = vmatprep.subr.mxu0 0.0
        %2934 = vmatpush1.msra.mxu0 0.0
        %2935 = vmatprep.subr.mxu0 0.0
        %2936 = vmatpush1.msra.mxu0 0.0
        %2937 = vmatprep.subr.mxu0 0.0
        %2938 = vmatpush1.msra.mxu0 0.0
        %2939 = vmatprep.subr.mxu0 0.0
        %2940 = vmatpush1.msra.mxu0 0.0
        %2941 = vmatprep.subr.mxu0 0.0
        %2942 = vmatpush1.msra.mxu0 0.0
        %2943 = vmatprep.subr.mxu0 0.0
        %2944 = vmatpush1.msra.mxu0 0.0
        %2945 = vmatprep.subr.mxu0 0.0
        %2946 = vmatpush1.msra.mxu0 0.0
        %2947 = vmatprep.subr.mxu0 0.0
        %2948 = vmatpush1.msra.mxu0 0.0
        %2949 = vmatprep.subr.mxu0 0.0
        %2950 = vmatpush1.msra.mxu0 0.0
        %2951 = vmatprep.subr.mxu0 0.0
        %2952 = vmatpush1.msra.mxu0 0.0
        %2953 = vmatprep.subr.mxu0 0.0
        %2954 = vmatpush1.msra.mxu0 0.0
        %2955 = vmatprep.subr.mxu0 0.0
        %2956 = vmatpush1.msra.mxu0 0.0
        %2957 = vmatprep.subr.mxu0 0.0
        %2958 = vmatpush1.msra.mxu0 0.0
        %2959 = vmatprep.subr.mxu0 0.0
        %2960 = vmatpush1.msra.mxu0 0.0
        %2961 = vmatprep.subr.mxu0 0.0
        %2962 = vmatpush1.msra.mxu0 0.0
        %2963 = vmatprep.subr.mxu0 0.0
        %2964 = vmatpush1.msra.mxu0 0.0
        %2965 = vmatprep.subr.mxu0 0.0
        %2966 = vmatpush1.msra.mxu0 0.0
        %2967 = vmatprep.subr.mxu0 0.0
        %2968 = vmatpush1.msra.mxu0 0.0
        %2969 = vmatprep.subr.mxu0 0.0
        %2970 = vmatpush1.msra.mxu0 0.0
        %2971 = vmatprep.subr.mxu0 0.0
        %2972 = vmatpush1.msra.mxu0 0.0
        %2973 = vmatprep.subr.mxu0 0.0
        %2974 = vmatpush1.msra.mxu0 0.0
        %2975 = vmatprep.subr.mxu0 0.0
        %2976 = vmatpush1.msra.mxu0 0.0
        %2977 = vmatprep.subr.mxu0 0.0
        %2978 = vmatpush1.msra.mxu0 0.0
        %2979 = vmatprep.subr.mxu0 0.0
        %2980 = vmatpush1.msra.mxu0 0.0
        %2981 = vmatprep.subr.mxu0 0.0
        %2982 = vmatpush1.msra.mxu0 0.0
        %2983 = vmatprep.mubr.f32.mxu0 0.0
        %v2984 = vand.u32 %v2793, 4294901760
        %2985 = vmatmul.mubr.f32.gmra.mrb[0].mxu0 %v2984
        %v2986 = vpop.f32.mrb[0].mxu0
        %v2987 = vadd.f32 %v2875, %v2986
        %v2988 = vpop.f32.mrb[0].mxu0
        %v2989 = vadd.f32 %v2877, %v2988
        %2990 = vdwg.mxu0
        %v2991 = vand.u32 %v2784, 4294901760
        %v2992 = vsub.f32 %v2784, %v2991
        %2993 = vmatprep.subr.mxu0 %v2992
        %v2994 = vand.u32 %v2783, 4294901760
        %v2995 = vsub.f32 %v2783, %v2994
        %2996 = vmatpush1.msra.mxu0 %v2995
        %v2997 = vand.u32 %v2786, 4294901760
        %v2998 = vsub.f32 %v2786, %v2997
        %2999 = vmatprep.subr.mxu0 %v2998
        %v3000 = vand.u32 %v2785, 4294901760
        %v3001 = vsub.f32 %v2785, %v3000
        %3002 = vmatpush1.msra.mxu0 %v3001
        %v3003 = vand.u32 %v2788, 4294901760
        %v3004 = vsub.f32 %v2788, %v3003
        %3005 = vmatprep.subr.mxu0 %v3004
        %v3006 = vand.u32 %v2787, 4294901760
        %v3007 = vsub.f32 %v2787, %v3006
        %3008 = vmatpush1.msra.mxu0 %v3007
        %v3009 = vand.u32 %v2790, 4294901760
        %v3010 = vsub.f32 %v2790, %v3009
        %3011 = vmatprep.subr.mxu0 %v3010
        %v3012 = vand.u32 %v2789, 4294901760
        %v3013 = vsub.f32 %v2789, %v3012
        %3014 = vmatpush1.msra.mxu0 %v3013
        %3015 = vmatprep.subr.mxu0 0.0
        %3016 = vmatpush1.msra.mxu0 0.0
        %3017 = vmatprep.subr.mxu0 0.0
        %3018 = vmatpush1.msra.mxu0 0.0
        %3019 = vmatprep.subr.mxu0 0.0
        %3020 = vmatpush1.msra.mxu0 0.0
        %3021 = vmatprep.subr.mxu0 0.0
        %3022 = vmatpush1.msra.mxu0 0.0
        %3023 = vmatprep.subr.mxu0 0.0
        %3024 = vmatpush1.msra.mxu0 0.0
        %3025 = vmatprep.subr.mxu0 0.0
        %3026 = vmatpush1.msra.mxu0 0.0
        %3027 = vmatprep.subr.mxu0 0.0
        %3028 = vmatpush1.msra.mxu0 0.0
        %3029 = vmatprep.subr.mxu0 0.0
        %3030 = vmatpush1.msra.mxu0 0.0
        %3031 = vmatprep.subr.mxu0 0.0
        %3032 = vmatpush1.msra.mxu0 0.0
        %3033 = vmatprep.subr.mxu0 0.0
        %3034 = vmatpush1.msra.mxu0 0.0
        %3035 = vmatprep.subr.mxu0 0.0
        %3036 = vmatpush1.msra.mxu0 0.0
        %3037 = vmatprep.subr.mxu0 0.0
        %3038 = vmatpush1.msra.mxu0 0.0
        %3039 = vmatprep.subr.mxu0 0.0
        %3040 = vmatpush1.msra.mxu0 0.0
        %3041 = vmatprep.subr.mxu0 0.0
        %3042 = vmatpush1.msra.mxu0 0.0
        %3043 = vmatprep.subr.mxu0 0.0
        %3044 = vmatpush1.msra.mxu0 0.0
        %3045 = vmatprep.subr.mxu0 0.0
        %3046 = vmatpush1.msra.mxu0 0.0
        %3047 = vmatprep.subr.mxu0 0.0
        %3048 = vmatpush1.msra.mxu0 0.0
        %3049 = vmatprep.subr.mxu0 0.0
        %3050 = vmatpush1.msra.mxu0 0.0
        %3051 = vmatprep.subr.mxu0 0.0
        %3052 = vmatpush1.msra.mxu0 0.0
        %3053 = vmatprep.subr.mxu0 0.0
        %3054 = vmatpush1.msra.mxu0 0.0
        %3055 = vmatprep.subr.mxu0 0.0
        %3056 = vmatpush1.msra.mxu0 0.0
        %3057 = vmatprep.subr.mxu0 0.0
        %3058 = vmatpush1.msra.mxu0 0.0
        %3059 = vmatprep.subr.mxu0 0.0
        %3060 = vmatpush1.msra.mxu0 0.0
        %3061 = vmatprep.subr.mxu0 0.0
        %3062 = vmatpush1.msra.mxu0 0.0
        %3063 = vmatprep.subr.mxu0 0.0
        %3064 = vmatpush1.msra.mxu0 0.0
        %3065 = vmatprep.subr.mxu0 0.0
        %3066 = vmatpush1.msra.mxu0 0.0
        %3067 = vmatprep.subr.mxu0 0.0
        %3068 = vmatpush1.msra.mxu0 0.0
        %3069 = vmatprep.subr.mxu0 0.0
        %3070 = vmatpush1.msra.mxu0 0.0
        %3071 = vmatprep.mubr.f32.mxu0 0.0
        %v3072 = vand.u32 %v2793, 4294901760
        %v3073 = vsub.f32 %v2793, %v3072
        %3074 = vmatmul.mubr.f32.gmra.mrb[0].mxu0 %v3073
        %v3075 = vpop.f32.mrb[0].mxu0
        %v3076 = vadd.f32 %v2987, %v3075
        %v3077 = vpop.f32.mrb[0].mxu0
        %v3078 = vadd.f32 %v2989, %v3077
        %3079 = vdwg.mxu0
        %v3080 = vand.u32 %v2784, 4294901760
        %3081 = vmatprep.subr.mxu0 %v3080
        %v3082 = vand.u32 %v2783, 4294901760
        %3083 = vmatpush1.msra.mxu0 %v3082
        %v3084 = vand.u32 %v2786, 4294901760
        %3085 = vmatprep.subr.mxu0 %v3084
        %v3086 = vand.u32 %v2785, 4294901760
        %3087 = vmatpush1.msra.mxu0 %v3086
        %v3088 = vand.u32 %v2788, 4294901760
        %3089 = vmatprep.subr.mxu0 %v3088
        %v3090 = vand.u32 %v2787, 4294901760
        %3091 = vmatpush1.msra.mxu0 %v3090
        %v3092 = vand.u32 %v2790, 4294901760
        %3093 = vmatprep.subr.mxu0 %v3092
        %v3094 = vand.u32 %v2789, 4294901760
        %3095 = vmatpush1.msra.mxu0 %v3094
        %3096 = vmatprep.subr.mxu0 0.0
        %3097 = vmatpush1.msra.mxu0 0.0
        %3098 = vmatprep.subr.mxu0 0.0
        %3099 = vmatpush1.msra.mxu0 0.0
        %3100 = vmatprep.subr.mxu0 0.0
        %3101 = vmatpush1.msra.mxu0 0.0
        %3102 = vmatprep.subr.mxu0 0.0
        %3103 = vmatpush1.msra.mxu0 0.0
        %3104 = vmatprep.subr.mxu0 0.0
        %3105 = vmatpush1.msra.mxu0 0.0
        %3106 = vmatprep.subr.mxu0 0.0
        %3107 = vmatpush1.msra.mxu0 0.0
        %3108 = vmatprep.subr.mxu0 0.0
        %3109 = vmatpush1.msra.mxu0 0.0
        %3110 = vmatprep.subr.mxu0 0.0
        %3111 = vmatpush1.msra.mxu0 0.0
        %3112 = vmatprep.subr.mxu0 0.0
        %3113 = vmatpush1.msra.mxu0 0.0
        %3114 = vmatprep.subr.mxu0 0.0
        %3115 = vmatpush1.msra.mxu0 0.0
        %3116 = vmatprep.subr.mxu0 0.0
        %3117 = vmatpush1.msra.mxu0 0.0
        %3118 = vmatprep.subr.mxu0 0.0
        %3119 = vmatpush1.msra.mxu0 0.0
        %3120 = vmatprep.subr.mxu0 0.0
        %3121 = vmatpush1.msra.mxu0 0.0
        %3122 = vmatprep.subr.mxu0 0.0
        %3123 = vmatpush1.msra.mxu0 0.0
        %3124 = vmatprep.subr.mxu0 0.0
        %3125 = vmatpush1.msra.mxu0 0.0
        %3126 = vmatprep.subr.mxu0 0.0
        %3127 = vmatpush1.msra.mxu0 0.0
        %3128 = vmatprep.subr.mxu0 0.0
        %3129 = vmatpush1.msra.mxu0 0.0
        %3130 = vmatprep.subr.mxu0 0.0
        %3131 = vmatpush1.msra.mxu0 0.0
        %3132 = vmatprep.subr.mxu0 0.0
        %3133 = vmatpush1.msra.mxu0 0.0
        %3134 = vmatprep.subr.mxu0 0.0
        %3135 = vmatpush1.msra.mxu0 0.0
        %3136 = vmatprep.subr.mxu0 0.0
        %3137 = vmatpush1.msra.mxu0 0.0
        %3138 = vmatprep.subr.mxu0 0.0
        %3139 = vmatpush1.msra.mxu0 0.0
        %3140 = vmatprep.subr.mxu0 0.0
        %3141 = vmatpush1.msra.mxu0 0.0
        %3142 = vmatprep.subr.mxu0 0.0
        %3143 = vmatpush1.msra.mxu0 0.0
        %3144 = vmatprep.subr.mxu0 0.0
        %3145 = vmatpush1.msra.mxu0 0.0
        %3146 = vmatprep.subr.mxu0 0.0
        %3147 = vmatpush1.msra.mxu0 0.0
        %3148 = vmatprep.subr.mxu0 0.0
        %3149 = vmatpush1.msra.mxu0 0.0
        %3150 = vmatprep.subr.mxu0 0.0
        %3151 = vmatpush1.msra.mxu0 0.0
        %3152 = vmatprep.mubr.f32.mxu0 0.0
        %v3153 = vand.u32 %v2793, 4294901760
        %v3154 = vsub.f32 %v2793, %v3153
        %v3155 = vand.u32 %v3154, 4294901760
        %3156 = vmatmul.mubr.f32.gmra.mrb[0].mxu0 %v3155
        %v3157 = vpop.f32.mrb[0].mxu0
        %v3158 = vadd.f32 %v3076, %v3157
        %v3159 = vpop.f32.mrb[0].mxu0
        %v3160 = vadd.f32 %v3078, %v3159
        %3161 = vdwg.mxu0
        %v3162 = vand.u32 %v2784, 4294901760
        %v3163 = vsub.f32 %v2784, %v3162
        %v3164 = vand.u32 %v3163, 4294901760
        %3165 = vmatprep.subr.mxu0 %v3164
        %v3166 = vand.u32 %v2783, 4294901760
        %v3167 = vsub.f32 %v2783, %v3166
        %v3168 = vand.u32 %v3167, 4294901760
        %3169 = vmatpush1.msra.mxu0 %v3168
        %v3170 = vand.u32 %v2786, 4294901760
        %v3171 = vsub.f32 %v2786, %v3170
        %v3172 = vand.u32 %v3171, 4294901760
        %3173 = vmatprep.subr.mxu0 %v3172
        %v3174 = vand.u32 %v2785, 4294901760
        %v3175 = vsub.f32 %v2785, %v3174
        %v3176 = vand.u32 %v3175, 4294901760
        %3177 = vmatpush1.msra.mxu0 %v3176
        %v3178 = vand.u32 %v2788, 4294901760
        %v3179 = vsub.f32 %v2788, %v3178
        %v3180 = vand.u32 %v3179, 4294901760
        %3181 = vmatprep.subr.mxu0 %v3180
        %v3182 = vand.u32 %v2787, 4294901760
        %v3183 = vsub.f32 %v2787, %v3182
        %v3184 = vand.u32 %v3183, 4294901760
        %3185 = vmatpush1.msra.mxu0 %v3184
        %v3186 = vand.u32 %v2790, 4294901760
        %v3187 = vsub.f32 %v2790, %v3186
        %v3188 = vand.u32 %v3187, 4294901760
        %3189 = vmatprep.subr.mxu0 %v3188
        %v3190 = vand.u32 %v2789, 4294901760
        %v3191 = vsub.f32 %v2789, %v3190
        %v3192 = vand.u32 %v3191, 4294901760
        %3193 = vmatpush1.msra.mxu0 %v3192
        %3194 = vmatprep.subr.mxu0 0.0
        %3195 = vmatpush1.msra.mxu0 0.0
        %3196 = vmatprep.subr.mxu0 0.0
        %3197 = vmatpush1.msra.mxu0 0.0
        %3198 = vmatprep.subr.mxu0 0.0
        %3199 = vmatpush1.msra.mxu0 0.0
        %3200 = vmatprep.subr.mxu0 0.0
        %3201 = vmatpush1.msra.mxu0 0.0
        %3202 = vmatprep.subr.mxu0 0.0
        %3203 = vmatpush1.msra.mxu0 0.0
        %3204 = vmatprep.subr.mxu0 0.0
        %3205 = vmatpush1.msra.mxu0 0.0
        %3206 = vmatprep.subr.mxu0 0.0
        %3207 = vmatpush1.msra.mxu0 0.0
        %3208 = vmatprep.subr.mxu0 0.0
        %3209 = vmatpush1.msra.mxu0 0.0
        %3210 = vmatprep.subr.mxu0 0.0
        %3211 = vmatpush1.msra.mxu0 0.0
        %3212 = vmatprep.subr.mxu0 0.0
        %3213 = vmatpush1.msra.mxu0 0.0
        %3214 = vmatprep.subr.mxu0 0.0
        %3215 = vmatpush1.msra.mxu0 0.0
        %3216 = vmatprep.subr.mxu0 0.0
        %3217 = vmatpush1.msra.mxu0 0.0
        %3218 = vmatprep.subr.mxu0 0.0
        %3219 = vmatpush1.msra.mxu0 0.0
        %3220 = vmatprep.subr.mxu0 0.0
        %3221 = vmatpush1.msra.mxu0 0.0
        %3222 = vmatprep.subr.mxu0 0.0
        %3223 = vmatpush1.msra.mxu0 0.0
        %3224 = vmatprep.subr.mxu0 0.0
        %3225 = vmatpush1.msra.mxu0 0.0
        %3226 = vmatprep.subr.mxu0 0.0
        %3227 = vmatpush1.msra.mxu0 0.0
        %3228 = vmatprep.subr.mxu0 0.0
        %3229 = vmatpush1.msra.mxu0 0.0
        %3230 = vmatprep.subr.mxu0 0.0
        %3231 = vmatpush1.msra.mxu0 0.0
        %3232 = vmatprep.subr.mxu0 0.0
        %3233 = vmatpush1.msra.mxu0 0.0
        %3234 = vmatprep.subr.mxu0 0.0
        %3235 = vmatpush1.msra.mxu0 0.0
        %3236 = vmatprep.subr.mxu0 0.0
        %3237 = vmatpush1.msra.mxu0 0.0
        %3238 = vmatprep.subr.mxu0 0.0
        %3239 = vmatpush1.msra.mxu0 0.0
        %3240 = vmatprep.subr.mxu0 0.0
        %3241 = vmatpush1.msra.mxu0 0.0
        %3242 = vmatprep.subr.mxu0 0.0
        %3243 = vmatpush1.msra.mxu0 0.0
        %3244 = vmatprep.subr.mxu0 0.0
        %3245 = vmatpush1.msra.mxu0 0.0
        %3246 = vmatprep.subr.mxu0 0.0
        %3247 = vmatpush1.msra.mxu0 0.0
        %3248 = vmatprep.subr.mxu0 0.0
        %3249 = vmatpush1.msra.mxu0 0.0
        %3250 = vmatprep.mubr.f32.mxu0 0.0
        %v3251 = vand.u32 %v2793, 4294901760
        %3252 = vmatmul.mubr.f32.gmra.mrb[0].mxu0 %v3251
        %v3253 = vpop.f32.mrb[0].mxu0
        %v3254 = vadd.f32 %v3158, %v3253
        %v3255 = vpop.f32.mrb[0].mxu0
        %v3256 = vadd.f32 %v3160, %v3255
        %3257 = vdwg.mxu0
        %v3258 = vand.u32 %v2784, 4294901760
        %3259 = vmatprep.subr.mxu0 %v3258
        %v3260 = vand.u32 %v2783, 4294901760
        %3261 = vmatpush1.msra.mxu0 %v3260
        %v3262 = vand.u32 %v2786, 4294901760
        %3263 = vmatprep.subr.mxu0 %v3262
        %v3264 = vand.u32 %v2785, 4294901760
        %3265 = vmatpush1.msra.mxu0 %v3264
        %v3266 = vand.u32 %v2788, 4294901760
        %3267 = vmatprep.subr.mxu0 %v3266
        %v3268 = vand.u32 %v2787, 4294901760
        %3269 = vmatpush1.msra.mxu0 %v3268
        %v3270 = vand.u32 %v2790, 4294901760
        %3271 = vmatprep.subr.mxu0 %v3270
        %v3272 = vand.u32 %v2789, 4294901760
        %3273 = vmatpush1.msra.mxu0 %v3272
        %3274 = vmatprep.subr.mxu0 0.0
        %3275 = vmatpush1.msra.mxu0 0.0
        %3276 = vmatprep.subr.mxu0 0.0
        %3277 = vmatpush1.msra.mxu0 0.0
        %3278 = vmatprep.subr.mxu0 0.0
        %3279 = vmatpush1.msra.mxu0 0.0
        %3280 = vmatprep.subr.mxu0 0.0
        %3281 = vmatpush1.msra.mxu0 0.0
        %3282 = vmatprep.subr.mxu0 0.0
        %3283 = vmatpush1.msra.mxu0 0.0
        %3284 = vmatprep.subr.mxu0 0.0
        %3285 = vmatpush1.msra.mxu0 0.0
        %3286 = vmatprep.subr.mxu0 0.0
        %3287 = vmatpush1.msra.mxu0 0.0
        %3288 = vmatprep.subr.mxu0 0.0
        %3289 = vmatpush1.msra.mxu0 0.0
        %3290 = vmatprep.subr.mxu0 0.0
        %3291 = vmatpush1.msra.mxu0 0.0
        %3292 = vmatprep.subr.mxu0 0.0
        %3293 = vmatpush1.msra.mxu0 0.0
        %3294 = vmatprep.subr.mxu0 0.0
        %3295 = vmatpush1.msra.mxu0 0.0
        %3296 = vmatprep.subr.mxu0 0.0
        %3297 = vmatpush1.msra.mxu0 0.0
        %3298 = vmatprep.subr.mxu0 0.0
        %3299 = vmatpush1.msra.mxu0 0.0
        %3300 = vmatprep.subr.mxu0 0.0
        %3301 = vmatpush1.msra.mxu0 0.0
        %3302 = vmatprep.subr.mxu0 0.0
        %3303 = vmatpush1.msra.mxu0 0.0
        %3304 = vmatprep.subr.mxu0 0.0
        %3305 = vmatpush1.msra.mxu0 0.0
        %3306 = vmatprep.subr.mxu0 0.0
        %3307 = vmatpush1.msra.mxu0 0.0
        %3308 = vmatprep.subr.mxu0 0.0
        %3309 = vmatpush1.msra.mxu0 0.0
        %3310 = vmatprep.subr.mxu0 0.0
        %3311 = vmatpush1.msra.mxu0 0.0
        %3312 = vmatprep.subr.mxu0 0.0
        %3313 = vmatpush1.msra.mxu0 0.0
        %3314 = vmatprep.subr.mxu0 0.0
        %3315 = vmatpush1.msra.mxu0 0.0
        %3316 = vmatprep.subr.mxu0 0.0
        %3317 = vmatpush1.msra.mxu0 0.0
        %3318 = vmatprep.subr.mxu0 0.0
        %3319 = vmatpush1.msra.mxu0 0.0
        %3320 = vmatprep.subr.mxu0 0.0
        %3321 = vmatpush1.msra.mxu0 0.0
        %3322 = vmatprep.subr.mxu0 0.0
        %3323 = vmatpush1.msra.mxu0 0.0
        %3324 = vmatprep.subr.mxu0 0.0
        %3325 = vmatpush1.msra.mxu0 0.0
        %3326 = vmatprep.subr.mxu0 0.0
        %3327 = vmatpush1.msra.mxu0 0.0
        %3328 = vmatprep.subr.mxu0 0.0
        %3329 = vmatpush1.msra.mxu0 0.0
        %3330 = vmatprep.mubr.f32.mxu0 0.0
        %v3331 = vand.u32 %v2793, 4294901760
        %3332 = vmatmul.mubr.f32.gmra.mrb[0].mxu0 %v3331
        %v3333 = vpop.f32.mrb[0].mxu0
        %v3334 = vadd.f32 %v3254, %v3333
        %v3335 = vpop.f32.mrb[0].mxu0
        %v3336 = vadd.f32 %v3256, %v3335
        %3337 = vdwg.mxu0
        %v3338 = vld [vmem:[%s12] sm:$0xff]
        %3340 = vset.pattern.permute.xlu0 0
        %3341 = vperm.xlu0 %3340, %v3338
        %v3342 = vpop.permute.xlu0 %3341
        %v3344 = vmul.f32 %v3334, %v3342
        %v3345 = vmul.f32 %v3336, %v3342
        %v3346 = vld [vmem:[%s13] sm:$0xff]
        %3348 = vset.pattern.permute.xlu0 0
        %3349 = vperm.xlu0 %3348, %v3346
        %v3350 = vpop.permute.xlu0 %3349
        %v3352 = vadd.f32 %v3344, %v3350
        %v3353 = vadd.f32 %v3345, %v3350
        %3354 = vrot.lane.b32.xlu0 %v3352, 1
        %v3355 = vpop.permute.xlu0 %3354
        %3356 = vrot.lane.b32.xlu0 %v3353, 1
        %v3357 = vpop.permute.xlu0 %3356
        %v3358 = vsel %vm1307, %v3355, %v3357
        %v3359 = vsel %vm1307, %v3357, %v3355
        %v3360 = vmul.f32 %v3359, %v718
        %v3361 = vmul.f32 %v3358, %v719
        %3362 = vrot.lane.b32.xlu0 %v3352, 127
        %v3363 = vpop.permute.xlu0 %3362
        %3364 = vrot.lane.b32.xlu0 %v3353, 127
        %v3365 = vpop.permute.xlu0 %3364
        %v3366 = vsel %vm1324, %v3363, %v3365
        %v3367 = vsel %vm1324, %v3365, %v3363
        %v3368 = vmul.f32 %v3366, %v724
        %v3369 = vmul.f32 %v3367, %v725
        %3370 = vrot.lane.b32.xlu0 %v3360, 16
        %v3371 = vpop.permute.xlu0 %3370
        %3372 = vrot.lane.b32.xlu0 %v3361, 16
        %v3373 = vpop.permute.xlu0 %3372
        %v3374 = vsel %vm1341, %v3371, %v3373
        %v3375 = vsel %vm1341, %v3373, %v3371
        %v3376 = vmul.f32 %v3375, %v730
        %v3377 = vmul.f32 %v3374, %v731
        %v3378 = vld [vmem:[%s14] sm:$0xff]
        %3380 = vset.pattern.permute.xlu0 0
        %3381 = vperm.xlu0 %3380, %v3378
        %v3382 = vpop.permute.xlu0 %3381
        %v3384 = vmul.f32 %v3376, %v3382
        %v3385 = vmul.f32 %v3377, %v3382
        %3386 = vrot.lane.b32.xlu0 %v3352, 16
        %v3387 = vpop.permute.xlu0 %3386
        %3388 = vrot.lane.b32.xlu0 %v3353, 16
        %v3389 = vpop.permute.xlu0 %3388
        %v3390 = vsel %vm1341, %v3387, %v3389
        %v3391 = vsel %vm1341, %v3389, %v3387
        %v3392 = vmul.f32 %v3391, %v730
        %v3393 = vmul.f32 %v3390, %v731
        %s3394 = scalar_lea.vmem %s14, 8
        %v3395 = vld [vmem:[%s3394] sm:$0xff]
        %3397 = vset.pattern.permute.xlu0 0
        %3398 = vperm.xlu0 %3397, %v3395
        %v3399 = vpop.permute.xlu0 %3398
        %v3401 = vmul.f32 %v3392, %v3399
        %v3402 = vmul.f32 %v3393, %v3399
        %v3403 = vadd.f32 %v3384, %v3401
        %v3404 = vadd.f32 %v3385, %v3402
        %3405 = vrot.lane.b32.xlu0 %v3368, 16
        %v3406 = vpop.permute.xlu0 %3405
        %3407 = vrot.lane.b32.xlu0 %v3369, 16
        %v3408 = vpop.permute.xlu0 %3407
        %v3409 = vsel %vm1341, %v3406, %v3408
        %v3410 = vsel %vm1341, %v3408, %v3406
        %v3411 = vmul.f32 %v3410, %v730
        %v3412 = vmul.f32 %v3409, %v731
        %s3413 = scalar_lea.vmem %s14, 16
        %v3414 = vld [vmem:[%s3413] sm:$0xff]
        %3416 = vset.pattern.permute.xlu0 0
        %3417 = vperm.xlu0 %3416, %v3414
        %v3418 = vpop.permute.xlu0 %3417
        %v3420 = vmul.f32 %v3411, %v3418
        %v3421 = vmul.f32 %v3412, %v3418
        %v3422 = vadd.f32 %v3403, %v3420
        %v3423 = vadd.f32 %v3404, %v3421
        %s3424 = scalar_lea.vmem %s14, 24
        %v3425 = vld [vmem:[%s3424] sm:$0xff]
        %3427 = vset.pattern.permute.xlu0 0
        %3428 = vperm.xlu0 %3427, %v3425
        %v3429 = vpop.permute.xlu0 %3428
        %v3431 = vmul.f32 %v3360, %v3429
        %v3432 = vmul.f32 %v3361, %v3429
        %v3433 = vadd.f32 %v3422, %v3431
        %v3434 = vadd.f32 %v3423, %v3432
        %s3435 = scalar_lea.vmem %s14, 32
        %v3436 = vld [vmem:[%s3435] sm:$0xff]
        %3438 = vset.pattern.permute.xlu0 0
        %3439 = vperm.xlu0 %3438, %v3436
        %v3440 = vpop.permute.xlu0 %3439
        %v3442 = vmul.f32 %v3352, %v3440
        %v3443 = vmul.f32 %v3353, %v3440
        %v3444 = vadd.f32 %v3433, %v3442
        %v3445 = vadd.f32 %v3434, %v3443
        %s3446 = scalar_lea.vmem %s14, 40
        %v3447 = vld [vmem:[%s3446] sm:$0xff]
        %3449 = vset.pattern.permute.xlu0 0
        %3450 = vperm.xlu0 %3449, %v3447
        %v3451 = vpop.permute.xlu0 %3450
        %v3453 = vmul.f32 %v3368, %v3451
        %v3454 = vmul.f32 %v3369, %v3451
        %v3455 = vadd.f32 %v3444, %v3453
        %v3456 = vadd.f32 %v3445, %v3454
        %3457 = vrot.lane.b32.xlu0 %v3360, 112
        %v3458 = vpop.permute.xlu0 %3457
        %3459 = vrot.lane.b32.xlu0 %v3361, 112
        %v3460 = vpop.permute.xlu0 %3459
        %v3461 = vsel %vm1511, %v3458, %v3460
        %v3462 = vsel %vm1511, %v3460, %v3458
        %v3463 = vmul.f32 %v3461, %v736
        %v3464 = vmul.f32 %v3462, %v737
        %s3465 = scalar_lea.vmem %s14, 48
        %v3466 = vld [vmem:[%s3465] sm:$0xff]
        %3468 = vset.pattern.permute.xlu0 0
        %3469 = vperm.xlu0 %3468, %v3466
        %v3470 = vpop.permute.xlu0 %3469
        %v3472 = vmul.f32 %v3463, %v3470
        %v3473 = vmul.f32 %v3464, %v3470
        %v3474 = vadd.f32 %v3455, %v3472
        %v3475 = vadd.f32 %v3456, %v3473
        %3476 = vrot.lane.b32.xlu0 %v3352, 112
        %v3477 = vpop.permute.xlu0 %3476
        %3478 = vrot.lane.b32.xlu0 %v3353, 112
        %v3479 = vpop.permute.xlu0 %3478
        %v3480 = vsel %vm1511, %v3477, %v3479
        %v3481 = vsel %vm1511, %v3479, %v3477
        %v3482 = vmul.f32 %v3480, %v736
        %v3483 = vmul.f32 %v3481, %v737
        %s3484 = scalar_lea.vmem %s14, 56
        %v3485 = vld [vmem:[%s3484] sm:$0xff]
        %3487 = vset.pattern.permute.xlu0 0
        %3488 = vperm.xlu0 %3487, %v3485
        %v3489 = vpop.permute.xlu0 %3488
        %v3491 = vmul.f32 %v3482, %v3489
        %v3492 = vmul.f32 %v3483, %v3489
        %v3493 = vadd.f32 %v3474, %v3491
        %v3494 = vadd.f32 %v3475, %v3492
        %3495 = vrot.lane.b32.xlu0 %v3368, 112
        %v3496 = vpop.permute.xlu0 %3495
        %3497 = vrot.lane.b32.xlu0 %v3369, 112
        %v3498 = vpop.permute.xlu0 %3497
        %v3499 = vsel %vm1511, %v3496, %v3498
        %v3500 = vsel %vm1511, %v3498, %v3496
        %v3501 = vmul.f32 %v3499, %v736
        %v3502 = vmul.f32 %v3500, %v737
        %s3503 = scalar_lea.vmem %s14, 64
        %v3504 = vld [vmem:[%s3503] sm:$0xff]
        %3506 = vset.pattern.permute.xlu0 0
        %3507 = vperm.xlu0 %3506, %v3504
        %v3508 = vpop.permute.xlu0 %3507
        %v3510 = vmul.f32 %v3501, %v3508
        %v3511 = vmul.f32 %v3502, %v3508
        %v3512 = vadd.f32 %v3493, %v3510
        %v3513 = vadd.f32 %v3494, %v3511
        %v3514 = vld [vmem:[%s15] sm:$0xff]
        %3516 = vset.pattern.permute.xlu0 0
        %3517 = vperm.xlu0 %3516, %v3514
        %v3518 = vpop.permute.xlu0 %3517
        %v3520 = vmul.f32 %v3512, %v3518
        %v3521 = vmul.f32 %v3513, %v3518
        %v3522 = vld [vmem:[%s16] sm:$0xff]
        %3524 = vset.pattern.permute.xlu0 0
        %3525 = vperm.xlu0 %3524, %v3522
        %v3526 = vpop.permute.xlu0 %3525
        %v3528 = vadd.f32 %v3520, %v3526
        %v3529 = vadd.f32 %v3521, %v3526
        %3530 = vrot.lane.b32.xlu0 %v738, 1
        %v3531 = vpop.permute.xlu0 %3530
        %3532 = vrot.lane.b32.xlu0 %v739, 1
        %v3533 = vpop.permute.xlu0 %3532
        %v3534 = vsel %vm1307, %v3531, %v3533
        %v3535 = vsel %vm1307, %v3533, %v3531
        %v3536 = vmul.f32 %v3535, %v718
        %v3537 = vmul.f32 %v3534, %v719
        %3538 = vrot.lane.b32.xlu0 %v738, 127
        %v3539 = vpop.permute.xlu0 %3538
        %3540 = vrot.lane.b32.xlu0 %v739, 127
        %v3541 = vpop.permute.xlu0 %3540
        %v3542 = vsel %vm1324, %v3539, %v3541
        %v3543 = vsel %vm1324, %v3541, %v3539
        %v3544 = vmul.f32 %v3542, %v724
        %v3545 = vmul.f32 %v3543, %v725
        %3546 = vrot.lane.b32.xlu0 %v3536, 16
        %v3547 = vpop.permute.xlu0 %3546
        %3548 = vrot.lane.b32.xlu0 %v3537, 16
        %v3549 = vpop.permute.xlu0 %3548
        %v3550 = vsel %vm1341, %v3547, %v3549
        %v3551 = vsel %vm1341, %v3549, %v3547
        %v3552 = vmul.f32 %v3551, %v730
        %v3553 = vmul.f32 %v3550, %v731
        %v3554 = vld [vmem:[%s17] sm:$0xff]
        %3556 = vset.pattern.permute.xlu0 0
        %3557 = vperm.xlu0 %3556, %v3554
        %v3558 = vpop.permute.xlu0 %3557
        %v3560 = vmul.f32 %v3552, %v3558
        %v3561 = vmul.f32 %v3553, %v3558
        %3562 = vrot.lane.b32.xlu0 %v738, 16
        %v3563 = vpop.permute.xlu0 %3562
        %3564 = vrot.lane.b32.xlu0 %v739, 16
        %v3565 = vpop.permute.xlu0 %3564
        %v3566 = vsel %vm1341, %v3563, %v3565
        %v3567 = vsel %vm1341, %v3565, %v3563
        %v3568 = vmul.f32 %v3567, %v730
        %v3569 = vmul.f32 %v3566, %v731
        %s3570 = scalar_lea.vmem %s17, 8
        %v3571 = vld [vmem:[%s3570] sm:$0xff]
        %3573 = vset.pattern.permute.xlu0 0
        %3574 = vperm.xlu0 %3573, %v3571
        %v3575 = vpop.permute.xlu0 %3574
        %v3577 = vmul.f32 %v3568, %v3575
        %v3578 = vmul.f32 %v3569, %v3575
        %v3579 = vadd.f32 %v3560, %v3577
        %v3580 = vadd.f32 %v3561, %v3578
        %3581 = vrot.lane.b32.xlu0 %v3544, 16
        %v3582 = vpop.permute.xlu0 %3581
        %3583 = vrot.lane.b32.xlu0 %v3545, 16
        %v3584 = vpop.permute.xlu0 %3583
        %v3585 = vsel %vm1341, %v3582, %v3584
        %v3586 = vsel %vm1341, %v3584, %v3582
        %v3587 = vmul.f32 %v3586, %v730
        %v3588 = vmul.f32 %v3585, %v731
        %s3589 = scalar_lea.vmem %s17, 16
        %v3590 = vld [vmem:[%s3589] sm:$0xff]
        %3592 = vset.pattern.permute.xlu0 0
        %3593 = vperm.xlu0 %3592, %v3590
        %v3594 = vpop.permute.xlu0 %3593
        %v3596 = vmul.f32 %v3587, %v3594
        %v3597 = vmul.f32 %v3588, %v3594
        %v3598 = vadd.f32 %v3579, %v3596
        %v3599 = vadd.f32 %v3580, %v3597
        %s3600 = scalar_lea.vmem %s17, 24
        %v3601 = vld [vmem:[%s3600] sm:$0xff]
        %3603 = vset.pattern.permute.xlu0 0
        %3604 = vperm.xlu0 %3603, %v3601
        %v3605 = vpop.permute.xlu0 %3604
        %v3607 = vmul.f32 %v3536, %v3605
        %v3608 = vmul.f32 %v3537, %v3605
        %v3609 = vadd.f32 %v3598, %v3607
        %v3610 = vadd.f32 %v3599, %v3608
        %s3611 = scalar_lea.vmem %s17, 32
        %v3612 = vld [vmem:[%s3611] sm:$0xff]
        %3614 = vset.pattern.permute.xlu0 0
        %3615 = vperm.xlu0 %3614, %v3612
        %v3616 = vpop.permute.xlu0 %3615
        %v3618 = vmul.f32 %v738, %v3616
        %v3619 = vmul.f32 %v739, %v3616
        %v3620 = vadd.f32 %v3609, %v3618
        %v3621 = vadd.f32 %v3610, %v3619
        %s3622 = scalar_lea.vmem %s17, 40
        %v3623 = vld [vmem:[%s3622] sm:$0xff]
        %3625 = vset.pattern.permute.xlu0 0
        %3626 = vperm.xlu0 %3625, %v3623
        %v3627 = vpop.permute.xlu0 %3626
        %v3629 = vmul.f32 %v3544, %v3627
        %v3630 = vmul.f32 %v3545, %v3627
        %v3631 = vadd.f32 %v3620, %v3629
        %v3632 = vadd.f32 %v3621, %v3630
        %3633 = vrot.lane.b32.xlu0 %v3536, 112
        %v3634 = vpop.permute.xlu0 %3633
        %3635 = vrot.lane.b32.xlu0 %v3537, 112
        %v3636 = vpop.permute.xlu0 %3635
        %v3637 = vsel %vm1511, %v3634, %v3636
        %v3638 = vsel %vm1511, %v3636, %v3634
        %v3639 = vmul.f32 %v3637, %v736
        %v3640 = vmul.f32 %v3638, %v737
        %s3641 = scalar_lea.vmem %s17, 48
        %v3642 = vld [vmem:[%s3641] sm:$0xff]
        %3644 = vset.pattern.permute.xlu0 0
        %3645 = vperm.xlu0 %3644, %v3642
        %v3646 = vpop.permute.xlu0 %3645
        %v3648 = vmul.f32 %v3639, %v3646
        %v3649 = vmul.f32 %v3640, %v3646
        %v3650 = vadd.f32 %v3631, %v3648
        %v3651 = vadd.f32 %v3632, %v3649
        %3652 = vrot.lane.b32.xlu0 %v738, 112
        %v3653 = vpop.permute.xlu0 %3652
        %3654 = vrot.lane.b32.xlu0 %v739, 112
        %v3655 = vpop.permute.xlu0 %3654
        %v3656 = vsel %vm1511, %v3653, %v3655
        %v3657 = vsel %vm1511, %v3655, %v3653
        %v3658 = vmul.f32 %v3656, %v736
        %v3659 = vmul.f32 %v3657, %v737
        %s3660 = scalar_lea.vmem %s17, 56
        %v3661 = vld [vmem:[%s3660] sm:$0xff]
        %3663 = vset.pattern.permute.xlu0 0
        %3664 = vperm.xlu0 %3663, %v3661
        %v3665 = vpop.permute.xlu0 %3664
        %v3667 = vmul.f32 %v3658, %v3665
        %v3668 = vmul.f32 %v3659, %v3665
        %v3669 = vadd.f32 %v3650, %v3667
        %v3670 = vadd.f32 %v3651, %v3668
        %3671 = vrot.lane.b32.xlu0 %v3544, 112
        %v3672 = vpop.permute.xlu0 %3671
        %3673 = vrot.lane.b32.xlu0 %v3545, 112
        %v3674 = vpop.permute.xlu0 %3673
        %v3675 = vsel %vm1511, %v3672, %v3674
        %v3676 = vsel %vm1511, %v3674, %v3672
        %v3677 = vmul.f32 %v3675, %v736
        %v3678 = vmul.f32 %v3676, %v737
        %s3679 = scalar_lea.vmem %s17, 64
        %v3680 = vld [vmem:[%s3679] sm:$0xff]
        %3682 = vset.pattern.permute.xlu0 0
        %3683 = vperm.xlu0 %3682, %v3680
        %v3684 = vpop.permute.xlu0 %3683
        %v3686 = vmul.f32 %v3677, %v3684
        %v3687 = vmul.f32 %v3678, %v3684
        %v3688 = vadd.f32 %v3669, %v3686
        %v3689 = vadd.f32 %v3670, %v3687
        %v3690 = vld [vmem:[%s18] sm:$0xff]
        %3692 = vset.pattern.permute.xlu0 0
        %3693 = vperm.xlu0 %3692, %v3690
        %v3694 = vpop.permute.xlu0 %3693
        %v3696 = vmul.f32 %v3688, %v3694
        %v3697 = vmul.f32 %v3689, %v3694
        %v3698 = vld [vmem:[%s19] sm:$0xff]
        %3700 = vset.pattern.permute.xlu0 0
        %3701 = vperm.xlu0 %3700, %v3698
        %v3702 = vpop.permute.xlu0 %3701
        %v3704 = vadd.f32 %v3696, %v3702
        %v3705 = vadd.f32 %v3697, %v3702
        %v3706 = vld [vmem:[%s20] sm:$0xff]
        %v3707 = vld [vmem:[%s20 + $0x8] sm:$0xff]
        %v3709 = vsel %vm742, %v3706, 0
        %v3712 = vsel %vm742, %v3707, 0
        %v3714 = vand.u32 %v3705, 4294901760
        %3715 = vmatprep.subr.mxu0 %v3714
        %v3716 = vand.u32 %v3704, 4294901760
        %3717 = vmatpush1.msra.mxu0 %v3716
        %3718 = vmatprep.subr.mxu0 0.0
        %3719 = vmatpush1.msra.mxu0 0.0
        %3720 = vmatprep.subr.mxu0 0.0
        %3721 = vmatpush1.msra.mxu0 0.0
        %3722 = vmatprep.subr.mxu0 0.0
        %3723 = vmatpush1.msra.mxu0 0.0
        %3724 = vmatprep.subr.mxu0 0.0
        %3725 = vmatpush1.msra.mxu0 0.0
        %3726 = vmatprep.subr.mxu0 0.0
        %3727 = vmatpush1.msra.mxu0 0.0
        %3728 = vmatprep.subr.mxu0 0.0
        %3729 = vmatpush1.msra.mxu0 0.0
        %3730 = vmatprep.subr.mxu0 0.0
        %3731 = vmatpush1.msra.mxu0 0.0
        %3732 = vmatprep.subr.mxu0 0.0
        %3733 = vmatpush1.msra.mxu0 0.0
        %3734 = vmatprep.subr.mxu0 0.0
        %3735 = vmatpush1.msra.mxu0 0.0
        %3736 = vmatprep.subr.mxu0 0.0
        %3737 = vmatpush1.msra.mxu0 0.0
        %3738 = vmatprep.subr.mxu0 0.0
        %3739 = vmatpush1.msra.mxu0 0.0
        %3740 = vmatprep.subr.mxu0 0.0
        %3741 = vmatpush1.msra.mxu0 0.0
        %3742 = vmatprep.subr.mxu0 0.0
        %3743 = vmatpush1.msra.mxu0 0.0
        %3744 = vmatprep.subr.mxu0 0.0
        %3745 = vmatpush1.msra.mxu0 0.0
        %3746 = vmatprep.subr.mxu0 0.0
        %3747 = vmatpush1.msra.mxu0 0.0
        %3748 = vmatprep.subr.mxu0 0.0
        %3749 = vmatpush1.msra.mxu0 0.0
        %3750 = vmatprep.subr.mxu0 0.0
        %3751 = vmatpush1.msra.mxu0 0.0
        %3752 = vmatprep.subr.mxu0 0.0
        %3753 = vmatpush1.msra.mxu0 0.0
        %3754 = vmatprep.subr.mxu0 0.0
        %3755 = vmatpush1.msra.mxu0 0.0
        %3756 = vmatprep.subr.mxu0 0.0
        %3757 = vmatpush1.msra.mxu0 0.0
        %3758 = vmatprep.subr.mxu0 0.0
        %3759 = vmatpush1.msra.mxu0 0.0
        %3760 = vmatprep.subr.mxu0 0.0
        %3761 = vmatpush1.msra.mxu0 0.0
        %3762 = vmatprep.subr.mxu0 0.0
        %3763 = vmatpush1.msra.mxu0 0.0
        %3764 = vmatprep.subr.mxu0 0.0
        %3765 = vmatpush1.msra.mxu0 0.0
        %3766 = vmatprep.subr.mxu0 0.0
        %3767 = vmatpush1.msra.mxu0 0.0
        %3768 = vmatprep.subr.mxu0 0.0
        %3769 = vmatpush1.msra.mxu0 0.0
        %3770 = vmatprep.subr.mxu0 0.0
        %3771 = vmatpush1.msra.mxu0 0.0
        %3772 = vmatprep.subr.mxu0 0.0
        %3773 = vmatpush1.msra.mxu0 0.0
        %3774 = vmatprep.subr.mxu0 0.0
        %3775 = vmatpush1.msra.mxu0 0.0
        %3776 = vmatprep.subr.mxu0 0.0
        %3777 = vmatpush1.msra.mxu0 0.0
        %3778 = vmatprep.subr.mxu0 0.0
        %3779 = vmatpush1.msra.mxu0 0.0
        %3780 = vmatprep.mubr.f32.mxu0 0.0
        %v3781 = vand.u32 %v3709, 4294901760
        %v3782 = vsub.f32 %v3709, %v3781
        %v3783 = vand.u32 %v3782, 4294901760
        %v3784 = vsub.f32 %v3782, %v3783
        %v3785 = vand.u32 %v3784, 4294901760
        %3786 = vmatmul.mubr.f32.gmra.mrb[0].mxu0 %v3785
        %v3787 = vpop.f32.mrb[0].mxu0
        %v3788 = vadd.f32 0.0, %v3787
        %v3789 = vpop.f32.mrb[0].mxu0
        %v3790 = vadd.f32 0.0, %v3789
        %3791 = vmatprep.mubr.f32.mxu0 0.0
        %v3792 = vand.u32 %v3712, 4294901760
        %v3793 = vsub.f32 %v3712, %v3792
        %v3794 = vand.u32 %v3793, 4294901760
        %v3795 = vsub.f32 %v3793, %v3794
        %v3796 = vand.u32 %v3795, 4294901760
        %3797 = vmatmul.mubr.f32.gmra.mrb[0].mxu0 %v3796
        %v3798 = vpop.f32.mrb[0].mxu0
        %v3799 = vadd.f32 0.0, %v3798
        %v3800 = vpop.f32.mrb[0].mxu0
        %v3801 = vadd.f32 0.0, %v3800
        %3802 = vdwg.mxu0
        %v3803 = vand.u32 %v3705, 4294901760
        %v3804 = vsub.f32 %v3705, %v3803
        %v3805 = vand.u32 %v3804, 4294901760
        %v3806 = vsub.f32 %v3804, %v3805
        %v3807 = vand.u32 %v3806, 4294901760
        %3808 = vmatprep.subr.mxu0 %v3807
        %v3809 = vand.u32 %v3704, 4294901760
        %v3810 = vsub.f32 %v3704, %v3809
        %v3811 = vand.u32 %v3810, 4294901760
        %v3812 = vsub.f32 %v3810, %v3811
        %v3813 = vand.u32 %v3812, 4294901760
        %3814 = vmatpush1.msra.mxu0 %v3813
        %3815 = vmatprep.subr.mxu0 0.0
        %3816 = vmatpush1.msra.mxu0 0.0
        %3817 = vmatprep.subr.mxu0 0.0
        %3818 = vmatpush1.msra.mxu0 0.0
        %3819 = vmatprep.subr.mxu0 0.0
        %3820 = vmatpush1.msra.mxu0 0.0
        %3821 = vmatprep.subr.mxu0 0.0
        %3822 = vmatpush1.msra.mxu0 0.0
        %3823 = vmatprep.subr.mxu0 0.0
        %3824 = vmatpush1.msra.mxu0 0.0
        %3825 = vmatprep.subr.mxu0 0.0
        %3826 = vmatpush1.msra.mxu0 0.0
        %3827 = vmatprep.subr.mxu0 0.0
        %3828 = vmatpush1.msra.mxu0 0.0
        %3829 = vmatprep.subr.mxu0 0.0
        %3830 = vmatpush1.msra.mxu0 0.0
        %3831 = vmatprep.subr.mxu0 0.0
        %3832 = vmatpush1.msra.mxu0 0.0
        %3833 = vmatprep.subr.mxu0 0.0
        %3834 = vmatpush1.msra.mxu0 0.0
        %3835 = vmatprep.subr.mxu0 0.0
        %3836 = vmatpush1.msra.mxu0 0.0
        %3837 = vmatprep.subr.mxu0 0.0
        %3838 = vmatpush1.msra.mxu0 0.0
        %3839 = vmatprep.subr.mxu0 0.0
        %3840 = vmatpush1.msra.mxu0 0.0
        %3841 = vmatprep.subr.mxu0 0.0
        %3842 = vmatpush1.msra.mxu0 0.0
        %3843 = vmatprep.subr.mxu0 0.0
        %3844 = vmatpush1.msra.mxu0 0.0
        %3845 = vmatprep.subr.mxu0 0.0
        %3846 = vmatpush1.msra.mxu0 0.0
        %3847 = vmatprep.subr.mxu0 0.0
        %3848 = vmatpush1.msra.mxu0 0.0
        %3849 = vmatprep.subr.mxu0 0.0
        %3850 = vmatpush1.msra.mxu0 0.0
        %3851 = vmatprep.subr.mxu0 0.0
        %3852 = vmatpush1.msra.mxu0 0.0
        %3853 = vmatprep.subr.mxu0 0.0
        %3854 = vmatpush1.msra.mxu0 0.0
        %3855 = vmatprep.subr.mxu0 0.0
        %3856 = vmatpush1.msra.mxu0 0.0
        %3857 = vmatprep.subr.mxu0 0.0
        %3858 = vmatpush1.msra.mxu0 0.0
        %3859 = vmatprep.subr.mxu0 0.0
        %3860 = vmatpush1.msra.mxu0 0.0
        %3861 = vmatprep.subr.mxu0 0.0
        %3862 = vmatpush1.msra.mxu0 0.0
        %3863 = vmatprep.subr.mxu0 0.0
        %3864 = vmatpush1.msra.mxu0 0.0
        %3865 = vmatprep.subr.mxu0 0.0
        %3866 = vmatpush1.msra.mxu0 0.0
        %3867 = vmatprep.subr.mxu0 0.0
        %3868 = vmatpush1.msra.mxu0 0.0
        %3869 = vmatprep.subr.mxu0 0.0
        %3870 = vmatpush1.msra.mxu0 0.0
        %3871 = vmatprep.subr.mxu0 0.0
        %3872 = vmatpush1.msra.mxu0 0.0
        %3873 = vmatprep.subr.mxu0 0.0
        %3874 = vmatpush1.msra.mxu0 0.0
        %3875 = vmatprep.subr.mxu0 0.0
        %3876 = vmatpush1.msra.mxu0 0.0
        %3877 = vmatprep.mubr.f32.mxu0 0.0
        %v3878 = vand.u32 %v3709, 4294901760
        %3879 = vmatmul.mubr.f32.gmra.mrb[0].mxu0 %v3878
        %v3880 = vpop.f32.mrb[0].mxu0
        %v3881 = vadd.f32 %v3788, %v3880
        %v3882 = vpop.f32.mrb[0].mxu0
        %v3883 = vadd.f32 %v3790, %v3882
        %3884 = vmatprep.mubr.f32.mxu0 0.0
        %v3885 = vand.u32 %v3712, 4294901760
        %3886 = vmatmul.mubr.f32.gmra.mrb[0].mxu0 %v3885
        %v3887 = vpop.f32.mrb[0].mxu0
        %v3888 = vadd.f32 %v3799, %v3887
        %v3889 = vpop.f32.mrb[0].mxu0
        %v3890 = vadd.f32 %v3801, %v3889
        %3891 = vdwg.mxu0
        %v3892 = vand.u32 %v3705, 4294901760
        %v3893 = vsub.f32 %v3705, %v3892
        %3894 = vmatprep.subr.mxu0 %v3893
        %v3895 = vand.u32 %v3704, 4294901760
        %v3896 = vsub.f32 %v3704, %v3895
        %3897 = vmatpush1.msra.mxu0 %v3896
        %3898 = vmatprep.subr.mxu0 0.0
        %3899 = vmatpush1.msra.mxu0 0.0
        %3900 = vmatprep.subr.mxu0 0.0
        %3901 = vmatpush1.msra.mxu0 0.0
        %3902 = vmatprep.subr.mxu0 0.0
        %3903 = vmatpush1.msra.mxu0 0.0
        %3904 = vmatprep.subr.mxu0 0.0
        %3905 = vmatpush1.msra.mxu0 0.0
        %3906 = vmatprep.subr.mxu0 0.0
        %3907 = vmatpush1.msra.mxu0 0.0
        %3908 = vmatprep.subr.mxu0 0.0
        %3909 = vmatpush1.msra.mxu0 0.0
        %3910 = vmatprep.subr.mxu0 0.0
        %3911 = vmatpush1.msra.mxu0 0.0
        %3912 = vmatprep.subr.mxu0 0.0
        %3913 = vmatpush1.msra.mxu0 0.0
        %3914 = vmatprep.subr.mxu0 0.0
        %3915 = vmatpush1.msra.mxu0 0.0
        %3916 = vmatprep.subr.mxu0 0.0
        %3917 = vmatpush1.msra.mxu0 0.0
        %3918 = vmatprep.subr.mxu0 0.0
        %3919 = vmatpush1.msra.mxu0 0.0
        %3920 = vmatprep.subr.mxu0 0.0
        %3921 = vmatpush1.msra.mxu0 0.0
        %3922 = vmatprep.subr.mxu0 0.0
        %3923 = vmatpush1.msra.mxu0 0.0
        %3924 = vmatprep.subr.mxu0 0.0
        %3925 = vmatpush1.msra.mxu0 0.0
        %3926 = vmatprep.subr.mxu0 0.0
        %3927 = vmatpush1.msra.mxu0 0.0
        %3928 = vmatprep.subr.mxu0 0.0
        %3929 = vmatpush1.msra.mxu0 0.0
        %3930 = vmatprep.subr.mxu0 0.0
        %3931 = vmatpush1.msra.mxu0 0.0
        %3932 = vmatprep.subr.mxu0 0.0
        %3933 = vmatpush1.msra.mxu0 0.0
        %3934 = vmatprep.subr.mxu0 0.0
        %3935 = vmatpush1.msra.mxu0 0.0
        %3936 = vmatprep.subr.mxu0 0.0
        %3937 = vmatpush1.msra.mxu0 0.0
        %3938 = vmatprep.subr.mxu0 0.0
        %3939 = vmatpush1.msra.mxu0 0.0
        %3940 = vmatprep.subr.mxu0 0.0
        %3941 = vmatpush1.msra.mxu0 0.0
        %3942 = vmatprep.subr.mxu0 0.0
        %3943 = vmatpush1.msra.mxu0 0.0
        %3944 = vmatprep.subr.mxu0 0.0
        %3945 = vmatpush1.msra.mxu0 0.0
        %3946 = vmatprep.subr.mxu0 0.0
        %3947 = vmatpush1.msra.mxu0 0.0
        %3948 = vmatprep.subr.mxu0 0.0
        %3949 = vmatpush1.msra.mxu0 0.0
        %3950 = vmatprep.subr.mxu0 0.0
        %3951 = vmatpush1.msra.mxu0 0.0
        %3952 = vmatprep.subr.mxu0 0.0
        %3953 = vmatpush1.msra.mxu0 0.0
        %3954 = vmatprep.subr.mxu0 0.0
        %3955 = vmatpush1.msra.mxu0 0.0
        %3956 = vmatprep.subr.mxu0 0.0
        %3957 = vmatpush1.msra.mxu0 0.0
        %3958 = vmatprep.subr.mxu0 0.0
        %3959 = vmatpush1.msra.mxu0 0.0
        %3960 = vmatprep.mubr.f32.mxu0 0.0
        %v3961 = vand.u32 %v3709, 4294901760
        %v3962 = vsub.f32 %v3709, %v3961
        %3963 = vmatmul.mubr.f32.gmra.mrb[0].mxu0 %v3962
        %v3964 = vpop.f32.mrb[0].mxu0
        %v3965 = vadd.f32 %v3881, %v3964
        %v3966 = vpop.f32.mrb[0].mxu0
        %v3967 = vadd.f32 %v3883, %v3966
        %3968 = vmatprep.mubr.f32.mxu0 0.0
        %v3969 = vand.u32 %v3712, 4294901760
        %v3970 = vsub.f32 %v3712, %v3969
        %3971 = vmatmul.mubr.f32.gmra.mrb[0].mxu0 %v3970
        %v3972 = vpop.f32.mrb[0].mxu0
        %v3973 = vadd.f32 %v3888, %v3972
        %v3974 = vpop.f32.mrb[0].mxu0
        %v3975 = vadd.f32 %v3890, %v3974
        %3976 = vdwg.mxu0
        %v3977 = vand.u32 %v3705, 4294901760
        %3978 = vmatprep.subr.mxu0 %v3977
        %v3979 = vand.u32 %v3704, 4294901760
        %3980 = vmatpush1.msra.mxu0 %v3979
        %3981 = vmatprep.subr.mxu0 0.0
        %3982 = vmatpush1.msra.mxu0 0.0
        %3983 = vmatprep.subr.mxu0 0.0
        %3984 = vmatpush1.msra.mxu0 0.0
        %3985 = vmatprep.subr.mxu0 0.0
        %3986 = vmatpush1.msra.mxu0 0.0
        %3987 = vmatprep.subr.mxu0 0.0
        %3988 = vmatpush1.msra.mxu0 0.0
        %3989 = vmatprep.subr.mxu0 0.0
        %3990 = vmatpush1.msra.mxu0 0.0
        %3991 = vmatprep.subr.mxu0 0.0
        %3992 = vmatpush1.msra.mxu0 0.0
        %3993 = vmatprep.subr.mxu0 0.0
        %3994 = vmatpush1.msra.mxu0 0.0
        %3995 = vmatprep.subr.mxu0 0.0
        %3996 = vmatpush1.msra.mxu0 0.0
        %3997 = vmatprep.subr.mxu0 0.0
        %3998 = vmatpush1.msra.mxu0 0.0
        %3999 = vmatprep.subr.mxu0 0.0
        %4000 = vmatpush1.msra.mxu0 0.0
        %4001 = vmatprep.subr.mxu0 0.0
        %4002 = vmatpush1.msra.mxu0 0.0
        %4003 = vmatprep.subr.mxu0 0.0
        %4004 = vmatpush1.msra.mxu0 0.0
        %4005 = vmatprep.subr.mxu0 0.0
        %4006 = vmatpush1.msra.mxu0 0.0
        %4007 = vmatprep.subr.mxu0 0.0
        %4008 = vmatpush1.msra.mxu0 0.0
        %4009 = vmatprep.subr.mxu0 0.0
        %4010 = vmatpush1.msra.mxu0 0.0
        %4011 = vmatprep.subr.mxu0 0.0
        %4012 = vmatpush1.msra.mxu0 0.0
        %4013 = vmatprep.subr.mxu0 0.0
        %4014 = vmatpush1.msra.mxu0 0.0
        %4015 = vmatprep.subr.mxu0 0.0
        %4016 = vmatpush1.msra.mxu0 0.0
        %4017 = vmatprep.subr.mxu0 0.0
        %4018 = vmatpush1.msra.mxu0 0.0
        %4019 = vmatprep.subr.mxu0 0.0
        %4020 = vmatpush1.msra.mxu0 0.0
        %4021 = vmatprep.subr.mxu0 0.0
        %4022 = vmatpush1.msra.mxu0 0.0
        %4023 = vmatprep.subr.mxu0 0.0
        %4024 = vmatpush1.msra.mxu0 0.0
        %4025 = vmatprep.subr.mxu0 0.0
        %4026 = vmatpush1.msra.mxu0 0.0
        %4027 = vmatprep.subr.mxu0 0.0
        %4028 = vmatpush1.msra.mxu0 0.0
        %4029 = vmatprep.subr.mxu0 0.0
        %4030 = vmatpush1.msra.mxu0 0.0
        %4031 = vmatprep.subr.mxu0 0.0
        %4032 = vmatpush1.msra.mxu0 0.0
        %4033 = vmatprep.subr.mxu0 0.0
        %4034 = vmatpush1.msra.mxu0 0.0
        %4035 = vmatprep.subr.mxu0 0.0
        %4036 = vmatpush1.msra.mxu0 0.0
        %4037 = vmatprep.subr.mxu0 0.0
        %4038 = vmatpush1.msra.mxu0 0.0
        %4039 = vmatprep.subr.mxu0 0.0
        %4040 = vmatpush1.msra.mxu0 0.0
        %4041 = vmatprep.subr.mxu0 0.0
        %4042 = vmatpush1.msra.mxu0 0.0
        %4043 = vmatprep.mubr.f32.mxu0 0.0
        %v4044 = vand.u32 %v3709, 4294901760
        %v4045 = vsub.f32 %v3709, %v4044
        %v4046 = vand.u32 %v4045, 4294901760
        %4047 = vmatmul.mubr.f32.gmra.mrb[0].mxu0 %v4046
        %v4048 = vpop.f32.mrb[0].mxu0
        %v4049 = vadd.f32 %v3965, %v4048
        %v4050 = vpop.f32.mrb[0].mxu0
        %v4051 = vadd.f32 %v3967, %v4050
        %4052 = vmatprep.mubr.f32.mxu0 0.0
        %v4053 = vand.u32 %v3712, 4294901760
        %v4054 = vsub.f32 %v3712, %v4053
        %v4055 = vand.u32 %v4054, 4294901760
        %4056 = vmatmul.mubr.f32.gmra.mrb[0].mxu0 %v4055
        %v4057 = vpop.f32.mrb[0].mxu0
        %v4058 = vadd.f32 %v3973, %v4057
        %v4059 = vpop.f32.mrb[0].mxu0
        %v4060 = vadd.f32 %v3975, %v4059
        %4061 = vdwg.mxu0
        %v4062 = vand.u32 %v3705, 4294901760
        %v4063 = vsub.f32 %v3705, %v4062
        %v4064 = vand.u32 %v4063, 4294901760
        %4065 = vmatprep.subr.mxu0 %v4064
        %v4066 = vand.u32 %v3704, 4294901760
        %v4067 = vsub.f32 %v3704, %v4066
        %v4068 = vand.u32 %v4067, 4294901760
        %4069 = vmatpush1.msra.mxu0 %v4068
        %4070 = vmatprep.subr.mxu0 0.0
        %4071 = vmatpush1.msra.mxu0 0.0
        %4072 = vmatprep.subr.mxu0 0.0
        %4073 = vmatpush1.msra.mxu0 0.0
        %4074 = vmatprep.subr.mxu0 0.0
        %4075 = vmatpush1.msra.mxu0 0.0
        %4076 = vmatprep.subr.mxu0 0.0
        %4077 = vmatpush1.msra.mxu0 0.0
        %4078 = vmatprep.subr.mxu0 0.0
        %4079 = vmatpush1.msra.mxu0 0.0
        %4080 = vmatprep.subr.mxu0 0.0
        %4081 = vmatpush1.msra.mxu0 0.0
        %4082 = vmatprep.subr.mxu0 0.0
        %4083 = vmatpush1.msra.mxu0 0.0
        %4084 = vmatprep.subr.mxu0 0.0
        %4085 = vmatpush1.msra.mxu0 0.0
        %4086 = vmatprep.subr.mxu0 0.0
        %4087 = vmatpush1.msra.mxu0 0.0
        %4088 = vmatprep.subr.mxu0 0.0
        %4089 = vmatpush1.msra.mxu0 0.0
        %4090 = vmatprep.subr.mxu0 0.0
        %4091 = vmatpush1.msra.mxu0 0.0
        %4092 = vmatprep.subr.mxu0 0.0
        %4093 = vmatpush1.msra.mxu0 0.0
        %4094 = vmatprep.subr.mxu0 0.0
        %4095 = vmatpush1.msra.mxu0 0.0
        %4096 = vmatprep.subr.mxu0 0.0
        %4097 = vmatpush1.msra.mxu0 0.0
        %4098 = vmatprep.subr.mxu0 0.0
        %4099 = vmatpush1.msra.mxu0 0.0
        %4100 = vmatprep.subr.mxu0 0.0
        %4101 = vmatpush1.msra.mxu0 0.0
        %4102 = vmatprep.subr.mxu0 0.0
        %4103 = vmatpush1.msra.mxu0 0.0
        %4104 = vmatprep.subr.mxu0 0.0
        %4105 = vmatpush1.msra.mxu0 0.0
        %4106 = vmatprep.subr.mxu0 0.0
        %4107 = vmatpush1.msra.mxu0 0.0
        %4108 = vmatprep.subr.mxu0 0.0
        %4109 = vmatpush1.msra.mxu0 0.0
        %4110 = vmatprep.subr.mxu0 0.0
        %4111 = vmatpush1.msra.mxu0 0.0
        %4112 = vmatprep.subr.mxu0 0.0
        %4113 = vmatpush1.msra.mxu0 0.0
        %4114 = vmatprep.subr.mxu0 0.0
        %4115 = vmatpush1.msra.mxu0 0.0
        %4116 = vmatprep.subr.mxu0 0.0
        %4117 = vmatpush1.msra.mxu0 0.0
        %4118 = vmatprep.subr.mxu0 0.0
        %4119 = vmatpush1.msra.mxu0 0.0
        %4120 = vmatprep.subr.mxu0 0.0
        %4121 = vmatpush1.msra.mxu0 0.0
        %4122 = vmatprep.subr.mxu0 0.0
        %4123 = vmatpush1.msra.mxu0 0.0
        %4124 = vmatprep.subr.mxu0 0.0
        %4125 = vmatpush1.msra.mxu0 0.0
        %4126 = vmatprep.subr.mxu0 0.0
        %4127 = vmatpush1.msra.mxu0 0.0
        %4128 = vmatprep.subr.mxu0 0.0
        %4129 = vmatpush1.msra.mxu0 0.0
        %4130 = vmatprep.subr.mxu0 0.0
        %4131 = vmatpush1.msra.mxu0 0.0
        %4132 = vmatprep.mubr.f32.mxu0 0.0
        %v4133 = vand.u32 %v3709, 4294901760
        %4134 = vmatmul.mubr.f32.gmra.mrb[0].mxu0 %v4133
        %v4135 = vpop.f32.mrb[0].mxu0
        %v4136 = vadd.f32 %v4049, %v4135
        %v4137 = vpop.f32.mrb[0].mxu0
        %v4138 = vadd.f32 %v4051, %v4137
        %4139 = vmatprep.mubr.f32.mxu0 0.0
        %v4140 = vand.u32 %v3712, 4294901760
        %4141 = vmatmul.mubr.f32.gmra.mrb[0].mxu0 %v4140
        %v4142 = vpop.f32.mrb[0].mxu0
        %v4143 = vadd.f32 %v4058, %v4142
        %v4144 = vpop.f32.mrb[0].mxu0
        %v4145 = vadd.f32 %v4060, %v4144
        %4146 = vdwg.mxu0
        %v4147 = vand.u32 %v3705, 4294901760
        %4148 = vmatprep.subr.mxu0 %v4147
        %v4149 = vand.u32 %v3704, 4294901760
        %4150 = vmatpush1.msra.mxu0 %v4149
        %4151 = vmatprep.subr.mxu0 0.0
        %4152 = vmatpush1.msra.mxu0 0.0
        %4153 = vmatprep.subr.mxu0 0.0
        %4154 = vmatpush1.msra.mxu0 0.0
        %4155 = vmatprep.subr.mxu0 0.0
        %4156 = vmatpush1.msra.mxu0 0.0
        %4157 = vmatprep.subr.mxu0 0.0
        %4158 = vmatpush1.msra.mxu0 0.0
        %4159 = vmatprep.subr.mxu0 0.0
        %4160 = vmatpush1.msra.mxu0 0.0
        %4161 = vmatprep.subr.mxu0 0.0
        %4162 = vmatpush1.msra.mxu0 0.0
        %4163 = vmatprep.subr.mxu0 0.0
        %4164 = vmatpush1.msra.mxu0 0.0
        %4165 = vmatprep.subr.mxu0 0.0
        %4166 = vmatpush1.msra.mxu0 0.0
        %4167 = vmatprep.subr.mxu0 0.0
        %4168 = vmatpush1.msra.mxu0 0.0
        %4169 = vmatprep.subr.mxu0 0.0
        %4170 = vmatpush1.msra.mxu0 0.0
        %4171 = vmatprep.subr.mxu0 0.0
        %4172 = vmatpush1.msra.mxu0 0.0
        %4173 = vmatprep.subr.mxu0 0.0
        %4174 = vmatpush1.msra.mxu0 0.0
        %4175 = vmatprep.subr.mxu0 0.0
        %4176 = vmatpush1.msra.mxu0 0.0
        %4177 = vmatprep.subr.mxu0 0.0
        %4178 = vmatpush1.msra.mxu0 0.0
        %4179 = vmatprep.subr.mxu0 0.0
        %4180 = vmatpush1.msra.mxu0 0.0
        %4181 = vmatprep.subr.mxu0 0.0
        %4182 = vmatpush1.msra.mxu0 0.0
        %4183 = vmatprep.subr.mxu0 0.0
        %4184 = vmatpush1.msra.mxu0 0.0
        %4185 = vmatprep.subr.mxu0 0.0
        %4186 = vmatpush1.msra.mxu0 0.0
        %4187 = vmatprep.subr.mxu0 0.0
        %4188 = vmatpush1.msra.mxu0 0.0
        %4189 = vmatprep.subr.mxu0 0.0
        %4190 = vmatpush1.msra.mxu0 0.0
        %4191 = vmatprep.subr.mxu0 0.0
        %4192 = vmatpush1.msra.mxu0 0.0
        %4193 = vmatprep.subr.mxu0 0.0
        %4194 = vmatpush1.msra.mxu0 0.0
        %4195 = vmatprep.subr.mxu0 0.0
        %4196 = vmatpush1.msra.mxu0 0.0
        %4197 = vmatprep.subr.mxu0 0.0
        %4198 = vmatpush1.msra.mxu0 0.0
        %4199 = vmatprep.subr.mxu0 0.0
        %4200 = vmatpush1.msra.mxu0 0.0
        %4201 = vmatprep.subr.mxu0 0.0
        %4202 = vmatpush1.msra.mxu0 0.0
        %4203 = vmatprep.subr.mxu0 0.0
        %4204 = vmatpush1.msra.mxu0 0.0
        %4205 = vmatprep.subr.mxu0 0.0
        %4206 = vmatpush1.msra.mxu0 0.0
        %4207 = vmatprep.subr.mxu0 0.0
        %4208 = vmatpush1.msra.mxu0 0.0
        %4209 = vmatprep.subr.mxu0 0.0
        %4210 = vmatpush1.msra.mxu0 0.0
        %4211 = vmatprep.subr.mxu0 0.0
        %4212 = vmatpush1.msra.mxu0 0.0
        %4213 = vmatprep.mubr.f32.mxu0 0.0
        %v4214 = vand.u32 %v3709, 4294901760
        %4215 = vmatmul.mubr.f32.gmra.mrb[0].mxu0 %v4214
        %v4216 = vpop.f32.mrb[0].mxu0
        %v4217 = vadd.f32 %v4136, %v4216
        %v4218 = vpop.f32.mrb[0].mxu0
        %v4219 = vadd.f32 %v4138, %v4218
        %4220 = vmatprep.mubr.f32.mxu0 0.0
        %v4221 = vand.u32 %v3712, 4294901760
        %4222 = vmatmul.mubr.f32.gmra.mrb[0].mxu0 %v4221
        %v4223 = vpop.f32.mrb[0].mxu0
        %v4224 = vadd.f32 %v4143, %v4223
        %v4225 = vpop.f32.mrb[0].mxu0
        %v4226 = vadd.f32 %v4145, %v4225
        %4227 = vdwg.mxu0
        %v4228 = vld [vmem:[%s21] sm:$0xff]
        %v4229 = vld [vmem:[%s21 + $0x8] sm:$0xff]
        %4231 = vset.pattern.permute.xlu0 0
        %4232 = vperm.xlu0 %4231, %v4228
        %v4233 = vpop.permute.xlu0 %4232
        %4236 = vset.pattern.permute.xlu0 0
        %4237 = vperm.xlu0 %4236, %v4229
        %v4238 = vpop.permute.xlu0 %4237
        %v4240 = vmul.f32 %v4217, %v4233
        %v4241 = vmul.f32 %v4219, %v4233
        %v4242 = vmul.f32 %v4224, %v4238
        %v4243 = vmul.f32 %v4226, %v4238
        %v4244 = vld [vmem:[%s22] sm:$0xff]
        %v4245 = vld [vmem:[%s22 + $0x8] sm:$0xff]
        %4247 = vset.pattern.permute.xlu0 0
        %4248 = vperm.xlu0 %4247, %v4244
        %v4249 = vpop.permute.xlu0 %4248
        %4252 = vset.pattern.permute.xlu0 0
        %4253 = vperm.xlu0 %4252, %v4245
        %v4254 = vpop.permute.xlu0 %4253
        %v4256 = vadd.f32 %v4240, %v4249
        %v4257 = vadd.f32 %v4241, %v4249
        %v4258 = vadd.f32 %v4242, %v4254
        %v4259 = vadd.f32 %v4243, %v4254
        %v4260 = vadd.f32 %v3352, %v4256
        %v4261 = vadd.f32 %v3353, %v4257
        %v4262 = vadd.f32 %v3528, %v4258
        %v4263 = vadd.f32 %v3529, %v4259
        %4264 = vst [vmem:[%s703] sm:$0xff] %v4260
        %4265 = vst [vmem:[%s703 + $0x8] sm:$0xff] %v4261
        %4266 = vst [vmem:[%s703 + $0x10] sm:$0xff] %v4262
        %4267 = vst [vmem:[%s703 + $0x18] sm:$0xff] %v4263
        %s4268 = sand.u32 %s533, 1
        %s4269 = scalar_lea.sflag [#allocation3], %s4268
        %s4270 = sand.u32 %s533, 1
        %s4271 = smul.addr %s4270, 32
        %s4272 = scalar_lea.vmem [#allocation2], %s4271
        // Predicated region
        $region113: #{tpu_custom_call.1} parent=111 // pred_check
          %p4273 = pneg %p543
        $region114: #{tpu_custom_call.1} parent=111 // pred_check_branch
          %4275 = sbr.rel (%p4273) target = $region116
        $region115: #{tpu_custom_call.1} parent=111 // pred_region
          %s4277 = ssub.s32 512, 512
          %4278 = vsyncadd %s4269, %s4277
          %s4279 = smul.addr %s37, 4
          %s4280 = smul.addr %s4279, 128
          %s4281 = scalar_lea.hbm %s23, %s4280
          %s4282 = sshll.u32 %s4272, 4
          %s4283 = int_to_ptr.vmem [resolvable:$true] %s4282
          %4288 = dma.vmem_to_hbm [thread:$0]  %s4283, 512, %s4281, %s4269, 256, 256, 16
        $region116: #{tpu_custom_call.1} parent=111 // pred_fallthru
          _
      $region112: #{tpu_custom_call.1} parent=5 // pred_fallthru
        _
      %p4289 = scmp.le.s32.totalorder 2, %s32
      // Predicated region
      $region117: #{tpu_custom_call.1} parent=5 // pred_check
        %p4290 = pneg %p4289
      $region118: #{tpu_custom_call.1} parent=5 // pred_check_branch
        %4292 = sbr.rel (%p4290) target = $region120
      $region119: #{tpu_custom_call.1} parent=5 // pred_region
        %s4293 = ssub.s32 %s32, 2
        // Predicated region
        $region121: #{tpu_custom_call.1} parent=119 // pred_check
          %p4294 = pneg %p549
        $region122: #{tpu_custom_call.1} parent=119 // pred_check_branch
          %4296 = sbr.rel (%p4294) target = $region124
        $region123: #{tpu_custom_call.1} parent=119 // pred_region
          %s4297 = sand.u32 %s534, 1
          %s4298 = scalar_lea.sflag [#allocation3], %s4297
          %s4299 = sand.u32 %s534, 1
          %s4300 = smul.addr %s4299, 32
          %s4301 = scalar_lea.vmem [#allocation2], %s4300
          %4302 = dma.done %s4298, 512
        $region124: #{tpu_custom_call.1} parent=119 // pred_fallthru
          _
      $region120: #{tpu_custom_call.1} parent=5 // pred_fallthru
        _
    $region6: #{tpu_custom_call.1} parent=1 // loop_footer
      %s36 = sadd.s32 1, %s32
    $region7: #{tpu_custom_call.1} parent=1 // loop_footer_branch
      %31 = sbr.rel target = $region3
    $region8: #{tpu_custom_call.1} parent=1 // loop_exit
      _
    %4303 = vsyncpa [#allocation3], 1
    %s4304 = scalar_lea.sflag [#allocation3], 1
    %4305 = vsyncpa %s4304, 1

</llo_original>
